<compile_context>
chip_gen: v7x
topology: tpu7x:2x2x1
jax: 0.10.0
libtpu: 0.0.40
codegen_flags: <defaults>
</compile_context>

<pallas_src>
import functools

import jax
import jax.numpy as jnp
from jax import lax
from jax.experimental import pallas as pl
from jax.experimental.pallas import tpu as pltpu


# ----------------------------------------------------------------------------
# In-kernel helpers
# ----------------------------------------------------------------------------
def _conv3(h_bf, w_ref):
    """Conv1d(k=3, pad=1) over time as three MXU matmuls on shifted bf16 views.

    w_ref is a (3, Cin, Cout) bf16 slab: tap 0 hits x[t-1], tap 1 x[t], tap 2 x[t+1].
    Avoids materializing a (T, 3*Cin) stacked copy.
    """
    T, C = h_bf.shape
    zero_row = jnp.zeros((1, C), jnp.bfloat16)
    prev = jnp.concatenate([zero_row, h_bf[:-1, :]], axis=0)   # x[t-1], zero-padded
    nxt = jnp.concatenate([h_bf[1:, :], zero_row], axis=0)     # x[t+1], zero-padded
    return (jnp.dot(prev, w_ref[0], preferred_element_type=jnp.float32)
            + jnp.dot(h_bf, w_ref[1], preferred_element_type=jnp.float32)
            + jnp.dot(nxt, w_ref[2], preferred_element_type=jnp.float32))


def _layer_norm(h, g, b):
    """One-pass LN statistics: E[x], E[x^2] computed independently (overlappable)."""
    mu = jnp.mean(h, axis=-1, keepdims=True)
    ms = jnp.mean(h * h, axis=-1, keepdims=True)
    var = jnp.maximum(ms - mu * mu, 0.0)
    return (h - mu) * lax.rsqrt(var + 1e-5) * g + b


def _predictor(h_bf, w1_ref, w2_ref, vec_ref):
    """Conv1d-ReLU-LN -> Conv1d-ReLU-LN -> Linear(F, 1); dropout = identity (eval).

    vec_ref rows: 0=b1 1=g1 2=be1 3=b2 4=g2 5=be2 6=w_linear 7=b_linear (broadcast).
    Returns a (T, 1) f32 column.
    """
    vec = vec_ref[...]                                           # (8, F) f32
    h = _layer_norm(jnp.maximum(_conv3(h_bf, w1_ref) + vec[0:1], 0.0),
                    vec[1:2], vec[2:3])
    h = _layer_norm(jnp.maximum(_conv3(h.astype(jnp.bfloat16), w2_ref) + vec[3:4], 0.0),
                    vec[4:5], vec[5:6])
    # Linear(F -> 1): VPU multiply + lane reduction (no N=1 MXU matmul).
    return jnp.sum(h * vec[6:7], axis=-1, keepdims=True) + vec[7:8, 0:1]


def _quant_embed(vals_col, bounds_ref, table_ref):
    """QuantizationEmbedding: bucketize -> one-hot -> one MXU matmul with bf16 table.

    torch.bucketize(v, bounds) (right=False) == number of bounds strictly < v.
    """
    T = vals_col.shape[0]
    nb = table_ref.shape[0]
    bucket = jnp.sum((bounds_ref[...] < vals_col).astype(jnp.int32),
                     axis=-1, keepdims=True)                      # (T, 1) int32
    onehot = (bucket == lax.broadcasted_iota(jnp.int32, (T, nb), 1)
              ).astype(jnp.bfloat16)                              # (T, n_bins) bf16
    return jnp.dot(onehot, table_ref[...],
                   preferred_element_type=jnp.float32)            # (T, H) f32


# ----------------------------------------------------------------------------
# Fused per-batch kernel
# ----------------------------------------------------------------------------
def fused_variance_adaptor_kernel(use_e_tgt, use_p_tgt, energy_alpha, pitch_alpha,
                                  *refs):
    (x_ref, start_ref, cum_ref, e_tgt_ref, p_tgt_ref,
     d_w1, d_w2, d_vec, en_w1, en_w2, en_vec, pi_w1, pi_w2, pi_vec,
     e_bounds_ref, e_table_ref, p_bounds_ref, p_table_ref,
     x_out_ref, dur_out_ref, e_out_ref, p_out_ref) = refs

    T_src = x_ref.shape[0]
    T_mel = x_out_ref.shape[0]

    # Single hoisted bf16 copy of the source activation (shared by the duration
    # predictor conv stack and the alignment matmul RHS).
    x_src_bf = x_ref[...].astype(jnp.bfloat16)                    # (T_src, H)

    # --- duration predictor on source x; clamp(min=1e-8) on the returned prediction,
    #     exactly as the reference applies torch.clamp after the length regulator. ---
    dur_pred = jnp.maximum(_predictor(x_src_bf, d_w1, d_w2, d_vec), 1e-8)   # (T_src, 1)
    dur_out_ref[...] = jnp.transpose(dur_pred).astype(dur_out_ref.dtype)    # lane-dense

    # --- length regulation (teacher forced): out[t] = sum_s [start_s <= t < cum_s] x[s]
    t_idx = lax.broadcasted_iota(jnp.int32, (T_mel, T_src), 0)
    align = ((t_idx >= start_ref[...]) & (t_idx < cum_ref[...])).astype(jnp.bfloat16)
    x = jnp.dot(align, x_src_bf, preferred_element_type=jnp.float32)        # (T_mel, H)

    # --- energy predictor + quantized energy embedding add ---
    e_pred = _predictor(x.astype(jnp.bfloat16), en_w1, en_w2, en_vec) * energy_alpha
    e_out_ref[...] = jnp.transpose(e_pred).astype(e_out_ref.dtype)
    e_vals = jnp.transpose(e_tgt_ref[...]) if use_e_tgt else e_pred          # (T_mel, 1)
    x = x + _quant_embed(e_vals, e_bounds_ref, e_table_ref)

    # --- pitch predictor + quantized pitch embedding add ---
    p_pred = _predictor(x.astype(jnp.bfloat16), pi_w1, pi_w2, pi_vec) * pitch_alpha
    p_out_ref[...] = jnp.transpose(p_pred).astype(p_out_ref.dtype)
    p_vals = jnp.transpose(p_tgt_ref[...]) if use_p_tgt else p_pred
    x = x + _quant_embed(p_vals, p_bounds_ref, p_table_ref)

    x_out_ref[...] = x.astype(x_out_ref.dtype)


# ----------------------------------------------------------------------------
# VarianceAdaptor forward (wrapper)
# ----------------------------------------------------------------------------
def variance_adaptor_forward(params, x, max_len, duration_target,
                             energy_target=None, pitch_target=None,
                             alpha=1.0, energy_alpha=1.0, pitch_alpha=1.0):
    # TODO(synk): inference-time length regulation (duration_target=None) produces a
    # data-dependent output length (round/exp of predicted durations * alpha), which is
    # not expressible with static Pallas output shapes; only the teacher-forced path is
    # implemented.
    assert duration_target is not None
    del alpha  # only used on the unsupported inference path

    B, T_src, H = x.shape
    F_ = params["duration_predictor"]["vec"].shape[1]
    nb = params["energy_table"].shape[0]
    T_mel = int(max_len)

    # Glue: integer duration cumsum / start indices for the alignment matmul (exact).
    dur = duration_target.astype(jnp.int32)
    cum_flat = jnp.cumsum(dur, axis=-1)
    start = (cum_flat - dur).reshape(B, 1, T_src)
    cum = cum_flat.reshape(B, 1, T_src)

    use_e_tgt = energy_target is not None
    use_p_tgt = pitch_target is not None
    # Lane-dense targets: (B, 1, T_mel) with time on the 128-lane axis.
    e_vals = (energy_target.astype(jnp.float32) if use_e_tgt
              else jnp.zeros((B, T_mel), jnp.float32)).reshape(B, 1, T_mel)
    p_vals = (pitch_target.astype(jnp.float32) if use_p_tgt
              else jnp.zeros((B, T_mel), jnp.float32)).reshape(B, 1, T_mel)

    kernel = functools.partial(fused_variance_adaptor_kernel,
                               use_e_tgt, use_p_tgt,
                               float(energy_alpha), float(pitch_alpha))

    zero2 = lambda b: (0, 0)
    zero3 = lambda b: (0, 0, 0)

    def pred_specs(p):
        return [pl.BlockSpec(p["w1"].shape, zero3),     # (3, Cin, F) bf16
                pl.BlockSpec(p["w2"].shape, zero3),     # (3, F,  F) bf16
                pl.BlockSpec(p["vec"].shape, zero2)]    # (8, F)     f32

    def pred_vals(p):
        return [p["w1"], p["w2"], p["vec"]]

    in_specs = (
        [pl.BlockSpec((None, T_src, H), lambda b: (b, 0, 0)),
         pl.BlockSpec((None, 1, T_src), lambda b: (b, 0, 0)),
         pl.BlockSpec((None, 1, T_src), lambda b: (b, 0, 0)),
         pl.BlockSpec((None, 1, T_mel), lambda b: (b, 0, 0)),
         pl.BlockSpec((None, 1, T_mel), lambda b: (b, 0, 0))]
        + pred_specs(params["duration_predictor"])
        + pred_specs(params["energy_predictor"])
        + pred_specs(params["pitch_predictor"])
        + [pl.BlockSpec(params["energy_bounds"].shape, zero2),
           pl.BlockSpec(params["energy_table"].shape, zero2),
           pl.BlockSpec(params["pitch_bounds"].shape, zero2),
           pl.BlockSpec(params["pitch_table"].shape, zero2)])

    # Lane-dense prediction outputs: (B, 1, T) with time on lanes (no masked stores).
    out_specs = [pl.BlockSpec((None, T_mel, H), lambda b: (b, 0, 0)),
                 pl.BlockSpec((None, 1, T_src), lambda b: (b, 0, 0)),
                 pl.BlockSpec((None, 1, T_mel), lambda b: (b, 0, 0)),
                 pl.BlockSpec((None, 1, T_mel), lambda b: (b, 0, 0))]

    out_shape = (jax.ShapeDtypeStruct((B, T_mel, H), jnp.float32),
                 jax.ShapeDtypeStruct((B, 1, T_src), jnp.float32),
                 jax.ShapeDtypeStruct((B, 1, T_mel), jnp.float32),
                 jax.ShapeDtypeStruct((B, 1, T_mel), jnp.float32))

    # Advisory cost estimate so XLA can overlap surrounding glue with the kernel.
    def _nbytes(a):
        return int(a.size) * jnp.dtype(a.dtype).itemsize

    param_bytes = sum(_nbytes(v)
                      for k in ("duration_predictor", "energy_predictor", "pitch_predictor")
                      for v in params[k].values())
    param_bytes += sum(_nbytes(params[k]) for k in
                       ("energy_bounds", "energy_table", "pitch_bounds", "pitch_table"))
    conv_flops = lambda T: 2 * T * (3 * H * F_ + 3 * F_ * F_)
    flops = B * (conv_flops(T_src) + 2 * conv_flops(T_mel)
                 + 2 * T_mel * T_src * H + 2 * (2 * T_mel * nb * H))
    transcendentals = B * (2 * T_src + 4 * T_mel)
    io_bytes = (B * T_src * H * 4 + B * (2 * T_src + 2 * T_mel) * 4   # x, start/cum, tgts
                + B * T_mel * H * 4 + B * (T_src + 2 * T_mel) * 4)    # outputs
    cost = pl.CostEstimate(flops=int(flops), transcendentals=int(transcendentals),
                           bytes_accessed=int(io_bytes + B * param_bytes))

    # Explicit scoped-VMEM budget sized from the per-grid-step blocks (+ margin for
    # intermediates), clamped to a range that is safe on v5e/v6e (128 MiB) and v7x (64).
    step_bytes = (T_src * H * 4 + 2 * T_src * 4 + 2 * T_mel * 4 + param_bytes
                  + T_mel * H * 4 + T_src * 4 + 2 * T_mel * 4)
    vmem_limit = int(min(48 * 2**20, max(32 * 2**20, 8 * step_bytes)))

    x_out, dur_p, e_p, p_p = pl.pallas_call(
        kernel,
        out_shape=out_shape,
        grid=(B,),
        in_specs=in_specs,
        out_specs=out_specs,
        compiler_params=pltpu.CompilerParams(
            dimension_semantics=("parallel",),
            vmem_limit_bytes=vmem_limit),
        cost_estimate=cost,
    )(x, start, cum, e_vals, p_vals,
      *pred_vals(params["duration_predictor"]),
      *pred_vals(params["energy_predictor"]),
      *pred_vals(params["pitch_predictor"]),
      params["energy_bounds"], params["energy_table"],
      params["pitch_bounds"], params["pitch_table"])

    return x_out, dur_p[:, 0, :], e_p[:, 0, :], p_p[:, 0, :]


# ----------------------------------------------------------------------------
# Deterministic parameter init (synthetic weights; shapes follow the module __init__).
# Conv taps stored pre-stacked as (3, Cin, Cout) bf16; per-predictor vectors packed
# into one (8, F) slab: [b1, g1, be1, b2, g2, be2, w_linear, b_linear].
# ----------------------------------------------------------------------------
def init_variance_predictor_params(key, hidden, filt):
    k0, k1, k2 = jax.random.split(key, 3)
    vec = jnp.zeros((8, filt), jnp.float32)
    vec = vec.at[1].set(1.0)                                     # LN1 gain
    vec = vec.at[4].set(1.0)                                     # LN2 gain
    vec = vec.at[6].set(jax.random.normal(k2, (filt,)) * 0.05)   # Linear(F,1) weight
    return {
        "w1": (jax.random.normal(k0, (3, hidden, filt)) * 0.05).astype(jnp.bfloat16),
        "w2": (jax.random.normal(k1, (3, filt, filt)) * 0.05).astype(jnp.bfloat16),
        "vec": vec,
    }


if __name__ == "__main__":
    B, T_SRC, MAX_LEN = 2, 8, 16
    HIDDEN, FILT = 32, 32          # encoder_dim, variance_predictor_filter_size
    N_BINS = 8                     # variance_embedding_bins
    ENERGY_MIN_MAX = (0.0, 1.0)
    PITCH_MIN_MAX = (-1.0, 1.0)

    key = jax.random.PRNGKey(0)
    ks = jax.random.split(key, 8)

    params = {
        "duration_predictor": init_variance_predictor_params(ks[0], HIDDEN, FILT),
        "energy_predictor": init_variance_predictor_params(ks[1], HIDDEN, FILT),
        "pitch_predictor": init_variance_predictor_params(ks[2], HIDDEN, FILT),
        "energy_bounds": jnp.linspace(*ENERGY_MIN_MAX, N_BINS - 1,
                                      dtype=jnp.float32).reshape(1, -1),
        "energy_table": (jax.random.normal(ks[3], (N_BINS, HIDDEN)) * 0.1
                         ).astype(jnp.bfloat16),
        "pitch_bounds": jnp.linspace(*PITCH_MIN_MAX, N_BINS - 1,
                                     dtype=jnp.float32).reshape(1, -1),
        "pitch_table": (jax.random.normal(ks[4], (N_BINS, HIDDEN)) * 0.1
                        ).astype(jnp.bfloat16),
    }

    x = jax.random.normal(ks[5], (B, T_SRC, HIDDEN), jnp.float32)
    duration_target = jnp.full((B, T_SRC), 2, jnp.int32)            # sums to MAX_LEN/row
    energy_target = jax.random.uniform(ks[6], (B, MAX_LEN), jnp.float32,
                                       minval=0.0, maxval=1.0)
    pitch_target = jax.random.uniform(ks[7], (B, MAX_LEN), jnp.float32,
                                      minval=-1.0, maxval=1.0)

    fwd = jax.jit(functools.partial(variance_adaptor_forward, max_len=MAX_LEN))
    out, dur_p, e_p, p_p = fwd(params, x,
                               duration_target=duration_target,
                               energy_target=energy_target,
                               pitch_target=pitch_target)
    jax.block_until_ready((out, dur_p, e_p, p_p))

    assert out.shape == (B, MAX_LEN, HIDDEN)
    assert dur_p.shape == (B, T_SRC)
    assert e_p.shape == (B, MAX_LEN) and p_p.shape == (B, MAX_LEN)
    assert bool(jnp.all(jnp.isfinite(out)))
    assert bool(jnp.all(dur_p >= 1e-8))
    print("KERNEL_OK")
</pallas_src>

<mosaic_0001>
module attributes {stable_mosaic.version = 11 : i64} {
  func.func @fused_variance_adaptor_kernel(%arg0: i32, %arg1: memref<1x8x32xf32, #tpu.memory_space<vmem>>, %arg2: memref<1x1x8xi32, #tpu.memory_space<vmem>>, %arg3: memref<1x1x8xi32, #tpu.memory_space<vmem>>, %arg4: memref<1x1x16xf32, #tpu.memory_space<vmem>>, %arg5: memref<1x1x16xf32, #tpu.memory_space<vmem>>, %arg6: memref<3x32x32xbf16, #tpu.memory_space<vmem>>, %arg7: memref<3x32x32xbf16, #tpu.memory_space<vmem>>, %arg8: memref<8x32xf32, #tpu.memory_space<vmem>>, %arg9: memref<3x32x32xbf16, #tpu.memory_space<vmem>>, %arg10: memref<3x32x32xbf16, #tpu.memory_space<vmem>>, %arg11: memref<8x32xf32, #tpu.memory_space<vmem>>, %arg12: memref<3x32x32xbf16, #tpu.memory_space<vmem>>, %arg13: memref<3x32x32xbf16, #tpu.memory_space<vmem>>, %arg14: memref<8x32xf32, #tpu.memory_space<vmem>>, %arg15: memref<1x7xf32, #tpu.memory_space<vmem>>, %arg16: memref<8x32xbf16, #tpu.memory_space<vmem>>, %arg17: memref<1x7xf32, #tpu.memory_space<vmem>>, %arg18: memref<8x32xbf16, #tpu.memory_space<vmem>>, %arg19: memref<1x16x32xf32, #tpu.memory_space<vmem>>, %arg20: memref<1x1x8xf32, #tpu.memory_space<vmem>>, %arg21: memref<1x1x16xf32, #tpu.memory_space<vmem>>, %arg22: memref<1x1x16xf32, #tpu.memory_space<vmem>>) attributes {dimension_semantics = [#tpu.dimension_semantics<parallel>], iteration_bounds = array<i64: 2>, scalar_prefetch = 0 : i64, scratch_operands = 0 : i64, tpu.core_type = #tpu.core_type<tc>, window_params = [{transform_indices = @transform_0, window_bounds = array<i64: 1, 8, 32>}, {transform_indices = @transform_1, window_bounds = array<i64: 1, 1, 8>}, {transform_indices = @transform_2, window_bounds = array<i64: 1, 1, 8>}, {transform_indices = @transform_3, window_bounds = array<i64: 1, 1, 16>}, {transform_indices = @transform_4, window_bounds = array<i64: 1, 1, 16>}, {pipeline_mode = #tpu.pipeline_mode<synchronous>, transform_indices = @transform_5, window_bounds = array<i64: 3, 32, 32>}, {pipeline_mode = #tpu.pipeline_mode<synchronous>, transform_indices = @transform_6, window_bounds = array<i64: 3, 32, 32>}, {pipeline_mode = #tpu.pipeline_mode<synchronous>, transform_indices = @transform_7, window_bounds = array<i64: 8, 32>}, {pipeline_mode = #tpu.pipeline_mode<synchronous>, transform_indices = @transform_8, window_bounds = array<i64: 3, 32, 32>}, {pipeline_mode = #tpu.pipeline_mode<synchronous>, transform_indices = @transform_9, window_bounds = array<i64: 3, 32, 32>}, {pipeline_mode = #tpu.pipeline_mode<synchronous>, transform_indices = @transform_10, window_bounds = array<i64: 8, 32>}, {pipeline_mode = #tpu.pipeline_mode<synchronous>, transform_indices = @transform_11, window_bounds = array<i64: 3, 32, 32>}, {pipeline_mode = #tpu.pipeline_mode<synchronous>, transform_indices = @transform_12, window_bounds = array<i64: 3, 32, 32>}, {pipeline_mode = #tpu.pipeline_mode<synchronous>, transform_indices = @transform_13, window_bounds = array<i64: 8, 32>}, {pipeline_mode = #tpu.pipeline_mode<synchronous>, transform_indices = @transform_14, window_bounds = array<i64: 1, 7>}, {pipeline_mode = #tpu.pipeline_mode<synchronous>, transform_indices = @transform_15, window_bounds = array<i64: 8, 32>}, {pipeline_mode = #tpu.pipeline_mode<synchronous>, transform_indices = @transform_16, window_bounds = array<i64: 1, 7>}, {pipeline_mode = #tpu.pipeline_mode<synchronous>, transform_indices = @transform_17, window_bounds = array<i64: 8, 32>}, {transform_indices = @transform_18, window_bounds = array<i64: 1, 16, 32>}, {transform_indices = @transform_19, window_bounds = array<i64: 1, 1, 8>}, {transform_indices = @transform_20, window_bounds = array<i64: 1, 1, 16>}, {transform_indices = @transform_21, window_bounds = array<i64: 1, 1, 16>}]} {
    %c0 = arith.constant 0 : index
    %c0_0 = arith.constant 0 : index
    %c0_1 = arith.constant 0 : index
    %0 = vector.load %arg1[%c0, %c0_0, %c0_1] : memref<1x8x32xf32, #tpu.memory_space<vmem>>, vector<1x8x32xf32>
    %1 = vector.shape_cast %0 : vector<1x8x32xf32> to vector<8x32xf32>
    %2 = arith.truncf %1 : vector<8x32xf32> to vector<8x32xbf16>
    %c0_2 = arith.constant 0 : index
    %c0_3 = arith.constant 0 : index
    %3 = vector.load %arg8[%c0_2, %c0_3] : memref<8x32xf32, #tpu.memory_space<vmem>>, vector<8x32xf32>
    %cst = arith.constant 0.000000e+00 : bf16
    %4 = vector.broadcast %cst : bf16 to vector<1x32xbf16>
    %5 = vector.extract_strided_slice %2 {offsets = [0, 0], sizes = [7, 32], strides = [1, 1]} : vector<8x32xbf16> to vector<7x32xbf16>
    %6 = tpu.concatenate %4, %5 in 0 : vector<1x32xbf16>, vector<7x32xbf16> -> vector<8x32xbf16>
    %7 = vector.extract_strided_slice %2 {offsets = [1, 0], sizes = [7, 32], strides = [1, 1]} : vector<8x32xbf16> to vector<7x32xbf16>
    %8 = tpu.concatenate %7, %4 in 0 : vector<7x32xbf16>, vector<1x32xbf16> -> vector<8x32xbf16>
    %c0_4 = arith.constant 0 : index
    %c0_5 = arith.constant 0 : index
    %c0_6 = arith.constant 0 : index
    %9 = vector.load %arg6[%c0_4, %c0_5, %c0_6] : memref<3x32x32xbf16, #tpu.memory_space<vmem>>, vector<1x32x32xbf16>
    %10 = vector.shape_cast %9 : vector<1x32x32xbf16> to vector<32x32xbf16>
    %cst_7 = arith.constant dense<0.000000e+00> : vector<8x32xf32>
    %11 = tpu.matmul %6, %10, %cst_7 {dimension_numbers = #tpu.dot_dimension_numbers<[1], [0], [0], [1], [0, 0, 1, 1], [], []>} : vector<8x32xbf16>, vector<32x32xbf16>, vector<8x32xf32> -> vector<8x32xf32>
    %c1 = arith.constant 1 : index
    %c0_8 = arith.constant 0 : index
    %c0_9 = arith.constant 0 : index
    %12 = vector.load %arg6[%c1, %c0_8, %c0_9] : memref<3x32x32xbf16, #tpu.memory_space<vmem>>, vector<1x32x32xbf16>
    %13 = vector.shape_cast %12 : vector<1x32x32xbf16> to vector<32x32xbf16>
    %cst_10 = arith.constant dense<0.000000e+00> : vector<8x32xf32>
    %14 = tpu.matmul %2, %13, %cst_10 {dimension_numbers = #tpu.dot_dimension_numbers<[1], [0], [0], [1], [0, 0, 1, 1], [], []>} : vector<8x32xbf16>, vector<32x32xbf16>, vector<8x32xf32> -> vector<8x32xf32>
    %15 = arith.addf %11, %14 : vector<8x32xf32>
    %c2 = arith.constant 2 : index
    %c0_11 = arith.constant 0 : index
    %c0_12 = arith.constant 0 : index
    %16 = vector.load %arg6[%c2, %c0_11, %c0_12] : memref<3x32x32xbf16, #tpu.memory_space<vmem>>, vector<1x32x32xbf16>
    %17 = vector.shape_cast %16 : vector<1x32x32xbf16> to vector<32x32xbf16>
    %cst_13 = arith.constant dense<0.000000e+00> : vector<8x32xf32>
    %18 = tpu.matmul %8, %17, %cst_13 {dimension_numbers = #tpu.dot_dimension_numbers<[1], [0], [0], [1], [0, 0, 1, 1], [], []>} : vector<8x32xbf16>, vector<32x32xbf16>, vector<8x32xf32> -> vector<8x32xf32>
    %19 = arith.addf %15, %18 : vector<8x32xf32>
    %20 = vector.extract_strided_slice %3 {offsets = [0, 0], sizes = [1, 32], strides = [1, 1]} : vector<8x32xf32> to vector<1x32xf32>
    %21 = vector.broadcast %20 : vector<1x32xf32> to vector<8x32xf32>
    %22 = arith.addf %19, %21 : vector<8x32xf32>
    %cst_14 = arith.constant 0.000000e+00 : f32
    %23 = vector.broadcast %cst_14 : f32 to vector<8x32xf32>
    %24 = arith.maximumf %22, %23 : vector<8x32xf32>
    %25 = vector.extract_strided_slice %3 {offsets = [1, 0], sizes = [1, 32], strides = [1, 1]} : vector<8x32xf32> to vector<1x32xf32>
    %26 = vector.extract_strided_slice %3 {offsets = [2, 0], sizes = [1, 32], strides = [1, 1]} : vector<8x32xf32> to vector<1x32xf32>
    %cst_15 = arith.constant dense<0.000000e+00> : vector<8xf32>
    %27 = vector.multi_reduction <add>, %24, %cst_15 [1] : vector<8x32xf32> to vector<8xf32>
    %28 = vector.shape_cast %27 : vector<8xf32> to vector<8x1xf32>
    %cst_16 = arith.constant 3.200000e+01 : f32
    %29 = vector.broadcast %cst_16 : f32 to vector<8x1xf32>
    %30 = arith.divf %28, %29 : vector<8x1xf32>
    %31 = arith.mulf %24, %24 : vector<8x32xf32>
    %cst_17 = arith.constant dense<0.000000e+00> : vector<8xf32>
    %32 = vector.multi_reduction <add>, %31, %cst_17 [1] : vector<8x32xf32> to vector<8xf32>
    %33 = vector.shape_cast %32 : vector<8xf32> to vector<8x1xf32>
    %cst_18 = arith.constant 3.200000e+01 : f32
    %34 = vector.broadcast %cst_18 : f32 to vector<8x1xf32>
    %35 = arith.divf %33, %34 : vector<8x1xf32>
    %36 = arith.mulf %30, %30 : vector<8x1xf32>
    %37 = arith.subf %35, %36 : vector<8x1xf32>
    %cst_19 = arith.constant 0.000000e+00 : f32
    %38 = vector.broadcast %cst_19 : f32 to vector<8x1xf32>
    %39 = arith.maximumf %37, %38 : vector<8x1xf32>
    %40 = vector.broadcast %30 : vector<8x1xf32> to vector<8x32xf32>
    %41 = arith.subf %24, %40 : vector<8x32xf32>
    %cst_20 = arith.constant 9.99999974E-6 : f32
    %42 = vector.broadcast %cst_20 : f32 to vector<8x1xf32>
    %43 = arith.addf %39, %42 : vector<8x1xf32>
    %44 = math.rsqrt %43 : vector<8x1xf32>
    %45 = vector.broadcast %44 : vector<8x1xf32> to vector<8x32xf32>
    %46 = arith.mulf %41, %45 : vector<8x32xf32>
    %47 = vector.broadcast %25 : vector<1x32xf32> to vector<8x32xf32>
    %48 = arith.mulf %46, %47 : vector<8x32xf32>
    %49 = vector.broadcast %26 : vector<1x32xf32> to vector<8x32xf32>
    %50 = arith.addf %48, %49 : vector<8x32xf32>
    %51 = arith.truncf %50 : vector<8x32xf32> to vector<8x32xbf16>
    %cst_21 = arith.constant 0.000000e+00 : bf16
    %52 = vector.broadcast %cst_21 : bf16 to vector<1x32xbf16>
    %53 = vector.extract_strided_slice %51 {offsets = [0, 0], sizes = [7, 32], strides = [1, 1]} : vector<8x32xbf16> to vector<7x32xbf16>
    %54 = tpu.concatenate %52, %53 in 0 : vector<1x32xbf16>, vector<7x32xbf16> -> vector<8x32xbf16>
    %55 = vector.extract_strided_slice %51 {offsets = [1, 0], sizes = [7, 32], strides = [1, 1]} : vector<8x32xbf16> to vector<7x32xbf16>
    %56 = tpu.concatenate %55, %52 in 0 : vector<7x32xbf16>, vector<1x32xbf16> -> vector<8x32xbf16>
    %c0_22 = arith.constant 0 : index
    %c0_23 = arith.constant 0 : index
    %c0_24 = arith.constant 0 : index
    %57 = vector.load %arg7[%c0_22, %c0_23, %c0_24] : memref<3x32x32xbf16, #tpu.memory_space<vmem>>, vector<1x32x32xbf16>
    %58 = vector.shape_cast %57 : vector<1x32x32xbf16> to vector<32x32xbf16>
    %cst_25 = arith.constant dense<0.000000e+00> : vector<8x32xf32>
    %59 = tpu.matmul %54, %58, %cst_25 {dimension_numbers = #tpu.dot_dimension_numbers<[1], [0], [0], [1], [0, 0, 1, 1], [], []>} : vector<8x32xbf16>, vector<32x32xbf16>, vector<8x32xf32> -> vector<8x32xf32>
    %c1_26 = arith.constant 1 : index
    %c0_27 = arith.constant 0 : index
    %c0_28 = arith.constant 0 : index
    %60 = vector.load %arg7[%c1_26, %c0_27, %c0_28] : memref<3x32x32xbf16, #tpu.memory_space<vmem>>, vector<1x32x32xbf16>
    %61 = vector.shape_cast %60 : vector<1x32x32xbf16> to vector<32x32xbf16>
    %cst_29 = arith.constant dense<0.000000e+00> : vector<8x32xf32>
    %62 = tpu.matmul %51, %61, %cst_29 {dimension_numbers = #tpu.dot_dimension_numbers<[1], [0], [0], [1], [0, 0, 1, 1], [], []>} : vector<8x32xbf16>, vector<32x32xbf16>, vector<8x32xf32> -> vector<8x32xf32>
    %63 = arith.addf %59, %62 : vector<8x32xf32>
    %c2_30 = arith.constant 2 : index
    %c0_31 = arith.constant 0 : index
    %c0_32 = arith.constant 0 : index
    %64 = vector.load %arg7[%c2_30, %c0_31, %c0_32] : memref<3x32x32xbf16, #tpu.memory_space<vmem>>, vector<1x32x32xbf16>
    %65 = vector.shape_cast %64 : vector<1x32x32xbf16> to vector<32x32xbf16>
    %cst_33 = arith.constant dense<0.000000e+00> : vector<8x32xf32>
    %66 = tpu.matmul %56, %65, %cst_33 {dimension_numbers = #tpu.dot_dimension_numbers<[1], [0], [0], [1], [0, 0, 1, 1], [], []>} : vector<8x32xbf16>, vector<32x32xbf16>, vector<8x32xf32> -> vector<8x32xf32>
    %67 = arith.addf %63, %66 : vector<8x32xf32>
    %68 = vector.extract_strided_slice %3 {offsets = [3, 0], sizes = [1, 32], strides = [1, 1]} : vector<8x32xf32> to vector<1x32xf32>
    %69 = vector.broadcast %68 : vector<1x32xf32> to vector<8x32xf32>
    %70 = arith.addf %67, %69 : vector<8x32xf32>
    %cst_34 = arith.constant 0.000000e+00 : f32
    %71 = vector.broadcast %cst_34 : f32 to vector<8x32xf32>
    %72 = arith.maximumf %70, %71 : vector<8x32xf32>
    %73 = vector.extract_strided_slice %3 {offsets = [4, 0], sizes = [1, 32], strides = [1, 1]} : vector<8x32xf32> to vector<1x32xf32>
    %74 = vector.extract_strided_slice %3 {offsets = [5, 0], sizes = [1, 32], strides = [1, 1]} : vector<8x32xf32> to vector<1x32xf32>
    %cst_35 = arith.constant dense<0.000000e+00> : vector<8xf32>
    %75 = vector.multi_reduction <add>, %72, %cst_35 [1] : vector<8x32xf32> to vector<8xf32>
    %76 = vector.shape_cast %75 : vector<8xf32> to vector<8x1xf32>
    %cst_36 = arith.constant 3.200000e+01 : f32
    %77 = vector.broadcast %cst_36 : f32 to vector<8x1xf32>
    %78 = arith.divf %76, %77 : vector<8x1xf32>
    %79 = arith.mulf %72, %72 : vector<8x32xf32>
    %cst_37 = arith.constant dense<0.000000e+00> : vector<8xf32>
    %80 = vector.multi_reduction <add>, %79, %cst_37 [1] : vector<8x32xf32> to vector<8xf32>
    %81 = vector.shape_cast %80 : vector<8xf32> to vector<8x1xf32>
    %cst_38 = arith.constant 3.200000e+01 : f32
    %82 = vector.broadcast %cst_38 : f32 to vector<8x1xf32>
    %83 = arith.divf %81, %82 : vector<8x1xf32>
    %84 = arith.mulf %78, %78 : vector<8x1xf32>
    %85 = arith.subf %83, %84 : vector<8x1xf32>
    %cst_39 = arith.constant 0.000000e+00 : f32
    %86 = vector.broadcast %cst_39 : f32 to vector<8x1xf32>
    %87 = arith.maximumf %85, %86 : vector<8x1xf32>
    %88 = vector.broadcast %78 : vector<8x1xf32> to vector<8x32xf32>
    %89 = arith.subf %72, %88 : vector<8x32xf32>
    %cst_40 = arith.constant 9.99999974E-6 : f32
    %90 = vector.broadcast %cst_40 : f32 to vector<8x1xf32>
    %91 = arith.addf %87, %90 : vector<8x1xf32>
    %92 = math.rsqrt %91 : vector<8x1xf32>
    %93 = vector.broadcast %92 : vector<8x1xf32> to vector<8x32xf32>
    %94 = arith.mulf %89, %93 : vector<8x32xf32>
    %95 = vector.broadcast %73 : vector<1x32xf32> to vector<8x32xf32>
    %96 = arith.mulf %94, %95 : vector<8x32xf32>
    %97 = vector.broadcast %74 : vector<1x32xf32> to vector<8x32xf32>
    %98 = arith.addf %96, %97 : vector<8x32xf32>
    %99 = vector.extract_strided_slice %3 {offsets = [6, 0], sizes = [1, 32], strides = [1, 1]} : vector<8x32xf32> to vector<1x32xf32>
    %100 = vector.broadcast %99 : vector<1x32xf32> to vector<8x32xf32>
    %101 = arith.mulf %98, %100 : vector<8x32xf32>
    %cst_41 = arith.constant dense<0.000000e+00> : vector<8xf32>
    %102 = vector.multi_reduction <add>, %101, %cst_41 [1] : vector<8x32xf32> to vector<8xf32>
    %103 = vector.shape_cast %102 : vector<8xf32> to vector<8x1xf32>
    %104 = vector.extract_strided_slice %3 {offsets = [7, 0], sizes = [1, 1], strides = [1, 1]} : vector<8x32xf32> to vector<1x1xf32>
    %105 = vector.broadcast %104 : vector<1x1xf32> to vector<8x1xf32>
    %106 = arith.addf %103, %105 : vector<8x1xf32>
    %cst_42 = arith.constant 9.99999993E-9 : f32
    %107 = vector.broadcast %cst_42 : f32 to vector<8x1xf32>
    %108 = arith.maximumf %106, %107 : vector<8x1xf32>
    %109 = tpu.transpose %108, [1, 0] : vector<8x1xf32> -> vector<1x8xf32>
    %c0_43 = arith.constant 0 : index
    %c0_44 = arith.constant 0 : index
    %c0_45 = arith.constant 0 : index
    %110 = vector.load %arg20[%c0_43, %c0_44, %c0_45] : memref<1x1x8xf32, #tpu.memory_space<vmem>>, vector<1x1x8xf32>
    %111 = vector.shape_cast %110 : vector<1x1x8xf32> to vector<1x8xf32>
    %112 = vector.shape_cast %109 : vector<1x8xf32> to vector<1x1x8xf32>
    tpu.vector_store %arg20[%c0_43, %c0_44, %c0_45], %112 {strides = array<i32>} : memref<1x1x8xf32, #tpu.memory_space<vmem>>, vector<1x1x8xf32>,
    %113 = tpu.iota {dimensions = array<i32: 0>} : vector<16x8xi32>
    %c0_46 = arith.constant 0 : index
    %c0_47 = arith.constant 0 : index
    %c0_48 = arith.constant 0 : index
    %114 = vector.load %arg2[%c0_46, %c0_47, %c0_48] : memref<1x1x8xi32, #tpu.memory_space<vmem>>, vector<1x1x8xi32>
    %115 = vector.shape_cast %114 : vector<1x1x8xi32> to vector<1x8xi32>
    %116 = vector.broadcast %115 : vector<1x8xi32> to vector<16x8xi32>
    %117 = arith.cmpi sge, %113, %116 : vector<16x8xi32>
    %c0_49 = arith.constant 0 : index
    %c0_50 = arith.constant 0 : index
    %c0_51 = arith.constant 0 : index
    %118 = vector.load %arg3[%c0_49, %c0_50, %c0_51] : memref<1x1x8xi32, #tpu.memory_space<vmem>>, vector<1x1x8xi32>
    %119 = vector.shape_cast %118 : vector<1x1x8xi32> to vector<1x8xi32>
    %120 = vector.broadcast %119 : vector<1x8xi32> to vector<16x8xi32>
    %121 = arith.cmpi slt, %113, %120 : vector<16x8xi32>
    %122 = arith.andi %117, %121 : vector<16x8xi1>
    %123 = arith.extui %122 : vector<16x8xi1> to vector<16x8xi32>
    %124 = arith.sitofp %123 : vector<16x8xi32> to vector<16x8xf32>
    %125 = arith.truncf %124 : vector<16x8xf32> to vector<16x8xbf16>
    %cst_52 = arith.constant dense<0.000000e+00> : vector<16x32xf32>
    %126 = tpu.matmul %125, %2, %cst_52 {dimension_numbers = #tpu.dot_dimension_numbers<[1], [0], [0], [1], [0, 0, 1, 1], [], []>} : vector<16x8xbf16>, vector<8x32xbf16>, vector<16x32xf32> -> vector<16x32xf32>
    %127 = arith.truncf %126 : vector<16x32xf32> to vector<16x32xbf16>
    %c0_53 = arith.constant 0 : index
    %c0_54 = arith.constant 0 : index
    %128 = vector.load %arg11[%c0_53, %c0_54] : memref<8x32xf32, #tpu.memory_space<vmem>>, vector<8x32xf32>
    %cst_55 = arith.constant 0.000000e+00 : bf16
    %129 = vector.broadcast %cst_55 : bf16 to vector<1x32xbf16>
    %130 = vector.extract_strided_slice %127 {offsets = [0, 0], sizes = [15, 32], strides = [1, 1]} : vector<16x32xbf16> to vector<15x32xbf16>
    %131 = tpu.concatenate %129, %130 in 0 : vector<1x32xbf16>, vector<15x32xbf16> -> vector<16x32xbf16>
    %132 = vector.extract_strided_slice %127 {offsets = [1, 0], sizes = [15, 32], strides = [1, 1]} : vector<16x32xbf16> to vector<15x32xbf16>
    %133 = tpu.concatenate %132, %129 in 0 : vector<15x32xbf16>, vector<1x32xbf16> -> vector<16x32xbf16>
    %c0_56 = arith.constant 0 : index
    %c0_57 = arith.constant 0 : index
    %c0_58 = arith.constant 0 : index
    %134 = vector.load %arg9[%c0_56, %c0_57, %c0_58] : memref<3x32x32xbf16, #tpu.memory_space<vmem>>, vector<1x32x32xbf16>
    %135 = vector.shape_cast %134 : vector<1x32x32xbf16> to vector<32x32xbf16>
    %cst_59 = arith.constant dense<0.000000e+00> : vector<16x32xf32>
    %136 = tpu.matmul %131, %135, %cst_59 {dimension_numbers = #tpu.dot_dimension_numbers<[1], [0], [0], [1], [0, 0, 1, 1], [], []>} : vector<16x32xbf16>, vector<32x32xbf16>, vector<16x32xf32> -> vector<16x32xf32>
    %c1_60 = arith.constant 1 : index
    %c0_61 = arith.constant 0 : index
    %c0_62 = arith.constant 0 : index
    %137 = vector.load %arg9[%c1_60, %c0_61, %c0_62] : memref<3x32x32xbf16, #tpu.memory_space<vmem>>, vector<1x32x32xbf16>
    %138 = vector.shape_cast %137 : vector<1x32x32xbf16> to vector<32x32xbf16>
    %cst_63 = arith.constant dense<0.000000e+00> : vector<16x32xf32>
    %139 = tpu.matmul %127, %138, %cst_63 {dimension_numbers = #tpu.dot_dimension_numbers<[1], [0], [0], [1], [0, 0, 1, 1], [], []>} : vector<16x32xbf16>, vector<32x32xbf16>, vector<16x32xf32> -> vector<16x32xf32>
    %140 = arith.addf %136, %139 : vector<16x32xf32>
    %c2_64 = arith.constant 2 : index
    %c0_65 = arith.constant 0 : index
    %c0_66 = arith.constant 0 : index
    %141 = vector.load %arg9[%c2_64, %c0_65, %c0_66] : memref<3x32x32xbf16, #tpu.memory_space<vmem>>, vector<1x32x32xbf16>
    %142 = vector.shape_cast %141 : vector<1x32x32xbf16> to vector<32x32xbf16>
    %cst_67 = arith.constant dense<0.000000e+00> : vector<16x32xf32>
    %143 = tpu.matmul %133, %142, %cst_67 {dimension_numbers = #tpu.dot_dimension_numbers<[1], [0], [0], [1], [0, 0, 1, 1], [], []>} : vector<16x32xbf16>, vector<32x32xbf16>, vector<16x32xf32> -> vector<16x32xf32>
    %144 = arith.addf %140, %143 : vector<16x32xf32>
    %145 = vector.extract_strided_slice %128 {offsets = [0, 0], sizes = [1, 32], strides = [1, 1]} : vector<8x32xf32> to vector<1x32xf32>
    %146 = vector.broadcast %145 : vector<1x32xf32> to vector<16x32xf32>
    %147 = arith.addf %144, %146 : vector<16x32xf32>
    %cst_68 = arith.constant 0.000000e+00 : f32
    %148 = vector.broadcast %cst_68 : f32 to vector<16x32xf32>
    %149 = arith.maximumf %147, %148 : vector<16x32xf32>
    %150 = vector.extract_strided_slice %128 {offsets = [1, 0], sizes = [1, 32], strides = [1, 1]} : vector<8x32xf32> to vector<1x32xf32>
    %151 = vector.extract_strided_slice %128 {offsets = [2, 0], sizes = [1, 32], strides = [1, 1]} : vector<8x32xf32> to vector<1x32xf32>
    %cst_69 = arith.constant dense<0.000000e+00> : vector<16xf32>
    %152 = vector.multi_reduction <add>, %149, %cst_69 [1] : vector<16x32xf32> to vector<16xf32>
    %153 = vector.shape_cast %152 : vector<16xf32> to vector<16x1xf32>
    %cst_70 = arith.constant 3.200000e+01 : f32
    %154 = vector.broadcast %cst_70 : f32 to vector<16x1xf32>
    %155 = arith.divf %153, %154 : vector<16x1xf32>
    %156 = arith.mulf %149, %149 : vector<16x32xf32>
    %cst_71 = arith.constant dense<0.000000e+00> : vector<16xf32>
    %157 = vector.multi_reduction <add>, %156, %cst_71 [1] : vector<16x32xf32> to vector<16xf32>
    %158 = vector.shape_cast %157 : vector<16xf32> to vector<16x1xf32>
    %cst_72 = arith.constant 3.200000e+01 : f32
    %159 = vector.broadcast %cst_72 : f32 to vector<16x1xf32>
    %160 = arith.divf %158, %159 : vector<16x1xf32>
    %161 = arith.mulf %155, %155 : vector<16x1xf32>
    %162 = arith.subf %160, %161 : vector<16x1xf32>
    %cst_73 = arith.constant 0.000000e+00 : f32
    %163 = vector.broadcast %cst_73 : f32 to vector<16x1xf32>
    %164 = arith.maximumf %162, %163 : vector<16x1xf32>
    %165 = vector.broadcast %155 : vector<16x1xf32> to vector<16x32xf32>
    %166 = arith.subf %149, %165 : vector<16x32xf32>
    %cst_74 = arith.constant 9.99999974E-6 : f32
    %167 = vector.broadcast %cst_74 : f32 to vector<16x1xf32>
    %168 = arith.addf %164, %167 : vector<16x1xf32>
    %169 = math.rsqrt %168 : vector<16x1xf32>
    %170 = vector.broadcast %169 : vector<16x1xf32> to vector<16x32xf32>
    %171 = arith.mulf %166, %170 : vector<16x32xf32>
    %172 = vector.broadcast %150 : vector<1x32xf32> to vector<16x32xf32>
    %173 = arith.mulf %171, %172 : vector<16x32xf32>
    %174 = vector.broadcast %151 : vector<1x32xf32> to vector<16x32xf32>
    %175 = arith.addf %173, %174 : vector<16x32xf32>
    %176 = arith.truncf %175 : vector<16x32xf32> to vector<16x32xbf16>
    %cst_75 = arith.constant 0.000000e+00 : bf16
    %177 = vector.broadcast %cst_75 : bf16 to vector<1x32xbf16>
    %178 = vector.extract_strided_slice %176 {offsets = [0, 0], sizes = [15, 32], strides = [1, 1]} : vector<16x32xbf16> to vector<15x32xbf16>
    %179 = tpu.concatenate %177, %178 in 0 : vector<1x32xbf16>, vector<15x32xbf16> -> vector<16x32xbf16>
    %180 = vector.extract_strided_slice %176 {offsets = [1, 0], sizes = [15, 32], strides = [1, 1]} : vector<16x32xbf16> to vector<15x32xbf16>
    %181 = tpu.concatenate %180, %177 in 0 : vector<15x32xbf16>, vector<1x32xbf16> -> vector<16x32xbf16>
    %c0_76 = arith.constant 0 : index
    %c0_77 = arith.constant 0 : index
    %c0_78 = arith.constant 0 : index
    %182 = vector.load %arg10[%c0_76, %c0_77, %c0_78] : memref<3x32x32xbf16, #tpu.memory_space<vmem>>, vector<1x32x32xbf16>
    %183 = vector.shape_cast %182 : vector<1x32x32xbf16> to vector<32x32xbf16>
    %cst_79 = arith.constant dense<0.000000e+00> : vector<16x32xf32>
    %184 = tpu.matmul %179, %183, %cst_79 {dimension_numbers = #tpu.dot_dimension_numbers<[1], [0], [0], [1], [0, 0, 1, 1], [], []>} : vector<16x32xbf16>, vector<32x32xbf16>, vector<16x32xf32> -> vector<16x32xf32>
    %c1_80 = arith.constant 1 : index
    %c0_81 = arith.constant 0 : index
    %c0_82 = arith.constant 0 : index
    %185 = vector.load %arg10[%c1_80, %c0_81, %c0_82] : memref<3x32x32xbf16, #tpu.memory_space<vmem>>, vector<1x32x32xbf16>
    %186 = vector.shape_cast %185 : vector<1x32x32xbf16> to vector<32x32xbf16>
    %cst_83 = arith.constant dense<0.000000e+00> : vector<16x32xf32>
    %187 = tpu.matmul %176, %186, %cst_83 {dimension_numbers = #tpu.dot_dimension_numbers<[1], [0], [0], [1], [0, 0, 1, 1], [], []>} : vector<16x32xbf16>, vector<32x32xbf16>, vector<16x32xf32> -> vector<16x32xf32>
    %188 = arith.addf %184, %187 : vector<16x32xf32>
    %c2_84 = arith.constant 2 : index
    %c0_85 = arith.constant 0 : index
    %c0_86 = arith.constant 0 : index
    %189 = vector.load %arg10[%c2_84, %c0_85, %c0_86] : memref<3x32x32xbf16, #tpu.memory_space<vmem>>, vector<1x32x32xbf16>
    %190 = vector.shape_cast %189 : vector<1x32x32xbf16> to vector<32x32xbf16>
    %cst_87 = arith.constant dense<0.000000e+00> : vector<16x32xf32>
    %191 = tpu.matmul %181, %190, %cst_87 {dimension_numbers = #tpu.dot_dimension_numbers<[1], [0], [0], [1], [0, 0, 1, 1], [], []>} : vector<16x32xbf16>, vector<32x32xbf16>, vector<16x32xf32> -> vector<16x32xf32>
    %192 = arith.addf %188, %191 : vector<16x32xf32>
    %193 = vector.extract_strided_slice %128 {offsets = [3, 0], sizes = [1, 32], strides = [1, 1]} : vector<8x32xf32> to vector<1x32xf32>
    %194 = vector.broadcast %193 : vector<1x32xf32> to vector<16x32xf32>
    %195 = arith.addf %192, %194 : vector<16x32xf32>
    %cst_88 = arith.constant 0.000000e+00 : f32
    %196 = vector.broadcast %cst_88 : f32 to vector<16x32xf32>
    %197 = arith.maximumf %195, %196 : vector<16x32xf32>
    %198 = vector.extract_strided_slice %128 {offsets = [4, 0], sizes = [1, 32], strides = [1, 1]} : vector<8x32xf32> to vector<1x32xf32>
    %199 = vector.extract_strided_slice %128 {offsets = [5, 0], sizes = [1, 32], strides = [1, 1]} : vector<8x32xf32> to vector<1x32xf32>
    %cst_89 = arith.constant dense<0.000000e+00> : vector<16xf32>
    %200 = vector.multi_reduction <add>, %197, %cst_89 [1] : vector<16x32xf32> to vector<16xf32>
    %201 = vector.shape_cast %200 : vector<16xf32> to vector<16x1xf32>
    %cst_90 = arith.constant 3.200000e+01 : f32
    %202 = vector.broadcast %cst_90 : f32 to vector<16x1xf32>
    %203 = arith.divf %201, %202 : vector<16x1xf32>
    %204 = arith.mulf %197, %197 : vector<16x32xf32>
    %cst_91 = arith.constant dense<0.000000e+00> : vector<16xf32>
    %205 = vector.multi_reduction <add>, %204, %cst_91 [1] : vector<16x32xf32> to vector<16xf32>
    %206 = vector.shape_cast %205 : vector<16xf32> to vector<16x1xf32>
    %cst_92 = arith.constant 3.200000e+01 : f32
    %207 = vector.broadcast %cst_92 : f32 to vector<16x1xf32>
    %208 = arith.divf %206, %207 : vector<16x1xf32>
    %209 = arith.mulf %203, %203 : vector<16x1xf32>
    %210 = arith.subf %208, %209 : vector<16x1xf32>
    %cst_93 = arith.constant 0.000000e+00 : f32
    %211 = vector.broadcast %cst_93 : f32 to vector<16x1xf32>
    %212 = arith.maximumf %210, %211 : vector<16x1xf32>
    %213 = vector.broadcast %203 : vector<16x1xf32> to vector<16x32xf32>
    %214 = arith.subf %197, %213 : vector<16x32xf32>
    %cst_94 = arith.constant 9.99999974E-6 : f32
    %215 = vector.broadcast %cst_94 : f32 to vector<16x1xf32>
    %216 = arith.addf %212, %215 : vector<16x1xf32>
    %217 = math.rsqrt %216 : vector<16x1xf32>
    %218 = vector.broadcast %217 : vector<16x1xf32> to vector<16x32xf32>
    %219 = arith.mulf %214, %218 : vector<16x32xf32>
    %220 = vector.broadcast %198 : vector<1x32xf32> to vector<16x32xf32>
    %221 = arith.mulf %219, %220 : vector<16x32xf32>
    %222 = vector.broadcast %199 : vector<1x32xf32> to vector<16x32xf32>
    %223 = arith.addf %221, %222 : vector<16x32xf32>
    %224 = vector.extract_strided_slice %128 {offsets = [6, 0], sizes = [1, 32], strides = [1, 1]} : vector<8x32xf32> to vector<1x32xf32>
    %225 = vector.broadcast %224 : vector<1x32xf32> to vector<16x32xf32>
    %226 = arith.mulf %223, %225 : vector<16x32xf32>
    %cst_95 = arith.constant dense<0.000000e+00> : vector<16xf32>
    %227 = vector.multi_reduction <add>, %226, %cst_95 [1] : vector<16x32xf32> to vector<16xf32>
    %228 = vector.shape_cast %227 : vector<16xf32> to vector<16x1xf32>
    %229 = vector.extract_strided_slice %128 {offsets = [7, 0], sizes = [1, 1], strides = [1, 1]} : vector<8x32xf32> to vector<1x1xf32>
    %230 = vector.broadcast %229 : vector<1x1xf32> to vector<16x1xf32>
    %231 = arith.addf %228, %230 : vector<16x1xf32>
    %cst_96 = arith.constant 1.000000e+00 : f32
    %232 = vector.broadcast %cst_96 : f32 to vector<16x1xf32>
    %233 = arith.mulf %231, %232 : vector<16x1xf32>
    %234 = tpu.transpose %233, [1, 0] : vector<16x1xf32> -> vector<1x16xf32>
    %c0_97 = arith.constant 0 : index
    %c0_98 = arith.constant 0 : index
    %c0_99 = arith.constant 0 : index
    %235 = vector.load %arg21[%c0_97, %c0_98, %c0_99] : memref<1x1x16xf32, #tpu.memory_space<vmem>>, vector<1x1x16xf32>
    %236 = vector.shape_cast %235 : vector<1x1x16xf32> to vector<1x16xf32>
    %237 = vector.shape_cast %234 : vector<1x16xf32> to vector<1x1x16xf32>
    tpu.vector_store %arg21[%c0_97, %c0_98, %c0_99], %237 {strides = array<i32>} : memref<1x1x16xf32, #tpu.memory_space<vmem>>, vector<1x1x16xf32>,
    %c0_100 = arith.constant 0 : index
    %c0_101 = arith.constant 0 : index
    %c0_102 = arith.constant 0 : index
    %238 = vector.load %arg4[%c0_100, %c0_101, %c0_102] : memref<1x1x16xf32, #tpu.memory_space<vmem>>, vector<1x1x16xf32>
    %239 = vector.shape_cast %238 : vector<1x1x16xf32> to vector<1x16xf32>
    %240 = tpu.transpose %239, [1, 0] : vector<1x16xf32> -> vector<16x1xf32>
    %c0_103 = arith.constant 0 : index
    %c0_104 = arith.constant 0 : index
    %241 = vector.load %arg15[%c0_103, %c0_104] : memref<1x7xf32, #tpu.memory_space<vmem>>, vector<1x7xf32>
    %242 = vector.broadcast %241 : vector<1x7xf32> to vector<16x7xf32>
    %243 = vector.broadcast %240 : vector<16x1xf32> to vector<16x7xf32>
    %244 = arith.cmpf olt, %242, %243 : vector<16x7xf32>
    %245 = arith.extui %244 : vector<16x7xi1> to vector<16x7xi32>
    %cst_105 = arith.constant dense<0> : vector<16xi32>
    %246 = vector.multi_reduction <add>, %245, %cst_105 [1] : vector<16x7xi32> to vector<16xi32>
    %247 = vector.shape_cast %246 : vector<16xi32> to vector<16x1xi32>
    %248 = tpu.iota {dimensions = array<i32: 1>} : vector<16x8xi32>
    %249 = vector.broadcast %247 : vector<16x1xi32> to vector<16x8xi32>
    %250 = arith.cmpi eq, %249, %248 : vector<16x8xi32>
    %251 = arith.extui %250 : vector<16x8xi1> to vector<16x8xi32>
    %252 = arith.sitofp %251 : vector<16x8xi32> to vector<16x8xf32>
    %253 = arith.truncf %252 : vector<16x8xf32> to vector<16x8xbf16>
    %c0_106 = arith.constant 0 : index
    %c0_107 = arith.constant 0 : index
    %254 = vector.load %arg16[%c0_106, %c0_107] : memref<8x32xbf16, #tpu.memory_space<vmem>>, vector<8x32xbf16>
    %cst_108 = arith.constant dense<0.000000e+00> : vector<16x32xf32>
    %255 = tpu.matmul %253, %254, %cst_108 {dimension_numbers = #tpu.dot_dimension_numbers<[1], [0], [0], [1], [0, 0, 1, 1], [], []>} : vector<16x8xbf16>, vector<8x32xbf16>, vector<16x32xf32> -> vector<16x32xf32>
    %256 = arith.addf %126, %255 : vector<16x32xf32>
    %257 = arith.truncf %256 : vector<16x32xf32> to vector<16x32xbf16>
    %c0_109 = arith.constant 0 : index
    %c0_110 = arith.constant 0 : index
    %258 = vector.load %arg14[%c0_109, %c0_110] : memref<8x32xf32, #tpu.memory_space<vmem>>, vector<8x32xf32>
    %cst_111 = arith.constant 0.000000e+00 : bf16
    %259 = vector.broadcast %cst_111 : bf16 to vector<1x32xbf16>
    %260 = vector.extract_strided_slice %257 {offsets = [0, 0], sizes = [15, 32], strides = [1, 1]} : vector<16x32xbf16> to vector<15x32xbf16>
    %261 = tpu.concatenate %259, %260 in 0 : vector<1x32xbf16>, vector<15x32xbf16> -> vector<16x32xbf16>
    %262 = vector.extract_strided_slice %257 {offsets = [1, 0], sizes = [15, 32], strides = [1, 1]} : vector<16x32xbf16> to vector<15x32xbf16>
    %263 = tpu.concatenate %262, %259 in 0 : vector<15x32xbf16>, vector<1x32xbf16> -> vector<16x32xbf16>
    %c0_112 = arith.constant 0 : index
    %c0_113 = arith.constant 0 : index
    %c0_114 = arith.constant 0 : index
    %264 = vector.load %arg12[%c0_112, %c0_113, %c0_114] : memref<3x32x32xbf16, #tpu.memory_space<vmem>>, vector<1x32x32xbf16>
    %265 = vector.shape_cast %264 : vector<1x32x32xbf16> to vector<32x32xbf16>
    %cst_115 = arith.constant dense<0.000000e+00> : vector<16x32xf32>
    %266 = tpu.matmul %261, %265, %cst_115 {dimension_numbers = #tpu.dot_dimension_numbers<[1], [0], [0], [1], [0, 0, 1, 1], [], []>} : vector<16x32xbf16>, vector<32x32xbf16>, vector<16x32xf32> -> vector<16x32xf32>
    %c1_116 = arith.constant 1 : index
    %c0_117 = arith.constant 0 : index
    %c0_118 = arith.constant 0 : index
    %267 = vector.load %arg12[%c1_116, %c0_117, %c0_118] : memref<3x32x32xbf16, #tpu.memory_space<vmem>>, vector<1x32x32xbf16>
    %268 = vector.shape_cast %267 : vector<1x32x32xbf16> to vector<32x32xbf16>
    %cst_119 = arith.constant dense<0.000000e+00> : vector<16x32xf32>
    %269 = tpu.matmul %257, %268, %cst_119 {dimension_numbers = #tpu.dot_dimension_numbers<[1], [0], [0], [1], [0, 0, 1, 1], [], []>} : vector<16x32xbf16>, vector<32x32xbf16>, vector<16x32xf32> -> vector<16x32xf32>
    %270 = arith.addf %266, %269 : vector<16x32xf32>
    %c2_120 = arith.constant 2 : index
    %c0_121 = arith.constant 0 : index
    %c0_122 = arith.constant 0 : index
    %271 = vector.load %arg12[%c2_120, %c0_121, %c0_122] : memref<3x32x32xbf16, #tpu.memory_space<vmem>>, vector<1x32x32xbf16>
    %272 = vector.shape_cast %271 : vector<1x32x32xbf16> to vector<32x32xbf16>
    %cst_123 = arith.constant dense<0.000000e+00> : vector<16x32xf32>
    %273 = tpu.matmul %263, %272, %cst_123 {dimension_numbers = #tpu.dot_dimension_numbers<[1], [0], [0], [1], [0, 0, 1, 1], [], []>} : vector<16x32xbf16>, vector<32x32xbf16>, vector<16x32xf32> -> vector<16x32xf32>
    %274 = arith.addf %270, %273 : vector<16x32xf32>
    %275 = vector.extract_strided_slice %258 {offsets = [0, 0], sizes = [1, 32], strides = [1, 1]} : vector<8x32xf32> to vector<1x32xf32>
    %276 = vector.broadcast %275 : vector<1x32xf32> to vector<16x32xf32>
    %277 = arith.addf %274, %276 : vector<16x32xf32>
    %cst_124 = arith.constant 0.000000e+00 : f32
    %278 = vector.broadcast %cst_124 : f32 to vector<16x32xf32>
    %279 = arith.maximumf %277, %278 : vector<16x32xf32>
    %280 = vector.extract_strided_slice %258 {offsets = [1, 0], sizes = [1, 32], strides = [1, 1]} : vector<8x32xf32> to vector<1x32xf32>
    %281 = vector.extract_strided_slice %258 {offsets = [2, 0], sizes = [1, 32], strides = [1, 1]} : vector<8x32xf32> to vector<1x32xf32>
    %cst_125 = arith.constant dense<0.000000e+00> : vector<16xf32>
    %282 = vector.multi_reduction <add>, %279, %cst_125 [1] : vector<16x32xf32> to vector<16xf32>
    %283 = vector.shape_cast %282 : vector<16xf32> to vector<16x1xf32>
    %cst_126 = arith.constant 3.200000e+01 : f32
    %284 = vector.broadcast %cst_126 : f32 to vector<16x1xf32>
    %285 = arith.divf %283, %284 : vector<16x1xf32>
    %286 = arith.mulf %279, %279 : vector<16x32xf32>
    %cst_127 = arith.constant dense<0.000000e+00> : vector<16xf32>
    %287 = vector.multi_reduction <add>, %286, %cst_127 [1] : vector<16x32xf32> to vector<16xf32>
    %288 = vector.shape_cast %287 : vector<16xf32> to vector<16x1xf32>
    %cst_128 = arith.constant 3.200000e+01 : f32
    %289 = vector.broadcast %cst_128 : f32 to vector<16x1xf32>
    %290 = arith.divf %288, %289 : vector<16x1xf32>
    %291 = arith.mulf %285, %285 : vector<16x1xf32>
    %292 = arith.subf %290, %291 : vector<16x1xf32>
    %cst_129 = arith.constant 0.000000e+00 : f32
    %293 = vector.broadcast %cst_129 : f32 to vector<16x1xf32>
    %294 = arith.maximumf %292, %293 : vector<16x1xf32>
    %295 = vector.broadcast %285 : vector<16x1xf32> to vector<16x32xf32>
    %296 = arith.subf %279, %295 : vector<16x32xf32>
    %cst_130 = arith.constant 9.99999974E-6 : f32
    %297 = vector.broadcast %cst_130 : f32 to vector<16x1xf32>
    %298 = arith.addf %294, %297 : vector<16x1xf32>
    %299 = math.rsqrt %298 : vector<16x1xf32>
    %300 = vector.broadcast %299 : vector<16x1xf32> to vector<16x32xf32>
    %301 = arith.mulf %296, %300 : vector<16x32xf32>
    %302 = vector.broadcast %280 : vector<1x32xf32> to vector<16x32xf32>
    %303 = arith.mulf %301, %302 : vector<16x32xf32>
    %304 = vector.broadcast %281 : vector<1x32xf32> to vector<16x32xf32>
    %305 = arith.addf %303, %304 : vector<16x32xf32>
    %306 = arith.truncf %305 : vector<16x32xf32> to vector<16x32xbf16>
    %cst_131 = arith.constant 0.000000e+00 : bf16
    %307 = vector.broadcast %cst_131 : bf16 to vector<1x32xbf16>
    %308 = vector.extract_strided_slice %306 {offsets = [0, 0], sizes = [15, 32], strides = [1, 1]} : vector<16x32xbf16> to vector<15x32xbf16>
    %309 = tpu.concatenate %307, %308 in 0 : vector<1x32xbf16>, vector<15x32xbf16> -> vector<16x32xbf16>
    %310 = vector.extract_strided_slice %306 {offsets = [1, 0], sizes = [15, 32], strides = [1, 1]} : vector<16x32xbf16> to vector<15x32xbf16>
    %311 = tpu.concatenate %310, %307 in 0 : vector<15x32xbf16>, vector<1x32xbf16> -> vector<16x32xbf16>
    %c0_132 = arith.constant 0 : index
    %c0_133 = arith.constant 0 : index
    %c0_134 = arith.constant 0 : index
    %312 = vector.load %arg13[%c0_132, %c0_133, %c0_134] : memref<3x32x32xbf16, #tpu.memory_space<vmem>>, vector<1x32x32xbf16>
    %313 = vector.shape_cast %312 : vector<1x32x32xbf16> to vector<32x32xbf16>
    %cst_135 = arith.constant dense<0.000000e+00> : vector<16x32xf32>
    %314 = tpu.matmul %309, %313, %cst_135 {dimension_numbers = #tpu.dot_dimension_numbers<[1], [0], [0], [1], [0, 0, 1, 1], [], []>} : vector<16x32xbf16>, vector<32x32xbf16>, vector<16x32xf32> -> vector<16x32xf32>
    %c1_136 = arith.constant 1 : index
    %c0_137 = arith.constant 0 : index
    %c0_138 = arith.constant 0 : index
    %315 = vector.load %arg13[%c1_136, %c0_137, %c0_138] : memref<3x32x32xbf16, #tpu.memory_space<vmem>>, vector<1x32x32xbf16>
    %316 = vector.shape_cast %315 : vector<1x32x32xbf16> to vector<32x32xbf16>
    %cst_139 = arith.constant dense<0.000000e+00> : vector<16x32xf32>
    %317 = tpu.matmul %306, %316, %cst_139 {dimension_numbers = #tpu.dot_dimension_numbers<[1], [0], [0], [1], [0, 0, 1, 1], [], []>} : vector<16x32xbf16>, vector<32x32xbf16>, vector<16x32xf32> -> vector<16x32xf32>
    %318 = arith.addf %314, %317 : vector<16x32xf32>
    %c2_140 = arith.constant 2 : index
    %c0_141 = arith.constant 0 : index
    %c0_142 = arith.constant 0 : index
    %319 = vector.load %arg13[%c2_140, %c0_141, %c0_142] : memref<3x32x32xbf16, #tpu.memory_space<vmem>>, vector<1x32x32xbf16>
    %320 = vector.shape_cast %319 : vector<1x32x32xbf16> to vector<32x32xbf16>
    %cst_143 = arith.constant dense<0.000000e+00> : vector<16x32xf32>
    %321 = tpu.matmul %311, %320, %cst_143 {dimension_numbers = #tpu.dot_dimension_numbers<[1], [0], [0], [1], [0, 0, 1, 1], [], []>} : vector<16x32xbf16>, vector<32x32xbf16>, vector<16x32xf32> -> vector<16x32xf32>
    %322 = arith.addf %318, %321 : vector<16x32xf32>
    %323 = vector.extract_strided_slice %258 {offsets = [3, 0], sizes = [1, 32], strides = [1, 1]} : vector<8x32xf32> to vector<1x32xf32>
    %324 = vector.broadcast %323 : vector<1x32xf32> to vector<16x32xf32>
    %325 = arith.addf %322, %324 : vector<16x32xf32>
    %cst_144 = arith.constant 0.000000e+00 : f32
    %326 = vector.broadcast %cst_144 : f32 to vector<16x32xf32>
    %327 = arith.maximumf %325, %326 : vector<16x32xf32>
    %328 = vector.extract_strided_slice %258 {offsets = [4, 0], sizes = [1, 32], strides = [1, 1]} : vector<8x32xf32> to vector<1x32xf32>
    %329 = vector.extract_strided_slice %258 {offsets = [5, 0], sizes = [1, 32], strides = [1, 1]} : vector<8x32xf32> to vector<1x32xf32>
    %cst_145 = arith.constant dense<0.000000e+00> : vector<16xf32>
    %330 = vector.multi_reduction <add>, %327, %cst_145 [1] : vector<16x32xf32> to vector<16xf32>
    %331 = vector.shape_cast %330 : vector<16xf32> to vector<16x1xf32>
    %cst_146 = arith.constant 3.200000e+01 : f32
    %332 = vector.broadcast %cst_146 : f32 to vector<16x1xf32>
    %333 = arith.divf %331, %332 : vector<16x1xf32>
    %334 = arith.mulf %327, %327 : vector<16x32xf32>
    %cst_147 = arith.constant dense<0.000000e+00> : vector<16xf32>
    %335 = vector.multi_reduction <add>, %334, %cst_147 [1] : vector<16x32xf32> to vector<16xf32>
    %336 = vector.shape_cast %335 : vector<16xf32> to vector<16x1xf32>
    %cst_148 = arith.constant 3.200000e+01 : f32
    %337 = vector.broadcast %cst_148 : f32 to vector<16x1xf32>
    %338 = arith.divf %336, %337 : vector<16x1xf32>
    %339 = arith.mulf %333, %333 : vector<16x1xf32>
    %340 = arith.subf %338, %339 : vector<16x1xf32>
    %cst_149 = arith.constant 0.000000e+00 : f32
    %341 = vector.broadcast %cst_149 : f32 to vector<16x1xf32>
    %342 = arith.maximumf %340, %341 : vector<16x1xf32>
    %343 = vector.broadcast %333 : vector<16x1xf32> to vector<16x32xf32>
    %344 = arith.subf %327, %343 : vector<16x32xf32>
    %cst_150 = arith.constant 9.99999974E-6 : f32
    %345 = vector.broadcast %cst_150 : f32 to vector<16x1xf32>
    %346 = arith.addf %342, %345 : vector<16x1xf32>
    %347 = math.rsqrt %346 : vector<16x1xf32>
    %348 = vector.broadcast %347 : vector<16x1xf32> to vector<16x32xf32>
    %349 = arith.mulf %344, %348 : vector<16x32xf32>
    %350 = vector.broadcast %328 : vector<1x32xf32> to vector<16x32xf32>
    %351 = arith.mulf %349, %350 : vector<16x32xf32>
    %352 = vector.broadcast %329 : vector<1x32xf32> to vector<16x32xf32>
    %353 = arith.addf %351, %352 : vector<16x32xf32>
    %354 = vector.extract_strided_slice %258 {offsets = [6, 0], sizes = [1, 32], strides = [1, 1]} : vector<8x32xf32> to vector<1x32xf32>
    %355 = vector.broadcast %354 : vector<1x32xf32> to vector<16x32xf32>
    %356 = arith.mulf %353, %355 : vector<16x32xf32>
    %cst_151 = arith.constant dense<0.000000e+00> : vector<16xf32>
    %357 = vector.multi_reduction <add>, %356, %cst_151 [1] : vector<16x32xf32> to vector<16xf32>
    %358 = vector.shape_cast %357 : vector<16xf32> to vector<16x1xf32>
    %359 = vector.extract_strided_slice %258 {offsets = [7, 0], sizes = [1, 1], strides = [1, 1]} : vector<8x32xf32> to vector<1x1xf32>
    %360 = vector.broadcast %359 : vector<1x1xf32> to vector<16x1xf32>
    %361 = arith.addf %358, %360 : vector<16x1xf32>
    %cst_152 = arith.constant 1.000000e+00 : f32
    %362 = vector.broadcast %cst_152 : f32 to vector<16x1xf32>
    %363 = arith.mulf %361, %362 : vector<16x1xf32>
    %364 = tpu.transpose %363, [1, 0] : vector<16x1xf32> -> vector<1x16xf32>
    %c0_153 = arith.constant 0 : index
    %c0_154 = arith.constant 0 : index
    %c0_155 = arith.constant 0 : index
    %365 = vector.load %arg22[%c0_153, %c0_154, %c0_155] : memref<1x1x16xf32, #tpu.memory_space<vmem>>, vector<1x1x16xf32>
    %366 = vector.shape_cast %365 : vector<1x1x16xf32> to vector<1x16xf32>
    %367 = vector.shape_cast %364 : vector<1x16xf32> to vector<1x1x16xf32>
    tpu.vector_store %arg22[%c0_153, %c0_154, %c0_155], %367 {strides = array<i32>} : memref<1x1x16xf32, #tpu.memory_space<vmem>>, vector<1x1x16xf32>,
    %c0_156 = arith.constant 0 : index
    %c0_157 = arith.constant 0 : index
    %c0_158 = arith.constant 0 : index
    %368 = vector.load %arg5[%c0_156, %c0_157, %c0_158] : memref<1x1x16xf32, #tpu.memory_space<vmem>>, vector<1x1x16xf32>
    %369 = vector.shape_cast %368 : vector<1x1x16xf32> to vector<1x16xf32>
    %370 = tpu.transpose %369, [1, 0] : vector<1x16xf32> -> vector<16x1xf32>
    %c0_159 = arith.constant 0 : index
    %c0_160 = arith.constant 0 : index
    %371 = vector.load %arg17[%c0_159, %c0_160] : memref<1x7xf32, #tpu.memory_space<vmem>>, vector<1x7xf32>
    %372 = vector.broadcast %371 : vector<1x7xf32> to vector<16x7xf32>
    %373 = vector.broadcast %370 : vector<16x1xf32> to vector<16x7xf32>
    %374 = arith.cmpf olt, %372, %373 : vector<16x7xf32>
    %375 = arith.extui %374 : vector<16x7xi1> to vector<16x7xi32>
    %cst_161 = arith.constant dense<0> : vector<16xi32>
    %376 = vector.multi_reduction <add>, %375, %cst_161 [1] : vector<16x7xi32> to vector<16xi32>
    %377 = vector.shape_cast %376 : vector<16xi32> to vector<16x1xi32>
    %378 = tpu.iota {dimensions = array<i32: 1>} : vector<16x8xi32>
    %379 = vector.broadcast %377 : vector<16x1xi32> to vector<16x8xi32>
    %380 = arith.cmpi eq, %379, %378 : vector<16x8xi32>
    %381 = arith.extui %380 : vector<16x8xi1> to vector<16x8xi32>
    %382 = arith.sitofp %381 : vector<16x8xi32> to vector<16x8xf32>
    %383 = arith.truncf %382 : vector<16x8xf32> to vector<16x8xbf16>
    %c0_162 = arith.constant 0 : index
    %c0_163 = arith.constant 0 : index
    %384 = vector.load %arg18[%c0_162, %c0_163] : memref<8x32xbf16, #tpu.memory_space<vmem>>, vector<8x32xbf16>
    %cst_164 = arith.constant dense<0.000000e+00> : vector<16x32xf32>
    %385 = tpu.matmul %383, %384, %cst_164 {dimension_numbers = #tpu.dot_dimension_numbers<[1], [0], [0], [1], [0, 0, 1, 1], [], []>} : vector<16x8xbf16>, vector<8x32xbf16>, vector<16x32xf32> -> vector<16x32xf32>
    %386 = arith.addf %256, %385 : vector<16x32xf32>
    %c0_165 = arith.constant 0 : index
    %c0_166 = arith.constant 0 : index
    %c0_167 = arith.constant 0 : index
    %387 = vector.load %arg19[%c0_165, %c0_166, %c0_167] : memref<1x16x32xf32, #tpu.memory_space<vmem>>, vector<1x16x32xf32>
    %388 = vector.shape_cast %387 : vector<1x16x32xf32> to vector<16x32xf32>
    %389 = vector.shape_cast %386 : vector<16x32xf32> to vector<1x16x32xf32>
    tpu.vector_store %arg19[%c0_165, %c0_166, %c0_167], %389 {strides = array<i32>} : memref<1x16x32xf32, #tpu.memory_space<vmem>>, vector<1x16x32xf32>,
    return
  }
  func.func @transform_0(%arg0: i32) -> (i32, i32, i32) {
    %c0_i32 = arith.constant 0 : i32
    %c0_i32_0 = arith.constant 0 : i32
    %c0_i32_1 = arith.constant 0 : i32
    return %arg0, %c0_i32, %c0_i32_0 : i32, i32, i32
  }
  func.func @transform_1(%arg0: i32) -> (i32, i32, i32) {
    %c0_i32 = arith.constant 0 : i32
    %c0_i32_0 = arith.constant 0 : i32
    %c0_i32_1 = arith.constant 0 : i32
    return %arg0, %c0_i32, %c0_i32_0 : i32, i32, i32
  }
  func.func @transform_2(%arg0: i32) -> (i32, i32, i32) {
    %c0_i32 = arith.constant 0 : i32
    %c0_i32_0 = arith.constant 0 : i32
    %c0_i32_1 = arith.constant 0 : i32
    return %arg0, %c0_i32, %c0_i32_0 : i32, i32, i32
  }
  func.func @transform_3(%arg0: i32) -> (i32, i32, i32) {
    %c0_i32 = arith.constant 0 : i32
    %c0_i32_0 = arith.constant 0 : i32
    %c0_i32_1 = arith.constant 0 : i32
    return %arg0, %c0_i32, %c0_i32_0 : i32, i32, i32
  }
  func.func @transform_4(%arg0: i32) -> (i32, i32, i32) {
    %c0_i32 = arith.constant 0 : i32
    %c0_i32_0 = arith.constant 0 : i32
    %c0_i32_1 = arith.constant 0 : i32
    return %arg0, %c0_i32, %c0_i32_0 : i32, i32, i32
  }
  func.func @transform_5(%arg0: i32) -> (i32, i32, i32) {
    %c0_i32 = arith.constant 0 : i32
    %c0_i32_0 = arith.constant 0 : i32
    %c0_i32_1 = arith.constant 0 : i32
    %c0_i32_2 = arith.constant 0 : i32
    return %c0_i32, %c0_i32_0, %c0_i32_1 : i32, i32, i32
  }
  func.func @transform_6(%arg0: i32) -> (i32, i32, i32) {
    %c0_i32 = arith.constant 0 : i32
    %c0_i32_0 = arith.constant 0 : i32
    %c0_i32_1 = arith.constant 0 : i32
    %c0_i32_2 = arith.constant 0 : i32
    return %c0_i32, %c0_i32_0, %c0_i32_1 : i32, i32, i32
  }
  func.func @transform_7(%arg0: i32) -> (i32, i32) {
    %c0_i32 = arith.constant 0 : i32
    %c0_i32_0 = arith.constant 0 : i32
    %c0_i32_1 = arith.constant 0 : i32
    return %c0_i32, %c0_i32_0 : i32, i32
  }
  func.func @transform_8(%arg0: i32) -> (i32, i32, i32) {
    %c0_i32 = arith.constant 0 : i32
    %c0_i32_0 = arith.constant 0 : i32
    %c0_i32_1 = arith.constant 0 : i32
    %c0_i32_2 = arith.constant 0 : i32
    return %c0_i32, %c0_i32_0, %c0_i32_1 : i32, i32, i32
  }
  func.func @transform_9(%arg0: i32) -> (i32, i32, i32) {
    %c0_i32 = arith.constant 0 : i32
    %c0_i32_0 = arith.constant 0 : i32
    %c0_i32_1 = arith.constant 0 : i32
    %c0_i32_2 = arith.constant 0 : i32
    return %c0_i32, %c0_i32_0, %c0_i32_1 : i32, i32, i32
  }
  func.func @transform_10(%arg0: i32) -> (i32, i32) {
    %c0_i32 = arith.constant 0 : i32
    %c0_i32_0 = arith.constant 0 : i32
    %c0_i32_1 = arith.constant 0 : i32
    return %c0_i32, %c0_i32_0 : i32, i32
  }
  func.func @transform_11(%arg0: i32) -> (i32, i32, i32) {
    %c0_i32 = arith.constant 0 : i32
    %c0_i32_0 = arith.constant 0 : i32
    %c0_i32_1 = arith.constant 0 : i32
    %c0_i32_2 = arith.constant 0 : i32
    return %c0_i32, %c0_i32_0, %c0_i32_1 : i32, i32, i32
  }
  func.func @transform_12(%arg0: i32) -> (i32, i32, i32) {
    %c0_i32 = arith.constant 0 : i32
    %c0_i32_0 = arith.constant 0 : i32
    %c0_i32_1 = arith.constant 0 : i32
    %c0_i32_2 = arith.constant 0 : i32
    return %c0_i32, %c0_i32_0, %c0_i32_1 : i32, i32, i32
  }
  func.func @transform_13(%arg0: i32) -> (i32, i32) {
    %c0_i32 = arith.constant 0 : i32
    %c0_i32_0 = arith.constant 0 : i32
    %c0_i32_1 = arith.constant 0 : i32
    return %c0_i32, %c0_i32_0 : i32, i32
  }
  func.func @transform_14(%arg0: i32) -> (i32, i32) {
    %c0_i32 = arith.constant 0 : i32
    %c0_i32_0 = arith.constant 0 : i32
    %c0_i32_1 = arith.constant 0 : i32
    return %c0_i32, %c0_i32_0 : i32, i32
  }
  func.func @transform_15(%arg0: i32) -> (i32, i32) {
    %c0_i32 = arith.constant 0 : i32
    %c0_i32_0 = arith.constant 0 : i32
    %c0_i32_1 = arith.constant 0 : i32
    return %c0_i32, %c0_i32_0 : i32, i32
  }
  func.func @transform_16(%arg0: i32) -> (i32, i32) {
    %c0_i32 = arith.constant 0 : i32
    %c0_i32_0 = arith.constant 0 : i32
    %c0_i32_1 = arith.constant 0 : i32
    return %c0_i32, %c0_i32_0 : i32, i32
  }
  func.func @transform_17(%arg0: i32) -> (i32, i32) {
    %c0_i32 = arith.constant 0 : i32
    %c0_i32_0 = arith.constant 0 : i32
    %c0_i32_1 = arith.constant 0 : i32
    return %c0_i32, %c0_i32_0 : i32, i32
  }
  func.func @transform_18(%arg0: i32) -> (i32, i32, i32) {
    %c0_i32 = arith.constant 0 : i32
    %c0_i32_0 = arith.constant 0 : i32
    %c0_i32_1 = arith.constant 0 : i32
    return %arg0, %c0_i32, %c0_i32_0 : i32, i32, i32
  }
  func.func @transform_19(%arg0: i32) -> (i32, i32, i32) {
    %c0_i32 = arith.constant 0 : i32
    %c0_i32_0 = arith.constant 0 : i32
    %c0_i32_1 = arith.constant 0 : i32
    return %arg0, %c0_i32, %c0_i32_0 : i32, i32, i32
  }
  func.func @transform_20(%arg0: i32) -> (i32, i32, i32) {
    %c0_i32 = arith.constant 0 : i32
    %c0_i32_0 = arith.constant 0 : i32
    %c0_i32_1 = arith.constant 0 : i32
    return %arg0, %c0_i32, %c0_i32_0 : i32, i32, i32
  }
  func.func @transform_21(%arg0: i32) -> (i32, i32, i32) {
    %c0_i32 = arith.constant 0 : i32
    %c0_i32_0 = arith.constant 0 : i32
    %c0_i32_1 = arith.constant 0 : i32
    return %arg0, %c0_i32, %c0_i32_0 : i32, i32, i32
  }
}

</mosaic_0001>

<llo_original>
// kernel: sub.1
$region0: #{sub.1}
  #allocation0 [shape = 's32[1]{0}', space=sflag, size = 0x4, scoped, tag = 'scoped memory for sub.1']
  %s0 = inlined_call_operand.vmem [shape: s32[2,8], index: 0, kind: input, shape index: {}]
  %s1 = inlined_call_operand.vmem [shape: s32[2,8], index: 1, kind: input, shape index: {}]
  %s2 = inlined_call_operand.vmem [shape: s32[2,8], index: 2, kind: output, shape index: {}]
  %v3 = vld [vmem:[%s0] sm:$0x3]
  %v4 = vld [vmem:[%s1] sm:$0x3]
  %5 = xla_tuple %v3, %v4
  %6 = xla_tuple %5
  %v7 = vsub.s32 %v3, %v4
  %8 = xla_tuple %v7
  %9 = vst [vmem:[%s2] sm:$0x3] %v7

// kernel: variance_adaptor_forward.1
$region0: #{variance_adaptor_forward.1}
  #allocation0 [shape = 'u32[]', space=smem, size = 0x4, offset = 0x4, fixed_abs, tag = 'smem constant byte address 0x4 - core index']
  #allocation1 [shape = 'u32[144,128]{1,0:T(1,128)}', space=vmem, size = 0x12000, scoped, tag = 'internal scratch']
  %s0 = inlined_call_operand.vmem [shape: f32[2,8,32], index: 0, kind: input, shape index: {}]
  %s1 = inlined_call_operand.vmem [shape: s32[2,1,8], index: 1, kind: input, shape index: {}]
  %s2 = inlined_call_operand.vmem [shape: s32[2,1,8], index: 2, kind: input, shape index: {}]
  %s3 = inlined_call_operand.vmem [shape: f32[2,1,16], index: 3, kind: input, shape index: {}]
  %s4 = inlined_call_operand.vmem [shape: f32[2,1,16], index: 4, kind: input, shape index: {}]
  %s5 = inlined_call_operand.hbm [shape: bf16[3,32,32], index: 5, kind: input, shape index: {}]
  %s6 = inlined_call_operand.hbm [shape: bf16[3,32,32], index: 6, kind: input, shape index: {}]
  %s7 = inlined_call_operand.hbm [shape: f32[8,32], index: 7, kind: input, shape index: {}]
  %s8 = inlined_call_operand.hbm [shape: bf16[3,32,32], index: 8, kind: input, shape index: {}]
  %s9 = inlined_call_operand.vmem [shape: bf16[3,32,32], index: 9, kind: input, shape index: {}]
  %s10 = inlined_call_operand.hbm [shape: f32[8,32], index: 10, kind: input, shape index: {}]
  %s11 = inlined_call_operand.hbm [shape: bf16[3,32,32], index: 11, kind: input, shape index: {}]
  %s12 = inlined_call_operand.hbm [shape: bf16[3,32,32], index: 12, kind: input, shape index: {}]
  %s13 = inlined_call_operand.hbm [shape: f32[8,32], index: 13, kind: input, shape index: {}]
  %s14 = inlined_call_operand.hbm [shape: f32[1,7], index: 14, kind: input, shape index: {}]
  %s15 = inlined_call_operand.hbm [shape: bf16[8,32], index: 15, kind: input, shape index: {}]
  %s16 = inlined_call_operand.vmem [shape: f32[1,7], index: 16, kind: input, shape index: {}]
  %s17 = inlined_call_operand.vmem [shape: bf16[8,32], index: 17, kind: input, shape index: {}]
  %s18 = inlined_call_operand.hbm [shape: f32[2,16,32], index: 18, kind: output, shape index: {0}]
  %s19 = inlined_call_operand.hbm [shape: f32[2,1,8], index: 19, kind: output, shape index: {1}]
  %s20 = inlined_call_operand.hbm [shape: f32[2,1,16], index: 20, kind: output, shape index: {2}]
  %s21 = inlined_call_operand.hbm [shape: f32[2,1,16], index: 21, kind: output, shape index: {3}]
  %22 = xla_tuple %s18, %s19, %s20, %s21
  %s23 = sld [smem:[#allocation0]]
  $region169: #{variance_adaptor_forward.1} parent=0
    _
  %s25 = ssub.s32 1, %s23
  %s26 = scalar_select 0, %s25, %s23
  $region1: #{variance_adaptor_forward.1} parent=0
    #allocation2 [shape = 'u8[24576]{0}', space=vmem, size = 0x6000, scoped, tag = 'input window, operand 5, single buffered']
    #allocation3 [shape = 's32[2]{0}', space=sflag, size = 0x8, scoped, tag = 'scoped memory for variance_adaptor_forward.1']
    #allocation4 [shape = 's32[2]{0}', space=sflag, size = 0x8, scoped, tag = 'scoped memory for variance_adaptor_forward.1']
    #allocation5 [shape = 'u8[24576]{0}', space=vmem, size = 0x6000, scoped, tag = 'input window, operand 6, single buffered']
    #allocation6 [shape = 's32[1]{0}', space=sflag, size = 0x4, scoped, tag = 'scoped memory for variance_adaptor_forward.1']
    #allocation7 [shape = 'u8[4096]{0}', space=vmem, size = 0x1000, scoped, tag = 'input window, operand 7, single buffered']
    #allocation8 [shape = 'u8[24576]{0}', space=vmem, size = 0x6000, scoped, tag = 'input window, operand 8, single buffered']
    #allocation9 [shape = 's32[1]{0}', space=sflag, size = 0x4, scoped, tag = 'scoped memory for variance_adaptor_forward.1']
    #allocation10 [shape = 'u8[4096]{0}', space=vmem, size = 0x1000, scoped, tag = 'input window, operand 10, single buffered']
    #allocation11 [shape = 'u8[24576]{0}', space=vmem, size = 0x6000, scoped, tag = 'input window, operand 11, single buffered']
    #allocation12 [shape = 's32[1]{0}', space=sflag, size = 0x4, scoped, tag = 'scoped memory for variance_adaptor_forward.1']
    #allocation13 [shape = 'u8[24576]{0}', space=vmem, size = 0x6000, scoped, tag = 'input window, operand 12, single buffered']
    #allocation14 [shape = 'u8[4096]{0}', space=vmem, size = 0x1000, scoped, tag = 'input window, operand 13, single buffered']
    #allocation15 [shape = 's32[1]{0}', space=sflag, size = 0x4, scoped, tag = 'scoped memory for variance_adaptor_forward.1']
    #allocation16 [shape = 'u8[512]{0}', space=vmem, size = 0x400, scoped, tag = 'input window, operand 14, single buffered']
    #allocation17 [shape = 'u8[2048]{0}', space=vmem, size = 0x800, scoped, tag = 'input window, operand 15, single buffered']
    #allocation18 [shape = 's32[1]{0}', space=sflag, size = 0x4, scoped, tag = 'scoped memory for variance_adaptor_forward.1']
    #allocation19 [shape = 'u8[16384]{0}', space=vmem, size = 0x4000, scoped, tag = 'output window, operand 0']
    #allocation20 [shape = 'u8[1024]{0}', space=vmem, size = 0x400, scoped, tag = 'output window, operand 1']
    #allocation21 [shape = 's32[2]{0}', space=sflag, size = 0x8, scoped, tag = 'scoped memory for variance_adaptor_forward.1']
    #allocation22 [shape = 'u8[1024]{0}', space=vmem, size = 0x400, scoped, tag = 'output window, operand 2']
    #allocation23 [shape = 'u8[1024]{0}', space=vmem, size = 0x400, scoped, tag = 'output window, operand 3']
    #allocation24 [shape = 's32[2]{0}', space=sflag, size = 0x8, scoped, tag = 'scoped memory for variance_adaptor_forward.1']
    %27 = vsyncpa [#allocation3], 0
    %28 = vsyncpa [#allocation6], 0
    %29 = vsyncpa [#allocation9], 0
    %30 = vsyncpa [#allocation12], 0
    %31 = vsyncpa [#allocation15], 0
    %32 = vsyncpa [#allocation18], 0
    %33 = vsyncpa [#allocation4], 0
    %s34 = scalar_lea.sflag [#allocation4], 1
    %35 = vsyncpa %s34, 0
    %36 = vsyncpa [#allocation21], 0
    %s37 = scalar_lea.sflag [#allocation21], 1
    %38 = vsyncpa %s37, 0
    %39 = vsyncpa [#allocation24], 0
    %s40 = scalar_lea.sflag [#allocation24], 1
    %41 = vsyncpa %s40, 0
    loop: start=0, step=1, limit=4
    $region2: #{variance_adaptor_forward.1} parent=1 // loop_pre_header
      _
    $region3: #{variance_adaptor_forward.1} parent=1 // loop_header
      %s43 = sphi 0, %s47
      %p44 = scmp.ge.s32.totalorder %s43, 4
      %s53 = sphi 0, %s55
      %s56 = sphi 0, %s53
      %s57 = sphi 0, %s56
      %s73 = sphi 0, %s57
      %s79 = sphi 0, %s81
      %s82 = sphi 0, %s79
      %s83 = sphi 0, %s82
      %s99 = sphi 0, %s83
      %s105 = sphi 0, %s107
      %s108 = sphi 0, %s105
      %s109 = sphi 0, %s108
      %s125 = sphi 0, %s109
      %s131 = sphi 0, %s133
      %s134 = sphi 0, %s131
      %s135 = sphi 0, %s134
      %s151 = sphi 0, %s135
      %s157 = sphi 0, %s159
      %s160 = sphi 0, %s157
      %s161 = sphi 0, %s160
      %s177 = sphi 0, %s161
      %s181 = sphi 0, %s181
      %s183 = sphi 0, %s181
      %s184 = sphi 0, %s183
      %s198 = sphi 0, %s184
      %s202 = sphi 0, %s202
      %s204 = sphi 0, %s202
      %s205 = sphi 0, %s204
      %s219 = sphi 0, %s205
      %s223 = sphi 0, %s223
      %s225 = sphi 0, %s223
      %s226 = sphi 0, %s225
      %s240 = sphi 0, %s226
      %s244 = sphi 0, %s244
      %s246 = sphi 0, %s244
      %s247 = sphi 0, %s246
      %s261 = sphi 0, %s247
      %s265 = sphi 0, %s265
      %s267 = sphi 0, %s265
      %s268 = sphi 0, %s267
      %s282 = sphi 0, %s268
      %s286 = sphi 0, %s286
      %s288 = sphi 0, %s286
      %s289 = sphi 0, %s288
      %s303 = sphi 0, %s289
      %s307 = sphi 0, %s307
      %s309 = sphi 0, %s307
      %s310 = sphi 0, %s309
      %s324 = sphi 0, %s310
      %s328 = sphi 0, %s328
      %s330 = sphi 0, %s328
      %s331 = sphi 0, %s330
      %s345 = sphi 0, %s331
      %s349 = sphi 0, %s349
      %s351 = sphi 0, %s349
      %s352 = sphi 0, %s351
      %s366 = sphi 0, %s352
      %s370 = sphi 0, %s370
      %s372 = sphi 0, %s370
      %s373 = sphi 0, %s372
      %s387 = sphi 0, %s373
      %s391 = sphi 0, %s391
      %s393 = sphi 0, %s391
      %s394 = sphi 0, %s393
      %s408 = sphi 0, %s394
      %s412 = sphi 0, %s412
      %s414 = sphi 0, %s412
      %s415 = sphi 0, %s414
      %s429 = sphi 0, %s415
      %s433 = sphi 0, %s433
      %s435 = sphi 0, %s433
      %s436 = sphi 0, %s435
      %s450 = sphi 0, %s436
      %s456 = sphi 0, %s458
      %s459 = sphi 0, %s456
      %s460 = sphi 0, %s459
      %s476 = sphi 0, %s460
      %s482 = sphi 0, %s484
      %s485 = sphi 0, %s482
      %s486 = sphi 0, %s485
      %s502 = sphi 0, %s486
      %s508 = sphi 0, %s510
      %s511 = sphi 0, %s508
      %s512 = sphi 0, %s511
      %s528 = sphi 0, %s512
      %s534 = sphi 0, %s536
      %s537 = sphi 0, %s534
      %s538 = sphi 0, %s537
      %s554 = sphi 0, %s538
    $region4: #{variance_adaptor_forward.1} parent=1 // loop_header_branch
      %46 = sbr.rel (%p44) target = $region8
    $region5: #{variance_adaptor_forward.1} parent=1 // loop_body
      %s48 = ssub.s32 %s43, 1
      %s49 = ssub.s32 %s43, 2
      %s50 = sadd.s32 %s43, 1
      %s51 = ssub.s32 %s43, %s50
      %p52 = scmp.eq.s32.totalorder %s51, 0
      %s54 = sadd.s32 %s53, 1
      %s55 = scalar_select %p52, %s53, %s54
      %p58 = pneg %p52
      %p59 = scmp.eq.s32.totalorder %s43, 1
      %p60 = por %p58, %p59
      %p61 = scmp.ne.s32.totalorder %s53, %s56
      %p62 = scmp.eq.s32.totalorder %s43, 0
      %p63 = por %p61, %p62
      %p64 = scmp.ne.s32.totalorder %s53, %s56
      %p65 = scmp.eq.s32.totalorder %s48, 1
      %p66 = por %p64, %p65
      %p67 = scmp.ne.s32.totalorder %s56, %s57
      %p68 = scmp.eq.s32.totalorder %s48, 0
      %p69 = por %p67, %p68
      %p70 = scmp.ne.s32.totalorder %s56, %s57
      %p71 = scmp.eq.s32.totalorder %s49, 1
      %p72 = por %p70, %p71
      %p74 = scmp.ne.s32.totalorder %s57, %s73
      %p75 = scmp.eq.s32.totalorder %s49, 0
      %p76 = por %p74, %p75
      %s77 = ssub.s32 %s43, %s50
      %p78 = scmp.eq.s32.totalorder %s77, 0
      %s80 = sadd.s32 %s79, 1
      %s81 = scalar_select %p78, %s79, %s80
      %p84 = pneg %p78
      %p85 = scmp.eq.s32.totalorder %s43, 1
      %p86 = por %p84, %p85
      %p87 = scmp.ne.s32.totalorder %s79, %s82
      %p88 = scmp.eq.s32.totalorder %s43, 0
      %p89 = por %p87, %p88
      %p90 = scmp.ne.s32.totalorder %s79, %s82
      %p91 = scmp.eq.s32.totalorder %s48, 1
      %p92 = por %p90, %p91
      %p93 = scmp.ne.s32.totalorder %s82, %s83
      %p94 = scmp.eq.s32.totalorder %s48, 0
      %p95 = por %p93, %p94
      %p96 = scmp.ne.s32.totalorder %s82, %s83
      %p97 = scmp.eq.s32.totalorder %s49, 1
      %p98 = por %p96, %p97
      %p100 = scmp.ne.s32.totalorder %s83, %s99
      %p101 = scmp.eq.s32.totalorder %s49, 0
      %p102 = por %p100, %p101
      %s103 = ssub.s32 %s43, %s50
      %p104 = scmp.eq.s32.totalorder %s103, 0
      %s106 = sadd.s32 %s105, 1
      %s107 = scalar_select %p104, %s105, %s106
      %p110 = pneg %p104
      %p111 = scmp.eq.s32.totalorder %s43, 1
      %p112 = por %p110, %p111
      %p113 = scmp.ne.s32.totalorder %s105, %s108
      %p114 = scmp.eq.s32.totalorder %s43, 0
      %p115 = por %p113, %p114
      %p116 = scmp.ne.s32.totalorder %s105, %s108
      %p117 = scmp.eq.s32.totalorder %s48, 1
      %p118 = por %p116, %p117
      %p119 = scmp.ne.s32.totalorder %s108, %s109
      %p120 = scmp.eq.s32.totalorder %s48, 0
      %p121 = por %p119, %p120
      %p122 = scmp.ne.s32.totalorder %s108, %s109
      %p123 = scmp.eq.s32.totalorder %s49, 1
      %p124 = por %p122, %p123
      %p126 = scmp.ne.s32.totalorder %s109, %s125
      %p127 = scmp.eq.s32.totalorder %s49, 0
      %p128 = por %p126, %p127
      %s129 = ssub.s32 %s43, %s50
      %p130 = scmp.eq.s32.totalorder %s129, 0
      %s132 = sadd.s32 %s131, 1
      %s133 = scalar_select %p130, %s131, %s132
      %p136 = pneg %p130
      %p137 = scmp.eq.s32.totalorder %s43, 1
      %p138 = por %p136, %p137
      %p139 = scmp.ne.s32.totalorder %s131, %s134
      %p140 = scmp.eq.s32.totalorder %s43, 0
      %p141 = por %p139, %p140
      %p142 = scmp.ne.s32.totalorder %s131, %s134
      %p143 = scmp.eq.s32.totalorder %s48, 1
      %p144 = por %p142, %p143
      %p145 = scmp.ne.s32.totalorder %s134, %s135
      %p146 = scmp.eq.s32.totalorder %s48, 0
      %p147 = por %p145, %p146
      %p148 = scmp.ne.s32.totalorder %s134, %s135
      %p149 = scmp.eq.s32.totalorder %s49, 1
      %p150 = por %p148, %p149
      %p152 = scmp.ne.s32.totalorder %s135, %s151
      %p153 = scmp.eq.s32.totalorder %s49, 0
      %p154 = por %p152, %p153
      %s155 = ssub.s32 %s43, %s50
      %p156 = scmp.eq.s32.totalorder %s155, 0
      %s158 = sadd.s32 %s157, 1
      %s159 = scalar_select %p156, %s157, %s158
      %p162 = pneg %p156
      %p163 = scmp.eq.s32.totalorder %s43, 1
      %p164 = por %p162, %p163
      %p165 = scmp.ne.s32.totalorder %s157, %s160
      %p166 = scmp.eq.s32.totalorder %s43, 0
      %p167 = por %p165, %p166
      %p168 = scmp.ne.s32.totalorder %s157, %s160
      %p169 = scmp.eq.s32.totalorder %s48, 1
      %p170 = por %p168, %p169
      %p171 = scmp.ne.s32.totalorder %s160, %s161
      %p172 = scmp.eq.s32.totalorder %s48, 0
      %p173 = por %p171, %p172
      %p174 = scmp.ne.s32.totalorder %s160, %s161
      %p175 = scmp.eq.s32.totalorder %s49, 1
      %p176 = por %p174, %p175
      %p178 = scmp.ne.s32.totalorder %s161, %s177
      %p179 = scmp.eq.s32.totalorder %s49, 0
      %p180 = por %p178, %p179
      %s182 = sadd.s32 %s181, 1
      %p185 = scmp.eq.s32.totalorder %s43, 1
      %p186 = scmp.ne.s32.totalorder %s181, %s183
      %p187 = scmp.eq.s32.totalorder %s43, 0
      %p188 = por %p186, %p187
      %p189 = scmp.ne.s32.totalorder %s181, %s183
      %p190 = scmp.eq.s32.totalorder %s48, 1
      %p191 = por %p189, %p190
      %p192 = scmp.ne.s32.totalorder %s183, %s184
      %p193 = scmp.eq.s32.totalorder %s48, 0
      %p194 = por %p192, %p193
      %p195 = scmp.ne.s32.totalorder %s183, %s184
      %p196 = scmp.eq.s32.totalorder %s49, 1
      %p197 = por %p195, %p196
      %p199 = scmp.ne.s32.totalorder %s184, %s198
      %p200 = scmp.eq.s32.totalorder %s49, 0
      %p201 = por %p199, %p200
      %s203 = sadd.s32 %s202, 1
      %p206 = scmp.eq.s32.totalorder %s43, 1
      %p207 = scmp.ne.s32.totalorder %s202, %s204
      %p208 = scmp.eq.s32.totalorder %s43, 0
      %p209 = por %p207, %p208
      %p210 = scmp.ne.s32.totalorder %s202, %s204
      %p211 = scmp.eq.s32.totalorder %s48, 1
      %p212 = por %p210, %p211
      %p213 = scmp.ne.s32.totalorder %s204, %s205
      %p214 = scmp.eq.s32.totalorder %s48, 0
      %p215 = por %p213, %p214
      %p216 = scmp.ne.s32.totalorder %s204, %s205
      %p217 = scmp.eq.s32.totalorder %s49, 1
      %p218 = por %p216, %p217
      %p220 = scmp.ne.s32.totalorder %s205, %s219
      %p221 = scmp.eq.s32.totalorder %s49, 0
      %p222 = por %p220, %p221
      %s224 = sadd.s32 %s223, 1
      %p227 = scmp.eq.s32.totalorder %s43, 1
      %p228 = scmp.ne.s32.totalorder %s223, %s225
      %p229 = scmp.eq.s32.totalorder %s43, 0
      %p230 = por %p228, %p229
      %p231 = scmp.ne.s32.totalorder %s223, %s225
      %p232 = scmp.eq.s32.totalorder %s48, 1
      %p233 = por %p231, %p232
      %p234 = scmp.ne.s32.totalorder %s225, %s226
      %p235 = scmp.eq.s32.totalorder %s48, 0
      %p236 = por %p234, %p235
      %p237 = scmp.ne.s32.totalorder %s225, %s226
      %p238 = scmp.eq.s32.totalorder %s49, 1
      %p239 = por %p237, %p238
      %p241 = scmp.ne.s32.totalorder %s226, %s240
      %p242 = scmp.eq.s32.totalorder %s49, 0
      %p243 = por %p241, %p242
      %s245 = sadd.s32 %s244, 1
      %p248 = scmp.eq.s32.totalorder %s43, 1
      %p249 = scmp.ne.s32.totalorder %s244, %s246
      %p250 = scmp.eq.s32.totalorder %s43, 0
      %p251 = por %p249, %p250
      %p252 = scmp.ne.s32.totalorder %s244, %s246
      %p253 = scmp.eq.s32.totalorder %s48, 1
      %p254 = por %p252, %p253
      %p255 = scmp.ne.s32.totalorder %s246, %s247
      %p256 = scmp.eq.s32.totalorder %s48, 0
      %p257 = por %p255, %p256
      %p258 = scmp.ne.s32.totalorder %s246, %s247
      %p259 = scmp.eq.s32.totalorder %s49, 1
      %p260 = por %p258, %p259
      %p262 = scmp.ne.s32.totalorder %s247, %s261
      %p263 = scmp.eq.s32.totalorder %s49, 0
      %p264 = por %p262, %p263
      %s266 = sadd.s32 %s265, 1
      %p269 = scmp.eq.s32.totalorder %s43, 1
      %p270 = scmp.ne.s32.totalorder %s265, %s267
      %p271 = scmp.eq.s32.totalorder %s43, 0
      %p272 = por %p270, %p271
      %p273 = scmp.ne.s32.totalorder %s265, %s267
      %p274 = scmp.eq.s32.totalorder %s48, 1
      %p275 = por %p273, %p274
      %p276 = scmp.ne.s32.totalorder %s267, %s268
      %p277 = scmp.eq.s32.totalorder %s48, 0
      %p278 = por %p276, %p277
      %p279 = scmp.ne.s32.totalorder %s267, %s268
      %p280 = scmp.eq.s32.totalorder %s49, 1
      %p281 = por %p279, %p280
      %p283 = scmp.ne.s32.totalorder %s268, %s282
      %p284 = scmp.eq.s32.totalorder %s49, 0
      %p285 = por %p283, %p284
      %s287 = sadd.s32 %s286, 1
      %p290 = scmp.eq.s32.totalorder %s43, 1
      %p291 = scmp.ne.s32.totalorder %s286, %s288
      %p292 = scmp.eq.s32.totalorder %s43, 0
      %p293 = por %p291, %p292
      %p294 = scmp.ne.s32.totalorder %s286, %s288
      %p295 = scmp.eq.s32.totalorder %s48, 1
      %p296 = por %p294, %p295
      %p297 = scmp.ne.s32.totalorder %s288, %s289
      %p298 = scmp.eq.s32.totalorder %s48, 0
      %p299 = por %p297, %p298
      %p300 = scmp.ne.s32.totalorder %s288, %s289
      %p301 = scmp.eq.s32.totalorder %s49, 1
      %p302 = por %p300, %p301
      %p304 = scmp.ne.s32.totalorder %s289, %s303
      %p305 = scmp.eq.s32.totalorder %s49, 0
      %p306 = por %p304, %p305
      %s308 = sadd.s32 %s307, 1
      %p311 = scmp.eq.s32.totalorder %s43, 1
      %p312 = scmp.ne.s32.totalorder %s307, %s309
      %p313 = scmp.eq.s32.totalorder %s43, 0
      %p314 = por %p312, %p313
      %p315 = scmp.ne.s32.totalorder %s307, %s309
      %p316 = scmp.eq.s32.totalorder %s48, 1
      %p317 = por %p315, %p316
      %p318 = scmp.ne.s32.totalorder %s309, %s310
      %p319 = scmp.eq.s32.totalorder %s48, 0
      %p320 = por %p318, %p319
      %p321 = scmp.ne.s32.totalorder %s309, %s310
      %p322 = scmp.eq.s32.totalorder %s49, 1
      %p323 = por %p321, %p322
      %p325 = scmp.ne.s32.totalorder %s310, %s324
      %p326 = scmp.eq.s32.totalorder %s49, 0
      %p327 = por %p325, %p326
      %s329 = sadd.s32 %s328, 1
      %p332 = scmp.eq.s32.totalorder %s43, 1
      %p333 = scmp.ne.s32.totalorder %s328, %s330
      %p334 = scmp.eq.s32.totalorder %s43, 0
      %p335 = por %p333, %p334
      %p336 = scmp.ne.s32.totalorder %s328, %s330
      %p337 = scmp.eq.s32.totalorder %s48, 1
      %p338 = por %p336, %p337
      %p339 = scmp.ne.s32.totalorder %s330, %s331
      %p340 = scmp.eq.s32.totalorder %s48, 0
      %p341 = por %p339, %p340
      %p342 = scmp.ne.s32.totalorder %s330, %s331
      %p343 = scmp.eq.s32.totalorder %s49, 1
      %p344 = por %p342, %p343
      %p346 = scmp.ne.s32.totalorder %s331, %s345
      %p347 = scmp.eq.s32.totalorder %s49, 0
      %p348 = por %p346, %p347
      %s350 = sadd.s32 %s349, 1
      %p353 = scmp.eq.s32.totalorder %s43, 1
      %p354 = scmp.ne.s32.totalorder %s349, %s351
      %p355 = scmp.eq.s32.totalorder %s43, 0
      %p356 = por %p354, %p355
      %p357 = scmp.ne.s32.totalorder %s349, %s351
      %p358 = scmp.eq.s32.totalorder %s48, 1
      %p359 = por %p357, %p358
      %p360 = scmp.ne.s32.totalorder %s351, %s352
      %p361 = scmp.eq.s32.totalorder %s48, 0
      %p362 = por %p360, %p361
      %p363 = scmp.ne.s32.totalorder %s351, %s352
      %p364 = scmp.eq.s32.totalorder %s49, 1
      %p365 = por %p363, %p364
      %p367 = scmp.ne.s32.totalorder %s352, %s366
      %p368 = scmp.eq.s32.totalorder %s49, 0
      %p369 = por %p367, %p368
      %s371 = sadd.s32 %s370, 1
      %p374 = scmp.eq.s32.totalorder %s43, 1
      %p375 = scmp.ne.s32.totalorder %s370, %s372
      %p376 = scmp.eq.s32.totalorder %s43, 0
      %p377 = por %p375, %p376
      %p378 = scmp.ne.s32.totalorder %s370, %s372
      %p379 = scmp.eq.s32.totalorder %s48, 1
      %p380 = por %p378, %p379
      %p381 = scmp.ne.s32.totalorder %s372, %s373
      %p382 = scmp.eq.s32.totalorder %s48, 0
      %p383 = por %p381, %p382
      %p384 = scmp.ne.s32.totalorder %s372, %s373
      %p385 = scmp.eq.s32.totalorder %s49, 1
      %p386 = por %p384, %p385
      %p388 = scmp.ne.s32.totalorder %s373, %s387
      %p389 = scmp.eq.s32.totalorder %s49, 0
      %p390 = por %p388, %p389
      %s392 = sadd.s32 %s391, 1
      %p395 = scmp.eq.s32.totalorder %s43, 1
      %p396 = scmp.ne.s32.totalorder %s391, %s393
      %p397 = scmp.eq.s32.totalorder %s43, 0
      %p398 = por %p396, %p397
      %p399 = scmp.ne.s32.totalorder %s391, %s393
      %p400 = scmp.eq.s32.totalorder %s48, 1
      %p401 = por %p399, %p400
      %p402 = scmp.ne.s32.totalorder %s393, %s394
      %p403 = scmp.eq.s32.totalorder %s48, 0
      %p404 = por %p402, %p403
      %p405 = scmp.ne.s32.totalorder %s393, %s394
      %p406 = scmp.eq.s32.totalorder %s49, 1
      %p407 = por %p405, %p406
      %p409 = scmp.ne.s32.totalorder %s394, %s408
      %p410 = scmp.eq.s32.totalorder %s49, 0
      %p411 = por %p409, %p410
      %s413 = sadd.s32 %s412, 1
      %p416 = scmp.eq.s32.totalorder %s43, 1
      %p417 = scmp.ne.s32.totalorder %s412, %s414
      %p418 = scmp.eq.s32.totalorder %s43, 0
      %p419 = por %p417, %p418
      %p420 = scmp.ne.s32.totalorder %s412, %s414
      %p421 = scmp.eq.s32.totalorder %s48, 1
      %p422 = por %p420, %p421
      %p423 = scmp.ne.s32.totalorder %s414, %s415
      %p424 = scmp.eq.s32.totalorder %s48, 0
      %p425 = por %p423, %p424
      %p426 = scmp.ne.s32.totalorder %s414, %s415
      %p427 = scmp.eq.s32.totalorder %s49, 1
      %p428 = por %p426, %p427
      %p430 = scmp.ne.s32.totalorder %s415, %s429
      %p431 = scmp.eq.s32.totalorder %s49, 0
      %p432 = por %p430, %p431
      %s434 = sadd.s32 %s433, 1
      %p437 = scmp.eq.s32.totalorder %s43, 1
      %p438 = scmp.ne.s32.totalorder %s433, %s435
      %p439 = scmp.eq.s32.totalorder %s43, 0
      %p440 = por %p438, %p439
      %p441 = scmp.ne.s32.totalorder %s433, %s435
      %p442 = scmp.eq.s32.totalorder %s48, 1
      %p443 = por %p441, %p442
      %p444 = scmp.ne.s32.totalorder %s435, %s436
      %p445 = scmp.eq.s32.totalorder %s48, 0
      %p446 = por %p444, %p445
      %p447 = scmp.ne.s32.totalorder %s435, %s436
      %p448 = scmp.eq.s32.totalorder %s49, 1
      %p449 = por %p447, %p448
      %p451 = scmp.ne.s32.totalorder %s436, %s450
      %p452 = scmp.eq.s32.totalorder %s49, 0
      %p453 = por %p451, %p452
      %s454 = ssub.s32 %s43, %s50
      %p455 = scmp.eq.s32.totalorder %s454, 0
      %s457 = sadd.s32 %s456, 1
      %s458 = scalar_select %p455, %s456, %s457
      %p461 = pneg %p455
      %p462 = scmp.eq.s32.totalorder %s43, 1
      %p463 = por %p461, %p462
      %p464 = scmp.ne.s32.totalorder %s456, %s459
      %p465 = scmp.eq.s32.totalorder %s43, 0
      %p466 = por %p464, %p465
      %p467 = scmp.ne.s32.totalorder %s456, %s459
      %p468 = scmp.eq.s32.totalorder %s48, 1
      %p469 = por %p467, %p468
      %p470 = scmp.ne.s32.totalorder %s459, %s460
      %p471 = scmp.eq.s32.totalorder %s48, 0
      %p472 = por %p470, %p471
      %p473 = scmp.ne.s32.totalorder %s459, %s460
      %p474 = scmp.eq.s32.totalorder %s49, 1
      %p475 = por %p473, %p474
      %p477 = scmp.ne.s32.totalorder %s460, %s476
      %p478 = scmp.eq.s32.totalorder %s49, 0
      %p479 = por %p477, %p478
      %s480 = ssub.s32 %s43, %s50
      %p481 = scmp.eq.s32.totalorder %s480, 0
      %s483 = sadd.s32 %s482, 1
      %s484 = scalar_select %p481, %s482, %s483
      %p487 = pneg %p481
      %p488 = scmp.eq.s32.totalorder %s43, 1
      %p489 = por %p487, %p488
      %p490 = scmp.ne.s32.totalorder %s482, %s485
      %p491 = scmp.eq.s32.totalorder %s43, 0
      %p492 = por %p490, %p491
      %p493 = scmp.ne.s32.totalorder %s482, %s485
      %p494 = scmp.eq.s32.totalorder %s48, 1
      %p495 = por %p493, %p494
      %p496 = scmp.ne.s32.totalorder %s485, %s486
      %p497 = scmp.eq.s32.totalorder %s48, 0
      %p498 = por %p496, %p497
      %p499 = scmp.ne.s32.totalorder %s485, %s486
      %p500 = scmp.eq.s32.totalorder %s49, 1
      %p501 = por %p499, %p500
      %p503 = scmp.ne.s32.totalorder %s486, %s502
      %p504 = scmp.eq.s32.totalorder %s49, 0
      %p505 = por %p503, %p504
      %s506 = ssub.s32 %s43, %s50
      %p507 = scmp.eq.s32.totalorder %s506, 0
      %s509 = sadd.s32 %s508, 1
      %s510 = scalar_select %p507, %s508, %s509
      %p513 = pneg %p507
      %p514 = scmp.eq.s32.totalorder %s43, 1
      %p515 = por %p513, %p514
      %p516 = scmp.ne.s32.totalorder %s508, %s511
      %p517 = scmp.eq.s32.totalorder %s43, 0
      %p518 = por %p516, %p517
      %p519 = scmp.ne.s32.totalorder %s508, %s511
      %p520 = scmp.eq.s32.totalorder %s48, 1
      %p521 = por %p519, %p520
      %p522 = scmp.ne.s32.totalorder %s511, %s512
      %p523 = scmp.eq.s32.totalorder %s48, 0
      %p524 = por %p522, %p523
      %p525 = scmp.ne.s32.totalorder %s511, %s512
      %p526 = scmp.eq.s32.totalorder %s49, 1
      %p527 = por %p525, %p526
      %p529 = scmp.ne.s32.totalorder %s512, %s528
      %p530 = scmp.eq.s32.totalorder %s49, 0
      %p531 = por %p529, %p530
      %s532 = ssub.s32 %s43, %s50
      %p533 = scmp.eq.s32.totalorder %s532, 0
      %s535 = sadd.s32 %s534, 1
      %s536 = scalar_select %p533, %s534, %s535
      %p539 = pneg %p533
      %p540 = scmp.eq.s32.totalorder %s43, 1
      %p541 = por %p539, %p540
      %p542 = scmp.ne.s32.totalorder %s534, %s537
      %p543 = scmp.eq.s32.totalorder %s43, 0
      %p544 = por %p542, %p543
      %p545 = scmp.ne.s32.totalorder %s534, %s537
      %p546 = scmp.eq.s32.totalorder %s48, 1
      %p547 = por %p545, %p546
      %p548 = scmp.ne.s32.totalorder %s537, %s538
      %p549 = scmp.eq.s32.totalorder %s48, 0
      %p550 = por %p548, %p549
      %p551 = scmp.ne.s32.totalorder %s537, %s538
      %p552 = scmp.eq.s32.totalorder %s49, 1
      %p553 = por %p551, %p552
      %p555 = scmp.ne.s32.totalorder %s538, %s554
      %p556 = scmp.eq.s32.totalorder %s49, 0
      %p557 = por %p555, %p556
      %p558 = scmp.le.s32.totalorder 1, %s43
      %p559 = scmp.lt.s32.totalorder %s43, 3
      %p560 = pnand %p558, %p559
      %p561 = pneg %p560
      // Predicated region
      $region9: #{variance_adaptor_forward.1} parent=5 // pred_check
        _
      $region10: #{variance_adaptor_forward.1} parent=5 // pred_check_branch
        %563 = sbr.rel (%p560) target = $region12
      $region11: #{variance_adaptor_forward.1} parent=5 // pred_region
        %s564 = ssub.s32 %s43, 1
        // Predicated region
        $region13: #{variance_adaptor_forward.1} parent=11 // pred_check
          %p565 = pneg %p194
        $region14: #{variance_adaptor_forward.1} parent=11 // pred_check_branch
          %567 = sbr.rel (%p565) target = $region16
        $region15: #{variance_adaptor_forward.1} parent=11 // pred_region
          %s569 = ssub.s32 768, 768
          %570 = vsyncadd [#allocation3], %s569
          %s571 = sshll.u32 [#allocation2], 4
          %s572 = int_to_ptr.vmem [resolvable:$true] %s571
          %577 = dma.hbm_to_vmem [thread:$0]  %s5, 768, %s572, [#allocation3], 64, 64, 4
        $region16: #{variance_adaptor_forward.1} parent=11 // pred_fallthru
          _
        // Predicated region
        $region17: #{variance_adaptor_forward.1} parent=11 // pred_check
          %p578 = pneg %p215
        $region18: #{variance_adaptor_forward.1} parent=11 // pred_check_branch
          %580 = sbr.rel (%p578) target = $region20
        $region19: #{variance_adaptor_forward.1} parent=11 // pred_region
          %s582 = ssub.s32 768, 768
          %583 = vsyncadd [#allocation6], %s582
          %s584 = sshll.u32 [#allocation5], 4
          %s585 = int_to_ptr.vmem [resolvable:$true] %s584
          %590 = dma.hbm_to_vmem [thread:$0]  %s6, 768, %s585, [#allocation6], 64, 64, 4
        $region20: #{variance_adaptor_forward.1} parent=11 // pred_fallthru
          _
        // Predicated region
        $region21: #{variance_adaptor_forward.1} parent=11 // pred_check
          %p591 = pneg %p236
        $region22: #{variance_adaptor_forward.1} parent=11 // pred_check_branch
          %593 = sbr.rel (%p591) target = $region24
        $region23: #{variance_adaptor_forward.1} parent=11 // pred_region
          %s595 = ssub.s32 128, 128
          %596 = vsyncadd [#allocation6], %s595
          %s598 = sshll.u32 [#allocation7], 4
          %s599 = int_to_ptr.vmem [resolvable:$true] %s598
          %601 = dma.hbm_to_vmem [thread:$0]  %s7, 128, %s599, [#allocation6]
        $region24: #{variance_adaptor_forward.1} parent=11 // pred_fallthru
          _
        // Predicated region
        $region25: #{variance_adaptor_forward.1} parent=11 // pred_check
          %p602 = pneg %p257
        $region26: #{variance_adaptor_forward.1} parent=11 // pred_check_branch
          %604 = sbr.rel (%p602) target = $region28
        $region27: #{variance_adaptor_forward.1} parent=11 // pred_region
          %s606 = ssub.s32 768, 768
          %607 = vsyncadd [#allocation9], %s606
          %s608 = sshll.u32 [#allocation8], 4
          %s609 = int_to_ptr.vmem [resolvable:$true] %s608
          %614 = dma.hbm_to_vmem [thread:$0]  %s8, 768, %s609, [#allocation9], 64, 64, 4
        $region28: #{variance_adaptor_forward.1} parent=11 // pred_fallthru
          _
        // Predicated region
        $region29: #{variance_adaptor_forward.1} parent=11 // pred_check
          %p615 = pneg %p278
        $region30: #{variance_adaptor_forward.1} parent=11 // pred_check_branch
          %617 = sbr.rel (%p615) target = $region32
        $region31: #{variance_adaptor_forward.1} parent=11 // pred_region
          _
        $region32: #{variance_adaptor_forward.1} parent=11 // pred_fallthru
          _
        // Predicated region
        $region33: #{variance_adaptor_forward.1} parent=11 // pred_check
          %p618 = pneg %p299
        $region34: #{variance_adaptor_forward.1} parent=11 // pred_check_branch
          %620 = sbr.rel (%p618) target = $region36
        $region35: #{variance_adaptor_forward.1} parent=11 // pred_region
          %s622 = ssub.s32 128, 128
          %623 = vsyncadd [#allocation9], %s622
          %s625 = sshll.u32 [#allocation10], 4
          %s626 = int_to_ptr.vmem [resolvable:$true] %s625
          %628 = dma.hbm_to_vmem [thread:$0]  %s10, 128, %s626, [#allocation9]
        $region36: #{variance_adaptor_forward.1} parent=11 // pred_fallthru
          _
        // Predicated region
        $region37: #{variance_adaptor_forward.1} parent=11 // pred_check
          %p629 = pneg %p320
        $region38: #{variance_adaptor_forward.1} parent=11 // pred_check_branch
          %631 = sbr.rel (%p629) target = $region40
        $region39: #{variance_adaptor_forward.1} parent=11 // pred_region
          %s633 = ssub.s32 768, 768
          %634 = vsyncadd [#allocation12], %s633
          %s635 = sshll.u32 [#allocation11], 4
          %s636 = int_to_ptr.vmem [resolvable:$true] %s635
          %641 = dma.hbm_to_vmem [thread:$0]  %s11, 768, %s636, [#allocation12], 64, 64, 4
        $region40: #{variance_adaptor_forward.1} parent=11 // pred_fallthru
          _
        // Predicated region
        $region41: #{variance_adaptor_forward.1} parent=11 // pred_check
          %p642 = pneg %p341
        $region42: #{variance_adaptor_forward.1} parent=11 // pred_check_branch
          %644 = sbr.rel (%p642) target = $region44
        $region43: #{variance_adaptor_forward.1} parent=11 // pred_region
          %s646 = ssub.s32 768, 768
          %647 = vsyncadd [#allocation12], %s646
          %s648 = sshll.u32 [#allocation13], 4
          %s649 = int_to_ptr.vmem [resolvable:$true] %s648
          %654 = dma.hbm_to_vmem [thread:$0]  %s12, 768, %s649, [#allocation12], 64, 64, 4
        $region44: #{variance_adaptor_forward.1} parent=11 // pred_fallthru
          _
        // Predicated region
        $region45: #{variance_adaptor_forward.1} parent=11 // pred_check
          %p655 = pneg %p362
        $region46: #{variance_adaptor_forward.1} parent=11 // pred_check_branch
          %657 = sbr.rel (%p655) target = $region48
        $region47: #{variance_adaptor_forward.1} parent=11 // pred_region
          %s659 = ssub.s32 128, 128
          %660 = vsyncadd [#allocation15], %s659
          %s662 = sshll.u32 [#allocation14], 4
          %s663 = int_to_ptr.vmem [resolvable:$true] %s662
          %665 = dma.hbm_to_vmem [thread:$0]  %s13, 128, %s663, [#allocation15]
        $region48: #{variance_adaptor_forward.1} parent=11 // pred_fallthru
          _
        // Predicated region
        $region49: #{variance_adaptor_forward.1} parent=11 // pred_check
          %p666 = pneg %p383
        $region50: #{variance_adaptor_forward.1} parent=11 // pred_check_branch
          %668 = sbr.rel (%p666) target = $region52
        $region51: #{variance_adaptor_forward.1} parent=11 // pred_region
          %s670 = ssub.s32 16, 16
          %671 = vsyncadd [#allocation15], %s670
          %s673 = sshll.u32 [#allocation16], 4
          %s674 = int_to_ptr.vmem [resolvable:$true] %s673
          %676 = dma.hbm_to_vmem [thread:$0]  %s14, 16, %s674, [#allocation15]
        $region52: #{variance_adaptor_forward.1} parent=11 // pred_fallthru
          _
        // Predicated region
        $region53: #{variance_adaptor_forward.1} parent=11 // pred_check
          %p677 = pneg %p404
        $region54: #{variance_adaptor_forward.1} parent=11 // pred_check_branch
          %679 = sbr.rel (%p677) target = $region56
        $region55: #{variance_adaptor_forward.1} parent=11 // pred_region
          %s681 = ssub.s32 64, 64
          %682 = vsyncadd [#allocation18], %s681
          %s684 = sshll.u32 [#allocation17], 4
          %s685 = int_to_ptr.vmem [resolvable:$true] %s684
          %687 = dma.hbm_to_vmem [thread:$0]  %s15, 64, %s685, [#allocation18]
        $region56: #{variance_adaptor_forward.1} parent=11 // pred_fallthru
          _
        // Predicated region
        $region57: #{variance_adaptor_forward.1} parent=11 // pred_check
          %p688 = pneg %p425
        $region58: #{variance_adaptor_forward.1} parent=11 // pred_check_branch
          %690 = sbr.rel (%p688) target = $region60
        $region59: #{variance_adaptor_forward.1} parent=11 // pred_region
          _
        $region60: #{variance_adaptor_forward.1} parent=11 // pred_fallthru
          _
        // Predicated region
        $region61: #{variance_adaptor_forward.1} parent=11 // pred_check
          %p691 = pneg %p446
        $region62: #{variance_adaptor_forward.1} parent=11 // pred_check_branch
          %693 = sbr.rel (%p691) target = $region64
        $region63: #{variance_adaptor_forward.1} parent=11 // pred_region
          _
        $region64: #{variance_adaptor_forward.1} parent=11 // pred_fallthru
          _
      $region12: #{variance_adaptor_forward.1} parent=5 // pred_fallthru
        _
      %p694 = scmp.lt.s32.totalorder %s43, 2
      // Predicated region
      $region65: #{variance_adaptor_forward.1} parent=5 // pred_check
        %p695 = pneg %p694
      $region66: #{variance_adaptor_forward.1} parent=5 // pred_check_branch
        %697 = sbr.rel (%p695) target = $region68
      $region67: #{variance_adaptor_forward.1} parent=5 // pred_region
        // Predicated region
        $region69: #{variance_adaptor_forward.1} parent=67 // pred_check
          %p698 = pneg %p63
        $region70: #{variance_adaptor_forward.1} parent=67 // pred_check_branch
          %700 = sbr.rel (%p698) target = $region72
        $region71: #{variance_adaptor_forward.1} parent=67 // pred_region
          %p701 = scmp.lt.s32.totalorder %s43, 1
          %s702 = scalar_select %p701, %s43, 1
          %s703 = smul.addr %s702, 8
          %s704 = scalar_lea.vmem %s0, %s703
        $region72: #{variance_adaptor_forward.1} parent=67 // pred_fallthru
          _
        // Predicated region
        $region73: #{variance_adaptor_forward.1} parent=67 // pred_check
          %p705 = pneg %p89
        $region74: #{variance_adaptor_forward.1} parent=67 // pred_check_branch
          %707 = sbr.rel (%p705) target = $region76
        $region75: #{variance_adaptor_forward.1} parent=67 // pred_region
          %p708 = scmp.lt.s32.totalorder %s43, 1
          %s709 = scalar_select %p708, %s43, 1
          %s710 = scalar_lea.vmem %s1, %s709
        $region76: #{variance_adaptor_forward.1} parent=67 // pred_fallthru
          _
        // Predicated region
        $region77: #{variance_adaptor_forward.1} parent=67 // pred_check
          %p711 = pneg %p115
        $region78: #{variance_adaptor_forward.1} parent=67 // pred_check_branch
          %713 = sbr.rel (%p711) target = $region80
        $region79: #{variance_adaptor_forward.1} parent=67 // pred_region
          %p714 = scmp.lt.s32.totalorder %s43, 1
          %s715 = scalar_select %p714, %s43, 1
          %s716 = scalar_lea.vmem %s2, %s715
        $region80: #{variance_adaptor_forward.1} parent=67 // pred_fallthru
          _
        // Predicated region
        $region81: #{variance_adaptor_forward.1} parent=67 // pred_check
          %p717 = pneg %p141
        $region82: #{variance_adaptor_forward.1} parent=67 // pred_check_branch
          %719 = sbr.rel (%p717) target = $region84
        $region83: #{variance_adaptor_forward.1} parent=67 // pred_region
          %p720 = scmp.lt.s32.totalorder %s43, 1
          %s721 = scalar_select %p720, %s43, 1
          %s722 = scalar_lea.vmem %s3, %s721
        $region84: #{variance_adaptor_forward.1} parent=67 // pred_fallthru
          _
        // Predicated region
        $region85: #{variance_adaptor_forward.1} parent=67 // pred_check
          %p723 = pneg %p167
        $region86: #{variance_adaptor_forward.1} parent=67 // pred_check_branch
          %725 = sbr.rel (%p723) target = $region88
        $region87: #{variance_adaptor_forward.1} parent=67 // pred_region
          %p726 = scmp.lt.s32.totalorder %s43, 1
          %s727 = scalar_select %p726, %s43, 1
          %s728 = scalar_lea.vmem %s4, %s727
        $region88: #{variance_adaptor_forward.1} parent=67 // pred_fallthru
          _
      $region68: #{variance_adaptor_forward.1} parent=5 // pred_fallthru
        _
      %p729 = scmp.le.s32.totalorder 1, %s43
      %p730 = scmp.lt.s32.totalorder %s43, 3
      %p731 = pnand %p729, %p730
      %p732 = pneg %p731
      // Predicated region
      $region89: #{variance_adaptor_forward.1} parent=5 // pred_check
        _
      $region90: #{variance_adaptor_forward.1} parent=5 // pred_check_branch
        %734 = sbr.rel (%p731) target = $region92
      $region91: #{variance_adaptor_forward.1} parent=5 // pred_region
        %s735 = ssub.s32 %s43, 1
        // Predicated region
        $region93: #{variance_adaptor_forward.1} parent=91 // pred_check
          %p736 = pneg %p194
        $region94: #{variance_adaptor_forward.1} parent=91 // pred_check_branch
          %738 = sbr.rel (%p736) target = $region96
        $region95: #{variance_adaptor_forward.1} parent=91 // pred_region
          %739 = dma.done [#allocation3], 768
        $region96: #{variance_adaptor_forward.1} parent=91 // pred_fallthru
          _
        // Predicated region
        $region97: #{variance_adaptor_forward.1} parent=91 // pred_check
          %p740 = pneg %p215
        $region98: #{variance_adaptor_forward.1} parent=91 // pred_check_branch
          %742 = sbr.rel (%p740) target = $region100
        $region99: #{variance_adaptor_forward.1} parent=91 // pred_region
          %743 = dma.done [#allocation6], 768
        $region100: #{variance_adaptor_forward.1} parent=91 // pred_fallthru
          _
        // Predicated region
        $region101: #{variance_adaptor_forward.1} parent=91 // pred_check
          %p744 = pneg %p236
        $region102: #{variance_adaptor_forward.1} parent=91 // pred_check_branch
          %746 = sbr.rel (%p744) target = $region104
        $region103: #{variance_adaptor_forward.1} parent=91 // pred_region
          %747 = dma.done [#allocation6], 128
        $region104: #{variance_adaptor_forward.1} parent=91 // pred_fallthru
          _
        // Predicated region
        $region105: #{variance_adaptor_forward.1} parent=91 // pred_check
          %p748 = pneg %p257
        $region106: #{variance_adaptor_forward.1} parent=91 // pred_check_branch
          %750 = sbr.rel (%p748) target = $region108
        $region107: #{variance_adaptor_forward.1} parent=91 // pred_region
          %751 = dma.done [#allocation9], 768
        $region108: #{variance_adaptor_forward.1} parent=91 // pred_fallthru
          _
        // Predicated region
        $region109: #{variance_adaptor_forward.1} parent=91 // pred_check
          %p752 = pneg %p299
        $region110: #{variance_adaptor_forward.1} parent=91 // pred_check_branch
          %754 = sbr.rel (%p752) target = $region112
        $region111: #{variance_adaptor_forward.1} parent=91 // pred_region
          %755 = dma.done [#allocation9], 128
        $region112: #{variance_adaptor_forward.1} parent=91 // pred_fallthru
          _
        // Predicated region
        $region113: #{variance_adaptor_forward.1} parent=91 // pred_check
          %p756 = pneg %p320
        $region114: #{variance_adaptor_forward.1} parent=91 // pred_check_branch
          %758 = sbr.rel (%p756) target = $region116
        $region115: #{variance_adaptor_forward.1} parent=91 // pred_region
          %759 = dma.done [#allocation12], 768
        $region116: #{variance_adaptor_forward.1} parent=91 // pred_fallthru
          _
        // Predicated region
        $region117: #{variance_adaptor_forward.1} parent=91 // pred_check
          %p760 = pneg %p341
        $region118: #{variance_adaptor_forward.1} parent=91 // pred_check_branch
          %762 = sbr.rel (%p760) target = $region120
        $region119: #{variance_adaptor_forward.1} parent=91 // pred_region
          %763 = dma.done [#allocation12], 768
        $region120: #{variance_adaptor_forward.1} parent=91 // pred_fallthru
          _
        // Predicated region
        $region121: #{variance_adaptor_forward.1} parent=91 // pred_check
          %p764 = pneg %p362
        $region122: #{variance_adaptor_forward.1} parent=91 // pred_check_branch
          %766 = sbr.rel (%p764) target = $region124
        $region123: #{variance_adaptor_forward.1} parent=91 // pred_region
          %767 = dma.done [#allocation15], 128
        $region124: #{variance_adaptor_forward.1} parent=91 // pred_fallthru
          _
        // Predicated region
        $region125: #{variance_adaptor_forward.1} parent=91 // pred_check
          %p768 = pneg %p383
        $region126: #{variance_adaptor_forward.1} parent=91 // pred_check_branch
          %770 = sbr.rel (%p768) target = $region128
        $region127: #{variance_adaptor_forward.1} parent=91 // pred_region
          %771 = dma.done [#allocation15], 16
        $region128: #{variance_adaptor_forward.1} parent=91 // pred_fallthru
          _
        // Predicated region
        $region129: #{variance_adaptor_forward.1} parent=91 // pred_check
          %p772 = pneg %p404
        $region130: #{variance_adaptor_forward.1} parent=91 // pred_check_branch
          %774 = sbr.rel (%p772) target = $region132
        $region131: #{variance_adaptor_forward.1} parent=91 // pred_region
          %775 = dma.done [#allocation18], 64
        $region132: #{variance_adaptor_forward.1} parent=91 // pred_fallthru
          _
        %p776 = scmp.lt.s32.totalorder %s48, 1
        %s777 = scalar_select %p776, %s48, 1
        %s778 = smul.addr %s777, 8
        %s779 = scalar_lea.vmem %s0, %s778
        %p780 = pneg %p69
        %p781 = pneg %p66
        %p782 = scmp.lt.s32.totalorder %s48, 1
        %s783 = scalar_select %p782, %s48, 1
        %s784 = scalar_lea.vmem %s1, %s783
        %p785 = pneg %p95
        %p786 = pneg %p92
        %p787 = scmp.lt.s32.totalorder %s48, 1
        %s788 = scalar_select %p787, %s48, 1
        %s789 = scalar_lea.vmem %s2, %s788
        %p790 = pneg %p121
        %p791 = pneg %p118
        %p792 = scmp.lt.s32.totalorder %s48, 1
        %s793 = scalar_select %p792, %s48, 1
        %s794 = scalar_lea.vmem %s3, %s793
        %p795 = pneg %p147
        %p796 = pneg %p144
        %p797 = scmp.lt.s32.totalorder %s48, 1
        %s798 = scalar_select %p797, %s48, 1
        %s799 = scalar_lea.vmem %s4, %s798
        %p800 = pneg %p173
        %p801 = pneg %p170
        %p802 = pneg %p194
        %p803 = pneg %p191
        %p804 = pneg %p215
        %p805 = pneg %p212
        %p806 = pneg %p236
        %p807 = pneg %p233
        %p808 = pneg %p257
        %p809 = pneg %p254
        %p810 = pneg %p278
        %p811 = pneg %p275
        %p812 = pneg %p299
        %p813 = pneg %p296
        %p814 = pneg %p320
        %p815 = pneg %p317
        %p816 = pneg %p341
        %p817 = pneg %p338
        %p818 = pneg %p362
        %p819 = pneg %p359
        %p820 = pneg %p383
        %p821 = pneg %p380
        %p822 = pneg %p404
        %p823 = pneg %p401
        %p824 = pneg %p425
        %p825 = pneg %p422
        %p826 = pneg %p446
        %p827 = pneg %p443
        %p828 = pneg %p472
        %p829 = pneg %p469
        %s830 = sand.u32 %s459, 1
        %s831 = scalar_lea.sflag [#allocation4], %s830
        %s832 = sand.u32 %s459, 1
        %s833 = smul.addr %s832, 16
        %s834 = scalar_lea.vmem [#allocation19], %s833
        %p835 = pneg %p498
        %p836 = pneg %p495
        %s837 = sand.u32 %s48, 1
        %s838 = scalar_lea.sflag [#allocation21], %s837
        %s839 = sand.u32 %s485, 1
        %s840 = scalar_lea.vmem [#allocation20], %s839
        %p841 = pneg %p524
        %p842 = pneg %p521
        %s843 = sand.u32 %s48, 1
        %s844 = scalar_lea.sflag [#allocation21], %s843
        %s845 = sand.u32 %s511, 1
        %s846 = scalar_lea.vmem [#allocation22], %s845
        %p847 = pneg %p550
        %p848 = pneg %p547
        %s849 = sand.u32 %s537, 1
        %s850 = scalar_lea.sflag [#allocation24], %s849
        %s851 = sand.u32 %s537, 1
        %s852 = scalar_lea.vmem [#allocation23], %s851
        %p853 = scmp.lt.s32.totalorder %s48, 1
        %s854 = scalar_select %p853, %s48, 1
        %s855 = smul.addr %s854, 8
        %s856 = scalar_lea.vmem %s0, %s855
        %p857 = scmp.lt.s32.totalorder %s48, 1
        %s858 = scalar_select %p857, %s48, 1
        %s859 = scalar_lea.vmem %s1, %s858
        %p860 = scmp.lt.s32.totalorder %s48, 1
        %s861 = scalar_select %p860, %s48, 1
        %s862 = scalar_lea.vmem %s2, %s861
        %p863 = scmp.lt.s32.totalorder %s48, 1
        %s864 = scalar_select %p863, %s48, 1
        %s865 = scalar_lea.vmem %s3, %s864
        %p866 = scmp.lt.s32.totalorder %s48, 1
        %s867 = scalar_select %p866, %s48, 1
        %s868 = scalar_lea.vmem %s4, %s867
        %v870 = vld [vmem:[%s856] sm:$0xff]
        %v871 = vpack.c.bf16 %v870, %v870
        %v872 = vld [vmem:[#allocation7] sm:$0xff]
        %v874 = vshrl.u32 %v871, 16
        %v876 = vrot.slane %v874, 7
        %v877 = vshll.u32 %v871, 16
        %v879 = vor.u32 %v876, %v877
        %vm881 = vcmask 1040384
        %vm882 = vsmask.f32 256
        %vm883 = vmand %vm881, %vm882
        %v884 = vsel %vm883, 0, %v879
        %v885 = vrot.slane %v877, 1
        %v886 = vor.u32 %v874, %v885
        %vm888 = vcmask 1043456
        %vm889 = vsmask.f32 3328
        %vm890 = vmand %vm888, %vm889
        %v891 = vsel %vm890, %v886, 0
        %v892 = vld [vmem:[#allocation2] sm:$0xf]
        %v893 = vld [vmem:[#allocation2 + $0x4] sm:$0xf]
        %v894 = vld [vmem:[#allocation2 + $0x8] sm:$0xf]
        %v895 = vld [vmem:[#allocation2 + $0xc] sm:$0xf]
        %s896 = scalar_lea.vmem [#allocation2], 16
        %v897 = vld [vmem:[%s896] sm:$0xf]
        %v898 = vld [vmem:[%s896 + $0x4] sm:$0xf]
        %v899 = vld [vmem:[%s896 + $0x8] sm:$0xf]
        %v900 = vld [vmem:[%s896 + $0xc] sm:$0xf]
        %v905 = vunpack.c.l.b16 %v897
        %v906 = vunpack.c.l.b16 %v898
        %v907 = vunpack.c.l.b16 %v899
        %v908 = vunpack.c.l.b16 %v900
        %v909 = vpack.c.b16 %v906, %v905
        %v910 = vpack.c.b16 %v908, %v907
        %vm913 = vcmask 261120
        %v914 = vsel %vm913, %v871, 0
        %916 = vmatprep.subr.bf16.mxu0 0
        %917 = vmatpush1.bf16.msra.mxu0 %v909
        %918 = vmatprep.subr.bf16.mxu0 0
        %919 = vmatpush1.bf16.msra.mxu0 %v910
        %920 = vmatprep.subr.bf16.mxu0 0
        %921 = vmatpush1.bf16.msra.mxu0 0
        %922 = vmatprep.subr.bf16.mxu0 0
        %923 = vmatpush1.bf16.msra.mxu0 0
        %924 = vmatprep.subr.bf16.mxu0 0
        %925 = vmatpush1.bf16.msra.mxu0 0
        %926 = vmatprep.subr.bf16.mxu0 0
        %927 = vmatpush1.bf16.msra.mxu0 0
        %928 = vmatprep.subr.bf16.mxu0 0
        %929 = vmatpush1.bf16.msra.mxu0 0
        %930 = vmatprep.subr.bf16.mxu0 0
        %931 = vmatpush1.bf16.msra.mxu0 0
        %932 = vmatprep.subr.bf16.mxu0 0
        %933 = vmatpush1.bf16.msra.mxu0 0
        %934 = vmatprep.subr.bf16.mxu0 0
        %935 = vmatpush1.bf16.msra.mxu0 0
        %936 = vmatprep.subr.bf16.mxu0 0
        %937 = vmatpush1.bf16.msra.mxu0 0
        %938 = vmatprep.subr.bf16.mxu0 0
        %939 = vmatpush1.bf16.msra.mxu0 0
        %940 = vmatprep.subr.bf16.mxu0 0
        %941 = vmatpush1.bf16.msra.mxu0 0
        %942 = vmatprep.subr.bf16.mxu0 0
        %943 = vmatpush1.bf16.msra.mxu0 0
        %944 = vmatprep.subr.bf16.mxu0 0
        %945 = vmatpush1.bf16.msra.mxu0 0
        %946 = vmatprep.subr.bf16.mxu0 0
        %947 = vmatpush1.bf16.msra.mxu0 0
        %948 = vmatprep.mubr.bf16.mxu0 0
        %949 = vmatmul.mubr.bf16.gmra.mrb[0].mxu0 %v914
        %v950 = vpop.f32.mrb[0].mxu0
        %v951 = vadd.f32 0.0, %v950
        %v952 = vpop.f32.mrb[0].mxu0
        %v953 = vpop.f32.mrb[0].mxu0
        %v954 = vpop.f32.mrb[0].mxu0
        %955 = vdwg.mxu0
        %v960 = vunpack.c.l.b16 %v892
        %v961 = vunpack.c.l.b16 %v893
        %v962 = vunpack.c.l.b16 %v894
        %v963 = vunpack.c.l.b16 %v895
        %v964 = vpack.c.b16 %v961, %v960
        %v965 = vpack.c.b16 %v963, %v962
        %v969 = vsel %vm913, %v884, 0
        %971 = vmatprep.subr.bf16.mxu0 0
        %972 = vmatpush1.bf16.msra.mxu0 %v964
        %973 = vmatprep.subr.bf16.mxu0 0
        %974 = vmatpush1.bf16.msra.mxu0 %v965
        %975 = vmatprep.subr.bf16.mxu0 0
        %976 = vmatpush1.bf16.msra.mxu0 0
        %977 = vmatprep.subr.bf16.mxu0 0
        %978 = vmatpush1.bf16.msra.mxu0 0
        %979 = vmatprep.subr.bf16.mxu0 0
        %980 = vmatpush1.bf16.msra.mxu0 0
        %981 = vmatprep.subr.bf16.mxu0 0
        %982 = vmatpush1.bf16.msra.mxu0 0
        %983 = vmatprep.subr.bf16.mxu0 0
        %984 = vmatpush1.bf16.msra.mxu0 0
        %985 = vmatprep.subr.bf16.mxu0 0
        %986 = vmatpush1.bf16.msra.mxu0 0
        %987 = vmatprep.subr.bf16.mxu0 0
        %988 = vmatpush1.bf16.msra.mxu0 0
        %989 = vmatprep.subr.bf16.mxu0 0
        %990 = vmatpush1.bf16.msra.mxu0 0
        %991 = vmatprep.subr.bf16.mxu0 0
        %992 = vmatpush1.bf16.msra.mxu0 0
        %993 = vmatprep.subr.bf16.mxu0 0
        %994 = vmatpush1.bf16.msra.mxu0 0
        %995 = vmatprep.subr.bf16.mxu0 0
        %996 = vmatpush1.bf16.msra.mxu0 0
        %997 = vmatprep.subr.bf16.mxu0 0
        %998 = vmatpush1.bf16.msra.mxu0 0
        %999 = vmatprep.subr.bf16.mxu0 0
        %1000 = vmatpush1.bf16.msra.mxu0 0
        %1001 = vmatprep.subr.bf16.mxu0 0
        %1002 = vmatpush1.bf16.msra.mxu0 0
        %1003 = vmatprep.mubr.bf16.mxu0 0
        %1004 = vmatmul.mubr.bf16.gmra.mrb[0].mxu0 %v969
        %v1005 = vpop.f32.mrb[0].mxu0
        %v1006 = vadd.f32 %v951, %v1005
        %v1007 = vpop.f32.mrb[0].mxu0
        %v1008 = vpop.f32.mrb[0].mxu0
        %v1009 = vpop.f32.mrb[0].mxu0
        %1010 = vdwg.mxu0
        %s1011 = scalar_lea.vmem [#allocation2], 32
        %v1012 = vld [vmem:[%s1011] sm:$0xf]
        %v1013 = vld [vmem:[%s1011 + $0x4] sm:$0xf]
        %v1014 = vld [vmem:[%s1011 + $0x8] sm:$0xf]
        %v1015 = vld [vmem:[%s1011 + $0xc] sm:$0xf]
        %v1020 = vunpack.c.l.b16 %v1012
        %v1021 = vunpack.c.l.b16 %v1013
        %v1022 = vunpack.c.l.b16 %v1014
        %v1023 = vunpack.c.l.b16 %v1015
        %v1024 = vpack.c.b16 %v1021, %v1020
        %v1025 = vpack.c.b16 %v1023, %v1022
        %v1029 = vsel %vm913, %v891, 0
        %1031 = vmatprep.subr.bf16.mxu0 0
        %1032 = vmatpush1.bf16.msra.mxu0 %v1024
        %1033 = vmatprep.subr.bf16.mxu0 0
        %1034 = vmatpush1.bf16.msra.mxu0 %v1025
        %1035 = vmatprep.subr.bf16.mxu0 0
        %1036 = vmatpush1.bf16.msra.mxu0 0
        %1037 = vmatprep.subr.bf16.mxu0 0
        %1038 = vmatpush1.bf16.msra.mxu0 0
        %1039 = vmatprep.subr.bf16.mxu0 0
        %1040 = vmatpush1.bf16.msra.mxu0 0
        %1041 = vmatprep.subr.bf16.mxu0 0
        %1042 = vmatpush1.bf16.msra.mxu0 0
        %1043 = vmatprep.subr.bf16.mxu0 0
        %1044 = vmatpush1.bf16.msra.mxu0 0
        %1045 = vmatprep.subr.bf16.mxu0 0
        %1046 = vmatpush1.bf16.msra.mxu0 0
        %1047 = vmatprep.subr.bf16.mxu0 0
        %1048 = vmatpush1.bf16.msra.mxu0 0
        %1049 = vmatprep.subr.bf16.mxu0 0
        %1050 = vmatpush1.bf16.msra.mxu0 0
        %1051 = vmatprep.subr.bf16.mxu0 0
        %1052 = vmatpush1.bf16.msra.mxu0 0
        %1053 = vmatprep.subr.bf16.mxu0 0
        %1054 = vmatpush1.bf16.msra.mxu0 0
        %1055 = vmatprep.subr.bf16.mxu0 0
        %1056 = vmatpush1.bf16.msra.mxu0 0
        %1057 = vmatprep.subr.bf16.mxu0 0
        %1058 = vmatpush1.bf16.msra.mxu0 0
        %1059 = vmatprep.subr.bf16.mxu0 0
        %1060 = vmatpush1.bf16.msra.mxu0 0
        %1061 = vmatprep.subr.bf16.mxu0 0
        %1062 = vmatpush1.bf16.msra.mxu0 0
        %1063 = vmatprep.mubr.bf16.mxu0 0
        %1064 = vmatmul.mubr.bf16.gmra.mrb[0].mxu0 %v1029
        %v1065 = vpop.f32.mrb[0].mxu0
        %v1066 = vadd.f32 0.0, %v1065
        %v1067 = vpop.f32.mrb[0].mxu0
        %v1068 = vpop.f32.mrb[0].mxu0
        %v1069 = vpop.f32.mrb[0].mxu0
        %1070 = vdwg.mxu0
        %v1071 = vadd.f32 %v1006, %v1066
        %v1072 = vlaneseq
        %v1073 = vshrl.u32 %v1072, 7
        %v1074 = vsub.s32 0, %v1073
        %v1075 = vrot.slane %v872, %v1074
        %v1076 = vadd.f32 %v1071, %v1075
        %v1077 = vmax.f32 %v1076, 0.0
        %v1078 = vsel %vm913, %v1077, 0.0
        %1079 = vadd.xlane.f32.xlu0 %v1078
        %v1080 = vpop.xlane.xlu0 %1079
        %v1081 = vrcp.pop 32.0
        %v1082 = vmul.f32 %v1080, %v1081
        %v1083 = vmul.f32 %v1077, %v1077
        %v1084 = vsel %vm913, %v1083, 0.0
        %1085 = vadd.xlane.f32.xlu0 %v1084
        %v1086 = vpop.xlane.xlu0 %1085
        %v1087 = vmul.f32 %v1086, %v1081
        %v1088 = vmul.f32 %v1082, %v1082
        %v1089 = vsub.f32 %v1087, %v1088
        %v1090 = vmax.f32 %v1089, 0.0
        %v1091 = vsub.f32 %v1077, %v1082
        %v1092 = vadd.f32 %v1090, 1e-05
        %v1093 = vrsqrt.pop %v1092
        %v1094 = vmul.f32 %v1091, %v1093
        %v1095 = vlaneseq
        %v1096 = vshrl.u32 %v1095, 7
        %v1097 = vsub.s32 1, %v1096
        %v1098 = vrot.slane %v872, %v1097
        %v1099 = vmul.f32 %v1094, %v1098
        %v1100 = vlaneseq
        %v1101 = vshrl.u32 %v1100, 7
        %v1102 = vsub.s32 2, %v1101
        %v1103 = vrot.slane %v872, %v1102
        %v1104 = vadd.f32 %v1099, %v1103
        %v1105 = vpack.c.bf16 %v1104, %v1104
        %v1107 = vshrl.u32 %v1105, 16
        %v1109 = vrot.slane %v1107, 7
        %v1110 = vshll.u32 %v1105, 16
        %v1112 = vor.u32 %v1109, %v1110
        %v1114 = vsel %vm883, 0, %v1112
        %v1115 = vrot.slane %v1110, 1
        %v1116 = vor.u32 %v1107, %v1115
        %v1118 = vsel %vm890, %v1116, 0
        %v1119 = vld [vmem:[#allocation5] sm:$0xf]
        %v1120 = vld [vmem:[#allocation5 + $0x4] sm:$0xf]
        %v1121 = vld [vmem:[#allocation5 + $0x8] sm:$0xf]
        %v1122 = vld [vmem:[#allocation5 + $0xc] sm:$0xf]
        %s1123 = scalar_lea.vmem [#allocation5], 16
        %v1124 = vld [vmem:[%s1123] sm:$0xf]
        %v1125 = vld [vmem:[%s1123 + $0x4] sm:$0xf]
        %v1126 = vld [vmem:[%s1123 + $0x8] sm:$0xf]
        %v1127 = vld [vmem:[%s1123 + $0xc] sm:$0xf]
        %v1132 = vunpack.c.l.b16 %v1124
        %v1133 = vunpack.c.l.b16 %v1125
        %v1134 = vunpack.c.l.b16 %v1126
        %v1135 = vunpack.c.l.b16 %v1127
        %v1136 = vpack.c.b16 %v1133, %v1132
        %v1137 = vpack.c.b16 %v1135, %v1134
        %v1140 = vsel %vm913, %v1105, 0
        %1142 = vmatprep.subr.bf16.mxu0 0
        %1143 = vmatpush1.bf16.msra.mxu0 %v1136
        %1144 = vmatprep.subr.bf16.mxu0 0
        %1145 = vmatpush1.bf16.msra.mxu0 %v1137
        %1146 = vmatprep.subr.bf16.mxu0 0
        %1147 = vmatpush1.bf16.msra.mxu0 0
        %1148 = vmatprep.subr.bf16.mxu0 0
        %1149 = vmatpush1.bf16.msra.mxu0 0
        %1150 = vmatprep.subr.bf16.mxu0 0
        %1151 = vmatpush1.bf16.msra.mxu0 0
        %1152 = vmatprep.subr.bf16.mxu0 0
        %1153 = vmatpush1.bf16.msra.mxu0 0
        %1154 = vmatprep.subr.bf16.mxu0 0
        %1155 = vmatpush1.bf16.msra.mxu0 0
        %1156 = vmatprep.subr.bf16.mxu0 0
        %1157 = vmatpush1.bf16.msra.mxu0 0
        %1158 = vmatprep.subr.bf16.mxu0 0
        %1159 = vmatpush1.bf16.msra.mxu0 0
        %1160 = vmatprep.subr.bf16.mxu0 0
        %1161 = vmatpush1.bf16.msra.mxu0 0
        %1162 = vmatprep.subr.bf16.mxu0 0
        %1163 = vmatpush1.bf16.msra.mxu0 0
        %1164 = vmatprep.subr.bf16.mxu0 0
        %1165 = vmatpush1.bf16.msra.mxu0 0
        %1166 = vmatprep.subr.bf16.mxu0 0
        %1167 = vmatpush1.bf16.msra.mxu0 0
        %1168 = vmatprep.subr.bf16.mxu0 0
        %1169 = vmatpush1.bf16.msra.mxu0 0
        %1170 = vmatprep.subr.bf16.mxu0 0
        %1171 = vmatpush1.bf16.msra.mxu0 0
        %1172 = vmatprep.subr.bf16.mxu0 0
        %1173 = vmatpush1.bf16.msra.mxu0 0
        %1174 = vmatprep.mubr.bf16.mxu0 0
        %1175 = vmatmul.mubr.bf16.gmra.mrb[0].mxu0 %v1140
        %v1176 = vpop.f32.mrb[0].mxu0
        %v1177 = vadd.f32 0.0, %v1176
        %v1178 = vpop.f32.mrb[0].mxu0
        %v1179 = vpop.f32.mrb[0].mxu0
        %v1180 = vpop.f32.mrb[0].mxu0
        %1181 = vdwg.mxu0
        %v1186 = vunpack.c.l.b16 %v1119
        %v1187 = vunpack.c.l.b16 %v1120
        %v1188 = vunpack.c.l.b16 %v1121
        %v1189 = vunpack.c.l.b16 %v1122
        %v1190 = vpack.c.b16 %v1187, %v1186
        %v1191 = vpack.c.b16 %v1189, %v1188
        %v1195 = vsel %vm913, %v1114, 0
        %1197 = vmatprep.subr.bf16.mxu0 0
        %1198 = vmatpush1.bf16.msra.mxu0 %v1190
        %1199 = vmatprep.subr.bf16.mxu0 0
        %1200 = vmatpush1.bf16.msra.mxu0 %v1191
        %1201 = vmatprep.subr.bf16.mxu0 0
        %1202 = vmatpush1.bf16.msra.mxu0 0
        %1203 = vmatprep.subr.bf16.mxu0 0
        %1204 = vmatpush1.bf16.msra.mxu0 0
        %1205 = vmatprep.subr.bf16.mxu0 0
        %1206 = vmatpush1.bf16.msra.mxu0 0
        %1207 = vmatprep.subr.bf16.mxu0 0
        %1208 = vmatpush1.bf16.msra.mxu0 0
        %1209 = vmatprep.subr.bf16.mxu0 0
        %1210 = vmatpush1.bf16.msra.mxu0 0
        %1211 = vmatprep.subr.bf16.mxu0 0
        %1212 = vmatpush1.bf16.msra.mxu0 0
        %1213 = vmatprep.subr.bf16.mxu0 0
        %1214 = vmatpush1.bf16.msra.mxu0 0
        %1215 = vmatprep.subr.bf16.mxu0 0
        %1216 = vmatpush1.bf16.msra.mxu0 0
        %1217 = vmatprep.subr.bf16.mxu0 0
        %1218 = vmatpush1.bf16.msra.mxu0 0
        %1219 = vmatprep.subr.bf16.mxu0 0
        %1220 = vmatpush1.bf16.msra.mxu0 0
        %1221 = vmatprep.subr.bf16.mxu0 0
        %1222 = vmatpush1.bf16.msra.mxu0 0
        %1223 = vmatprep.subr.bf16.mxu0 0
        %1224 = vmatpush1.bf16.msra.mxu0 0
        %1225 = vmatprep.subr.bf16.mxu0 0
        %1226 = vmatpush1.bf16.msra.mxu0 0
        %1227 = vmatprep.subr.bf16.mxu0 0
        %1228 = vmatpush1.bf16.msra.mxu0 0
        %1229 = vmatprep.mubr.bf16.mxu0 0
        %1230 = vmatmul.mubr.bf16.gmra.mrb[0].mxu0 %v1195
        %v1231 = vpop.f32.mrb[0].mxu0
        %v1232 = vadd.f32 %v1177, %v1231
        %v1233 = vpop.f32.mrb[0].mxu0
        %v1234 = vpop.f32.mrb[0].mxu0
        %v1235 = vpop.f32.mrb[0].mxu0
        %1236 = vdwg.mxu0
        %s1237 = scalar_lea.vmem [#allocation5], 32
        %v1238 = vld [vmem:[%s1237] sm:$0xf]
        %v1239 = vld [vmem:[%s1237 + $0x4] sm:$0xf]
        %v1240 = vld [vmem:[%s1237 + $0x8] sm:$0xf]
        %v1241 = vld [vmem:[%s1237 + $0xc] sm:$0xf]
        %v1246 = vunpack.c.l.b16 %v1238
        %v1247 = vunpack.c.l.b16 %v1239
        %v1248 = vunpack.c.l.b16 %v1240
        %v1249 = vunpack.c.l.b16 %v1241
        %v1250 = vpack.c.b16 %v1247, %v1246
        %v1251 = vpack.c.b16 %v1249, %v1248
        %v1255 = vsel %vm913, %v1118, 0
        %1257 = vmatprep.subr.bf16.mxu0 0
        %1258 = vmatpush1.bf16.msra.mxu0 %v1250
        %1259 = vmatprep.subr.bf16.mxu0 0
        %1260 = vmatpush1.bf16.msra.mxu0 %v1251
        %1261 = vmatprep.subr.bf16.mxu0 0
        %1262 = vmatpush1.bf16.msra.mxu0 0
        %1263 = vmatprep.subr.bf16.mxu0 0
        %1264 = vmatpush1.bf16.msra.mxu0 0
        %1265 = vmatprep.subr.bf16.mxu0 0
        %1266 = vmatpush1.bf16.msra.mxu0 0
        %1267 = vmatprep.subr.bf16.mxu0 0
        %1268 = vmatpush1.bf16.msra.mxu0 0
        %1269 = vmatprep.subr.bf16.mxu0 0
        %1270 = vmatpush1.bf16.msra.mxu0 0
        %1271 = vmatprep.subr.bf16.mxu0 0
        %1272 = vmatpush1.bf16.msra.mxu0 0
        %1273 = vmatprep.subr.bf16.mxu0 0
        %1274 = vmatpush1.bf16.msra.mxu0 0
        %1275 = vmatprep.subr.bf16.mxu0 0
        %1276 = vmatpush1.bf16.msra.mxu0 0
        %1277 = vmatprep.subr.bf16.mxu0 0
        %1278 = vmatpush1.bf16.msra.mxu0 0
        %1279 = vmatprep.subr.bf16.mxu0 0
        %1280 = vmatpush1.bf16.msra.mxu0 0
        %1281 = vmatprep.subr.bf16.mxu0 0
        %1282 = vmatpush1.bf16.msra.mxu0 0
        %1283 = vmatprep.subr.bf16.mxu0 0
        %1284 = vmatpush1.bf16.msra.mxu0 0
        %1285 = vmatprep.subr.bf16.mxu0 0
        %1286 = vmatpush1.bf16.msra.mxu0 0
        %1287 = vmatprep.subr.bf16.mxu0 0
        %1288 = vmatpush1.bf16.msra.mxu0 0
        %1289 = vmatprep.mubr.bf16.mxu0 0
        %1290 = vmatmul.mubr.bf16.gmra.mrb[0].mxu0 %v1255
        %v1291 = vpop.f32.mrb[0].mxu0
        %v1292 = vadd.f32 0.0, %v1291
        %v1293 = vpop.f32.mrb[0].mxu0
        %v1294 = vpop.f32.mrb[0].mxu0
        %v1295 = vpop.f32.mrb[0].mxu0
        %1296 = vdwg.mxu0
        %v1297 = vadd.f32 %v1232, %v1292
        %v1298 = vlaneseq
        %v1299 = vshrl.u32 %v1298, 7
        %v1300 = vsub.s32 3, %v1299
        %v1301 = vrot.slane %v872, %v1300
        %v1302 = vadd.f32 %v1297, %v1301
        %v1303 = vmax.f32 %v1302, 0.0
        %v1304 = vsel %vm913, %v1303, 0.0
        %1305 = vadd.xlane.f32.xlu0 %v1304
        %v1306 = vpop.xlane.xlu0 %1305
        %v1307 = vmul.f32 %v1306, %v1081
        %v1308 = vmul.f32 %v1303, %v1303
        %v1309 = vsel %vm913, %v1308, 0.0
        %1310 = vadd.xlane.f32.xlu0 %v1309
        %v1311 = vpop.xlane.xlu0 %1310
        %v1312 = vmul.f32 %v1311, %v1081
        %v1313 = vmul.f32 %v1307, %v1307
        %v1314 = vsub.f32 %v1312, %v1313
        %v1315 = vmax.f32 %v1314, 0.0
        %v1316 = vsub.f32 %v1303, %v1307
        %v1317 = vadd.f32 %v1315, 1e-05
        %v1318 = vrsqrt.pop %v1317
        %v1319 = vmul.f32 %v1316, %v1318
        %v1320 = vlaneseq
        %v1321 = vshrl.u32 %v1320, 7
        %v1322 = vsub.s32 4, %v1321
        %v1323 = vrot.slane %v872, %v1322
        %v1324 = vmul.f32 %v1319, %v1323
        %v1325 = vlaneseq
        %v1326 = vshrl.u32 %v1325, 7
        %v1327 = vsub.s32 5, %v1326
        %v1328 = vrot.slane %v872, %v1327
        %v1329 = vadd.f32 %v1324, %v1328
        %v1330 = vlaneseq
        %v1331 = vshrl.u32 %v1330, 7
        %v1332 = vsub.s32 6, %v1331
        %v1333 = vrot.slane %v872, %v1332
        %v1334 = vmul.f32 %v1329, %v1333
        %v1335 = vsel %vm913, %v1334, 0.0
        %1336 = vadd.xlane.f32.xlu0 %v1335
        %v1337 = vpop.xlane.xlu0 %1336
        %v1338 = vlaneseq
        %v1339 = vshrl.u32 %v1338, 7
        %v1340 = vsub.s32 7, %v1339
        %v1341 = vrot.slane %v872, %v1340
        %v1342 = vadd.f32 %v1337, %v1341
        %v1343 = vmax.f32 %v1342, 1e-08
        %1344 = vxpose.xlu0.b32.start [1/16] %v1343, 128
        %1345 = vxpose.xlu0.b32.cont [2/16] 0.0, 128
        %1346 = vxpose.xlu0.b32.cont [3/16] 0.0, 128
        %1347 = vxpose.xlu0.b32.cont [4/16] 0.0, 128
        %1348 = vxpose.xlu0.b32.cont [5/16] 0.0, 128
        %1349 = vxpose.xlu0.b32.cont [6/16] 0.0, 128
        %1350 = vxpose.xlu0.b32.cont [7/16] 0.0, 128
        %1351 = vxpose.xlu0.b32.cont [8/16] 0.0, 128
        %1352 = vxpose.xlu0.b32.cont [9/16] 0.0, 128
        %1353 = vxpose.xlu0.b32.cont [10/16] 0.0, 128
        %1354 = vxpose.xlu0.b32.cont [11/16] 0.0, 128
        %1355 = vxpose.xlu0.b32.cont [12/16] 0.0, 128
        %1356 = vxpose.xlu0.b32.cont [13/16] 0.0, 128
        %1357 = vxpose.xlu0.b32.cont [14/16] 0.0, 128
        %1358 = vxpose.xlu0.b32.cont [15/16] 0.0, 128
        %1359 = vxpose.xlu0.b32.end [16/16] 0.0, 128
        %v1360 = vpop.trf.xlu0
        %v1361 = vpop.trf.xlu0
        %v1362 = vpop.trf.xlu0
        %v1363 = vpop.trf.xlu0
        %v1364 = vpop.trf.xlu0
        %v1365 = vpop.trf.xlu0
        %v1366 = vpop.trf.xlu0
        %v1367 = vpop.trf.xlu0
        %v1368 = vpop.trf.xlu0
        %v1369 = vpop.trf.xlu0
        %v1370 = vpop.trf.xlu0
        %v1371 = vpop.trf.xlu0
        %v1372 = vpop.trf.xlu0
        %v1373 = vpop.trf.xlu0
        %v1374 = vpop.trf.xlu0
        %v1375 = vpop.trf.xlu0
        %vm1376 = vcmask 57344
        %1377 = vst.msk [vmem:[%s840] sm:$0x1] %vm1376, %v1360
        %v1378 = vlaneseq
        %v1379 = vshrl.u32 %v1378, 7
        %v1380 = vadd.s32 %v1379, 8
        %v1381 = vld [vmem:[%s859] sm:$0x1]
        %v1382 = vlaneseq
        %v1383 = vshrl.u32 %v1382, 7
        %v1384 = vsub.s32 0, %v1383
        %v1385 = vrot.slane %v1381, %v1384
        %vm1386 = vcmp.ge.s32.totalorder %v1379, %v1385
        %vm1387 = vcmp.ge.s32.totalorder %v1380, %v1385
        %v1388 = vld [vmem:[%s862] sm:$0x1]
        %v1389 = vlaneseq
        %v1390 = vshrl.u32 %v1389, 7
        %v1391 = vsub.s32 0, %v1390
        %v1392 = vrot.slane %v1388, %v1391
        %vm1393 = vcmp.lt.s32.totalorder %v1379, %v1392
        %vm1394 = vcmp.lt.s32.totalorder %v1380, %v1392
        %vm1395 = vmand %vm1386, %vm1393
        %vm1396 = vmand %vm1387, %vm1394
        %v1397 = vsel %vm1395, 1, 0
        %v1398 = vsel %vm1396, 1, 0
        %v1399 = vcvt.s32.f32 %v1397
        %v1400 = vcvt.s32.f32 %v1398
        %v1401 = vpack.c.bf16 %v1400, %v1399
        %vm1402 = vcmask 64512
        %v1404 = vsel %vm1402, %v1401, 0
        %vm1406 = vcmask 1043456
        %v1407 = vsel %vm1406, %v871, 0
        %1409 = vmatprep.subr.bf16.mxu0 0
        %1410 = vmatpush1.bf16.msra.mxu0 %v1407
        %1411 = vmatprep.subr.bf16.mxu0 0
        %1412 = vmatpush1.bf16.msra.mxu0 0
        %1413 = vmatprep.subr.bf16.mxu0 0
        %1414 = vmatpush1.bf16.msra.mxu0 0
        %1415 = vmatprep.subr.bf16.mxu0 0
        %1416 = vmatpush1.bf16.msra.mxu0 0
        %1417 = vmatprep.subr.bf16.mxu0 0
        %1418 = vmatpush1.bf16.msra.mxu0 0
        %1419 = vmatprep.subr.bf16.mxu0 0
        %1420 = vmatpush1.bf16.msra.mxu0 0
        %1421 = vmatprep.subr.bf16.mxu0 0
        %1422 = vmatpush1.bf16.msra.mxu0 0
        %1423 = vmatprep.subr.bf16.mxu0 0
        %1424 = vmatpush1.bf16.msra.mxu0 0
        %1425 = vmatprep.subr.bf16.mxu0 0
        %1426 = vmatpush1.bf16.msra.mxu0 0
        %1427 = vmatprep.subr.bf16.mxu0 0
        %1428 = vmatpush1.bf16.msra.mxu0 0
        %1429 = vmatprep.subr.bf16.mxu0 0
        %1430 = vmatpush1.bf16.msra.mxu0 0
        %1431 = vmatprep.subr.bf16.mxu0 0
        %1432 = vmatpush1.bf16.msra.mxu0 0
        %1433 = vmatprep.subr.bf16.mxu0 0
        %1434 = vmatpush1.bf16.msra.mxu0 0
        %1435 = vmatprep.subr.bf16.mxu0 0
        %1436 = vmatpush1.bf16.msra.mxu0 0
        %1437 = vmatprep.subr.bf16.mxu0 0
        %1438 = vmatpush1.bf16.msra.mxu0 0
        %1439 = vmatprep.subr.bf16.mxu0 0
        %1440 = vmatpush1.bf16.msra.mxu0 0
        %1441 = vmatprep.mubr.bf16.mxu0 0
        %1442 = vmatmul.mubr.bf16.gmra.mrb[0].mxu0 %v1404
        %v1443 = vpop.f32.mrb[0].mxu0
        %v1444 = vadd.f32 0.0, %v1443
        %v1445 = vpop.f32.mrb[0].mxu0
        %v1446 = vpop.f32.mrb[0].mxu0
        %v1447 = vadd.f32 0.0, %v1446
        %v1448 = vpop.f32.mrb[0].mxu0
        %1449 = vdwg.mxu0
        %v1450 = vpack.c.bf16 %v1447, %v1444
        %v1451 = vld [vmem:[#allocation10] sm:$0xff]
        %v1453 = vshrl.u32 %v1450, 16
        %v1455 = vrot.slane %v1453, 7
        %v1456 = vshll.u32 %v1450, 16
        %v1458 = vor.u32 %v1455, %v1456
        %v1460 = vsel %vm883, 0, %v1458
        %v1461 = vrot.slane %v1456, 1
        %v1462 = vor.u32 %v1453, %v1461
        %vm1464 = vcmask 1047552
        %vm1465 = vsmask.f32 7424
        %vm1466 = vmand %vm1464, %vm1465
        %v1467 = vsel %vm1466, %v1462, 0
        %v1468 = vld [vmem:[#allocation8] sm:$0xf]
        %v1469 = vld [vmem:[#allocation8 + $0x4] sm:$0xf]
        %v1470 = vld [vmem:[#allocation8 + $0x8] sm:$0xf]
        %v1471 = vld [vmem:[#allocation8 + $0xc] sm:$0xf]
        %s1472 = scalar_lea.vmem [#allocation8], 16
        %v1473 = vld [vmem:[%s1472] sm:$0xf]
        %v1474 = vld [vmem:[%s1472 + $0x4] sm:$0xf]
        %v1475 = vld [vmem:[%s1472 + $0x8] sm:$0xf]
        %v1476 = vld [vmem:[%s1472 + $0xc] sm:$0xf]
        %v1481 = vunpack.c.l.b16 %v1473
        %v1482 = vunpack.c.l.b16 %v1474
        %v1483 = vunpack.c.l.b16 %v1475
        %v1484 = vunpack.c.l.b16 %v1476
        %v1485 = vpack.c.b16 %v1482, %v1481
        %v1486 = vpack.c.b16 %v1484, %v1483
        %v1489 = vsel %vm913, %v1450, 0
        %1491 = vmatprep.subr.bf16.mxu0 0
        %1492 = vmatpush1.bf16.msra.mxu0 %v1485
        %1493 = vmatprep.subr.bf16.mxu0 0
        %1494 = vmatpush1.bf16.msra.mxu0 %v1486
        %1495 = vmatprep.subr.bf16.mxu0 0
        %1496 = vmatpush1.bf16.msra.mxu0 0
        %1497 = vmatprep.subr.bf16.mxu0 0
        %1498 = vmatpush1.bf16.msra.mxu0 0
        %1499 = vmatprep.subr.bf16.mxu0 0
        %1500 = vmatpush1.bf16.msra.mxu0 0
        %1501 = vmatprep.subr.bf16.mxu0 0
        %1502 = vmatpush1.bf16.msra.mxu0 0
        %1503 = vmatprep.subr.bf16.mxu0 0
        %1504 = vmatpush1.bf16.msra.mxu0 0
        %1505 = vmatprep.subr.bf16.mxu0 0
        %1506 = vmatpush1.bf16.msra.mxu0 0
        %1507 = vmatprep.subr.bf16.mxu0 0
        %1508 = vmatpush1.bf16.msra.mxu0 0
        %1509 = vmatprep.subr.bf16.mxu0 0
        %1510 = vmatpush1.bf16.msra.mxu0 0
        %1511 = vmatprep.subr.bf16.mxu0 0
        %1512 = vmatpush1.bf16.msra.mxu0 0
        %1513 = vmatprep.subr.bf16.mxu0 0
        %1514 = vmatpush1.bf16.msra.mxu0 0
        %1515 = vmatprep.subr.bf16.mxu0 0
        %1516 = vmatpush1.bf16.msra.mxu0 0
        %1517 = vmatprep.subr.bf16.mxu0 0
        %1518 = vmatpush1.bf16.msra.mxu0 0
        %1519 = vmatprep.subr.bf16.mxu0 0
        %1520 = vmatpush1.bf16.msra.mxu0 0
        %1521 = vmatprep.subr.bf16.mxu0 0
        %1522 = vmatpush1.bf16.msra.mxu0 0
        %1523 = vmatprep.mubr.bf16.mxu0 0
        %1524 = vmatmul.mubr.bf16.gmra.mrb[0].mxu0 %v1489
        %v1525 = vpop.f32.mrb[0].mxu0
        %v1526 = vadd.f32 0.0, %v1525
        %v1527 = vpop.f32.mrb[0].mxu0
        %v1528 = vpop.f32.mrb[0].mxu0
        %v1529 = vadd.f32 0.0, %v1528
        %v1530 = vpop.f32.mrb[0].mxu0
        %1531 = vdwg.mxu0
        %v1536 = vunpack.c.l.b16 %v1468
        %v1537 = vunpack.c.l.b16 %v1469
        %v1538 = vunpack.c.l.b16 %v1470
        %v1539 = vunpack.c.l.b16 %v1471
        %v1540 = vpack.c.b16 %v1537, %v1536
        %v1541 = vpack.c.b16 %v1539, %v1538
        %v1545 = vsel %vm913, %v1460, 0
        %1547 = vmatprep.subr.bf16.mxu0 0
        %1548 = vmatpush1.bf16.msra.mxu0 %v1540
        %1549 = vmatprep.subr.bf16.mxu0 0
        %1550 = vmatpush1.bf16.msra.mxu0 %v1541
        %1551 = vmatprep.subr.bf16.mxu0 0
        %1552 = vmatpush1.bf16.msra.mxu0 0
        %1553 = vmatprep.subr.bf16.mxu0 0
        %1554 = vmatpush1.bf16.msra.mxu0 0
        %1555 = vmatprep.subr.bf16.mxu0 0
        %1556 = vmatpush1.bf16.msra.mxu0 0
        %1557 = vmatprep.subr.bf16.mxu0 0
        %1558 = vmatpush1.bf16.msra.mxu0 0
        %1559 = vmatprep.subr.bf16.mxu0 0
        %1560 = vmatpush1.bf16.msra.mxu0 0
        %1561 = vmatprep.subr.bf16.mxu0 0
        %1562 = vmatpush1.bf16.msra.mxu0 0
        %1563 = vmatprep.subr.bf16.mxu0 0
        %1564 = vmatpush1.bf16.msra.mxu0 0
        %1565 = vmatprep.subr.bf16.mxu0 0
        %1566 = vmatpush1.bf16.msra.mxu0 0
        %1567 = vmatprep.subr.bf16.mxu0 0
        %1568 = vmatpush1.bf16.msra.mxu0 0
        %1569 = vmatprep.subr.bf16.mxu0 0
        %1570 = vmatpush1.bf16.msra.mxu0 0
        %1571 = vmatprep.subr.bf16.mxu0 0
        %1572 = vmatpush1.bf16.msra.mxu0 0
        %1573 = vmatprep.subr.bf16.mxu0 0
        %1574 = vmatpush1.bf16.msra.mxu0 0
        %1575 = vmatprep.subr.bf16.mxu0 0
        %1576 = vmatpush1.bf16.msra.mxu0 0
        %1577 = vmatprep.subr.bf16.mxu0 0
        %1578 = vmatpush1.bf16.msra.mxu0 0
        %1579 = vmatprep.mubr.bf16.mxu0 0
        %1580 = vmatmul.mubr.bf16.gmra.mrb[0].mxu0 %v1545
        %v1581 = vpop.f32.mrb[0].mxu0
        %v1582 = vadd.f32 %v1526, %v1581
        %v1583 = vpop.f32.mrb[0].mxu0
        %v1584 = vpop.f32.mrb[0].mxu0
        %v1585 = vadd.f32 %v1529, %v1584
        %v1586 = vpop.f32.mrb[0].mxu0
        %1587 = vdwg.mxu0
        %s1588 = scalar_lea.vmem [#allocation8], 32
        %v1589 = vld [vmem:[%s1588] sm:$0xf]
        %v1590 = vld [vmem:[%s1588 + $0x4] sm:$0xf]
        %v1591 = vld [vmem:[%s1588 + $0x8] sm:$0xf]
        %v1592 = vld [vmem:[%s1588 + $0xc] sm:$0xf]
        %v1597 = vunpack.c.l.b16 %v1589
        %v1598 = vunpack.c.l.b16 %v1590
        %v1599 = vunpack.c.l.b16 %v1591
        %v1600 = vunpack.c.l.b16 %v1592
        %v1601 = vpack.c.b16 %v1598, %v1597
        %v1602 = vpack.c.b16 %v1600, %v1599
        %v1606 = vsel %vm913, %v1467, 0
        %1608 = vmatprep.subr.bf16.mxu0 0
        %1609 = vmatpush1.bf16.msra.mxu0 %v1601
        %1610 = vmatprep.subr.bf16.mxu0 0
        %1611 = vmatpush1.bf16.msra.mxu0 %v1602
        %1612 = vmatprep.subr.bf16.mxu0 0
        %1613 = vmatpush1.bf16.msra.mxu0 0
        %1614 = vmatprep.subr.bf16.mxu0 0
        %1615 = vmatpush1.bf16.msra.mxu0 0
        %1616 = vmatprep.subr.bf16.mxu0 0
        %1617 = vmatpush1.bf16.msra.mxu0 0
        %1618 = vmatprep.subr.bf16.mxu0 0
        %1619 = vmatpush1.bf16.msra.mxu0 0
        %1620 = vmatprep.subr.bf16.mxu0 0
        %1621 = vmatpush1.bf16.msra.mxu0 0
        %1622 = vmatprep.subr.bf16.mxu0 0
        %1623 = vmatpush1.bf16.msra.mxu0 0
        %1624 = vmatprep.subr.bf16.mxu0 0
        %1625 = vmatpush1.bf16.msra.mxu0 0
        %1626 = vmatprep.subr.bf16.mxu0 0
        %1627 = vmatpush1.bf16.msra.mxu0 0
        %1628 = vmatprep.subr.bf16.mxu0 0
        %1629 = vmatpush1.bf16.msra.mxu0 0
        %1630 = vmatprep.subr.bf16.mxu0 0
        %1631 = vmatpush1.bf16.msra.mxu0 0
        %1632 = vmatprep.subr.bf16.mxu0 0
        %1633 = vmatpush1.bf16.msra.mxu0 0
        %1634 = vmatprep.subr.bf16.mxu0 0
        %1635 = vmatpush1.bf16.msra.mxu0 0
        %1636 = vmatprep.subr.bf16.mxu0 0
        %1637 = vmatpush1.bf16.msra.mxu0 0
        %1638 = vmatprep.subr.bf16.mxu0 0
        %1639 = vmatpush1.bf16.msra.mxu0 0
        %1640 = vmatprep.mubr.bf16.mxu0 0
        %1641 = vmatmul.mubr.bf16.gmra.mrb[0].mxu0 %v1606
        %v1642 = vpop.f32.mrb[0].mxu0
        %v1643 = vadd.f32 0.0, %v1642
        %v1644 = vpop.f32.mrb[0].mxu0
        %v1645 = vpop.f32.mrb[0].mxu0
        %v1646 = vadd.f32 0.0, %v1645
        %v1647 = vpop.f32.mrb[0].mxu0
        %1648 = vdwg.mxu0
        %v1649 = vadd.f32 %v1582, %v1643
        %v1650 = vadd.f32 %v1585, %v1646
        %v1651 = vlaneseq
        %v1652 = vshrl.u32 %v1651, 7
        %v1653 = vsub.s32 0, %v1652
        %v1654 = vrot.slane %v1451, %v1653
        %v1655 = vadd.f32 %v1649, %v1654
        %v1656 = vadd.f32 %v1650, %v1654
        %v1657 = vmax.f32 %v1655, 0.0
        %v1658 = vmax.f32 %v1656, 0.0
        %v1659 = vsel %vm913, %v1657, 0.0
        %1660 = vadd.xlane.f32.xlu0 %v1659
        %v1661 = vpop.xlane.xlu0 %1660
        %v1662 = vsel %vm913, %v1658, 0.0
        %1663 = vadd.xlane.f32.xlu0 %v1662
        %v1664 = vpop.xlane.xlu0 %1663
        %v1665 = vmul.f32 %v1661, %v1081
        %v1666 = vmul.f32 %v1664, %v1081
        %v1667 = vmul.f32 %v1657, %v1657
        %v1668 = vmul.f32 %v1658, %v1658
        %v1669 = vsel %vm913, %v1667, 0.0
        %1670 = vadd.xlane.f32.xlu0 %v1669
        %v1671 = vpop.xlane.xlu0 %1670
        %v1672 = vsel %vm913, %v1668, 0.0
        %1673 = vadd.xlane.f32.xlu0 %v1672
        %v1674 = vpop.xlane.xlu0 %1673
        %v1675 = vmul.f32 %v1671, %v1081
        %v1676 = vmul.f32 %v1674, %v1081
        %v1677 = vmul.f32 %v1665, %v1665
        %v1678 = vmul.f32 %v1666, %v1666
        %v1679 = vsub.f32 %v1675, %v1677
        %v1680 = vsub.f32 %v1676, %v1678
        %v1681 = vmax.f32 %v1679, 0.0
        %v1682 = vmax.f32 %v1680, 0.0
        %v1683 = vsub.f32 %v1657, %v1665
        %v1684 = vsub.f32 %v1658, %v1666
        %v1685 = vadd.f32 %v1681, 1e-05
        %v1686 = vadd.f32 %v1682, 1e-05
        %v1687 = vrsqrt.pop %v1685
        %v1688 = vrsqrt.pop %v1686
        %v1689 = vmul.f32 %v1683, %v1687
        %v1690 = vmul.f32 %v1684, %v1688
        %v1691 = vlaneseq
        %v1692 = vshrl.u32 %v1691, 7
        %v1693 = vsub.s32 1, %v1692
        %v1694 = vrot.slane %v1451, %v1693
        %v1695 = vmul.f32 %v1689, %v1694
        %v1696 = vmul.f32 %v1690, %v1694
        %v1697 = vlaneseq
        %v1698 = vshrl.u32 %v1697, 7
        %v1699 = vsub.s32 2, %v1698
        %v1700 = vrot.slane %v1451, %v1699
        %v1701 = vadd.f32 %v1695, %v1700
        %v1702 = vadd.f32 %v1696, %v1700
        %v1703 = vpack.c.bf16 %v1702, %v1701
        %v1705 = vshrl.u32 %v1703, 16
        %v1707 = vrot.slane %v1705, 7
        %v1708 = vshll.u32 %v1703, 16
        %v1710 = vor.u32 %v1707, %v1708
        %v1712 = vsel %vm883, 0, %v1710
        %v1713 = vrot.slane %v1708, 1
        %v1714 = vor.u32 %v1705, %v1713
        %v1716 = vsel %vm1466, %v1714, 0
        %v1717 = vld [vmem:[%s9] sm:$0xf]
        %v1718 = vld [vmem:[%s9 + $0x4] sm:$0xf]
        %v1719 = vld [vmem:[%s9 + $0x8] sm:$0xf]
        %v1720 = vld [vmem:[%s9 + $0xc] sm:$0xf]
        %s1721 = scalar_lea.vmem %s9, 16
        %v1722 = vld [vmem:[%s1721] sm:$0xf]
        %v1723 = vld [vmem:[%s1721 + $0x4] sm:$0xf]
        %v1724 = vld [vmem:[%s1721 + $0x8] sm:$0xf]
        %v1725 = vld [vmem:[%s1721 + $0xc] sm:$0xf]
        %v1730 = vunpack.c.l.b16 %v1722
        %v1731 = vunpack.c.l.b16 %v1723
        %v1732 = vunpack.c.l.b16 %v1724
        %v1733 = vunpack.c.l.b16 %v1725
        %v1734 = vpack.c.b16 %v1731, %v1730
        %v1735 = vpack.c.b16 %v1733, %v1732
        %v1738 = vsel %vm913, %v1703, 0
        %1740 = vmatprep.subr.bf16.mxu0 0
        %1741 = vmatpush1.bf16.msra.mxu0 %v1734
        %1742 = vmatprep.subr.bf16.mxu0 0
        %1743 = vmatpush1.bf16.msra.mxu0 %v1735
        %1744 = vmatprep.subr.bf16.mxu0 0
        %1745 = vmatpush1.bf16.msra.mxu0 0
        %1746 = vmatprep.subr.bf16.mxu0 0
        %1747 = vmatpush1.bf16.msra.mxu0 0
        %1748 = vmatprep.subr.bf16.mxu0 0
        %1749 = vmatpush1.bf16.msra.mxu0 0
        %1750 = vmatprep.subr.bf16.mxu0 0
        %1751 = vmatpush1.bf16.msra.mxu0 0
        %1752 = vmatprep.subr.bf16.mxu0 0
        %1753 = vmatpush1.bf16.msra.mxu0 0
        %1754 = vmatprep.subr.bf16.mxu0 0
        %1755 = vmatpush1.bf16.msra.mxu0 0
        %1756 = vmatprep.subr.bf16.mxu0 0
        %1757 = vmatpush1.bf16.msra.mxu0 0
        %1758 = vmatprep.subr.bf16.mxu0 0
        %1759 = vmatpush1.bf16.msra.mxu0 0
        %1760 = vmatprep.subr.bf16.mxu0 0
        %1761 = vmatpush1.bf16.msra.mxu0 0
        %1762 = vmatprep.subr.bf16.mxu0 0
        %1763 = vmatpush1.bf16.msra.mxu0 0
        %1764 = vmatprep.subr.bf16.mxu0 0
        %1765 = vmatpush1.bf16.msra.mxu0 0
        %1766 = vmatprep.subr.bf16.mxu0 0
        %1767 = vmatpush1.bf16.msra.mxu0 0
        %1768 = vmatprep.subr.bf16.mxu0 0
        %1769 = vmatpush1.bf16.msra.mxu0 0
        %1770 = vmatprep.subr.bf16.mxu0 0
        %1771 = vmatpush1.bf16.msra.mxu0 0
        %1772 = vmatprep.mubr.bf16.mxu0 0
        %1773 = vmatmul.mubr.bf16.gmra.mrb[0].mxu0 %v1738
        %v1774 = vpop.f32.mrb[0].mxu0
        %v1775 = vadd.f32 0.0, %v1774
        %v1776 = vpop.f32.mrb[0].mxu0
        %v1777 = vpop.f32.mrb[0].mxu0
        %v1778 = vadd.f32 0.0, %v1777
        %v1779 = vpop.f32.mrb[0].mxu0
        %1780 = vdwg.mxu0
        %v1785 = vunpack.c.l.b16 %v1717
        %v1786 = vunpack.c.l.b16 %v1718
        %v1787 = vunpack.c.l.b16 %v1719
        %v1788 = vunpack.c.l.b16 %v1720
        %v1789 = vpack.c.b16 %v1786, %v1785
        %v1790 = vpack.c.b16 %v1788, %v1787
        %v1794 = vsel %vm913, %v1712, 0
        %1796 = vmatprep.subr.bf16.mxu0 0
        %1797 = vmatpush1.bf16.msra.mxu0 %v1789
        %1798 = vmatprep.subr.bf16.mxu0 0
        %1799 = vmatpush1.bf16.msra.mxu0 %v1790
        %1800 = vmatprep.subr.bf16.mxu0 0
        %1801 = vmatpush1.bf16.msra.mxu0 0
        %1802 = vmatprep.subr.bf16.mxu0 0
        %1803 = vmatpush1.bf16.msra.mxu0 0
        %1804 = vmatprep.subr.bf16.mxu0 0
        %1805 = vmatpush1.bf16.msra.mxu0 0
        %1806 = vmatprep.subr.bf16.mxu0 0
        %1807 = vmatpush1.bf16.msra.mxu0 0
        %1808 = vmatprep.subr.bf16.mxu0 0
        %1809 = vmatpush1.bf16.msra.mxu0 0
        %1810 = vmatprep.subr.bf16.mxu0 0
        %1811 = vmatpush1.bf16.msra.mxu0 0
        %1812 = vmatprep.subr.bf16.mxu0 0
        %1813 = vmatpush1.bf16.msra.mxu0 0
        %1814 = vmatprep.subr.bf16.mxu0 0
        %1815 = vmatpush1.bf16.msra.mxu0 0
        %1816 = vmatprep.subr.bf16.mxu0 0
        %1817 = vmatpush1.bf16.msra.mxu0 0
        %1818 = vmatprep.subr.bf16.mxu0 0
        %1819 = vmatpush1.bf16.msra.mxu0 0
        %1820 = vmatprep.subr.bf16.mxu0 0
        %1821 = vmatpush1.bf16.msra.mxu0 0
        %1822 = vmatprep.subr.bf16.mxu0 0
        %1823 = vmatpush1.bf16.msra.mxu0 0
        %1824 = vmatprep.subr.bf16.mxu0 0
        %1825 = vmatpush1.bf16.msra.mxu0 0
        %1826 = vmatprep.subr.bf16.mxu0 0
        %1827 = vmatpush1.bf16.msra.mxu0 0
        %1828 = vmatprep.mubr.bf16.mxu0 0
        %1829 = vmatmul.mubr.bf16.gmra.mrb[0].mxu0 %v1794
        %v1830 = vpop.f32.mrb[0].mxu0
        %v1831 = vadd.f32 %v1775, %v1830
        %v1832 = vpop.f32.mrb[0].mxu0
        %v1833 = vpop.f32.mrb[0].mxu0
        %v1834 = vadd.f32 %v1778, %v1833
        %v1835 = vpop.f32.mrb[0].mxu0
        %1836 = vdwg.mxu0
        %s1837 = scalar_lea.vmem %s9, 32
        %v1838 = vld [vmem:[%s1837] sm:$0xf]
        %v1839 = vld [vmem:[%s1837 + $0x4] sm:$0xf]
        %v1840 = vld [vmem:[%s1837 + $0x8] sm:$0xf]
        %v1841 = vld [vmem:[%s1837 + $0xc] sm:$0xf]
        %v1846 = vunpack.c.l.b16 %v1838
        %v1847 = vunpack.c.l.b16 %v1839
        %v1848 = vunpack.c.l.b16 %v1840
        %v1849 = vunpack.c.l.b16 %v1841
        %v1850 = vpack.c.b16 %v1847, %v1846
        %v1851 = vpack.c.b16 %v1849, %v1848
        %v1855 = vsel %vm913, %v1716, 0
        %1857 = vmatprep.subr.bf16.mxu0 0
        %1858 = vmatpush1.bf16.msra.mxu0 %v1850
        %1859 = vmatprep.subr.bf16.mxu0 0
        %1860 = vmatpush1.bf16.msra.mxu0 %v1851
        %1861 = vmatprep.subr.bf16.mxu0 0
        %1862 = vmatpush1.bf16.msra.mxu0 0
        %1863 = vmatprep.subr.bf16.mxu0 0
        %1864 = vmatpush1.bf16.msra.mxu0 0
        %1865 = vmatprep.subr.bf16.mxu0 0
        %1866 = vmatpush1.bf16.msra.mxu0 0
        %1867 = vmatprep.subr.bf16.mxu0 0
        %1868 = vmatpush1.bf16.msra.mxu0 0
        %1869 = vmatprep.subr.bf16.mxu0 0
        %1870 = vmatpush1.bf16.msra.mxu0 0
        %1871 = vmatprep.subr.bf16.mxu0 0
        %1872 = vmatpush1.bf16.msra.mxu0 0
        %1873 = vmatprep.subr.bf16.mxu0 0
        %1874 = vmatpush1.bf16.msra.mxu0 0
        %1875 = vmatprep.subr.bf16.mxu0 0
        %1876 = vmatpush1.bf16.msra.mxu0 0
        %1877 = vmatprep.subr.bf16.mxu0 0
        %1878 = vmatpush1.bf16.msra.mxu0 0
        %1879 = vmatprep.subr.bf16.mxu0 0
        %1880 = vmatpush1.bf16.msra.mxu0 0
        %1881 = vmatprep.subr.bf16.mxu0 0
        %1882 = vmatpush1.bf16.msra.mxu0 0
        %1883 = vmatprep.subr.bf16.mxu0 0
        %1884 = vmatpush1.bf16.msra.mxu0 0
        %1885 = vmatprep.subr.bf16.mxu0 0
        %1886 = vmatpush1.bf16.msra.mxu0 0
        %1887 = vmatprep.subr.bf16.mxu0 0
        %1888 = vmatpush1.bf16.msra.mxu0 0
        %1889 = vmatprep.mubr.bf16.mxu0 0
        %1890 = vmatmul.mubr.bf16.gmra.mrb[0].mxu0 %v1855
        %v1891 = vpop.f32.mrb[0].mxu0
        %v1892 = vadd.f32 0.0, %v1891
        %v1893 = vpop.f32.mrb[0].mxu0
        %v1894 = vpop.f32.mrb[0].mxu0
        %v1895 = vadd.f32 0.0, %v1894
        %v1896 = vpop.f32.mrb[0].mxu0
        %1897 = vdwg.mxu0
        %v1898 = vadd.f32 %v1831, %v1892
        %v1899 = vadd.f32 %v1834, %v1895
        %v1900 = vlaneseq
        %v1901 = vshrl.u32 %v1900, 7
        %v1902 = vsub.s32 3, %v1901
        %v1903 = vrot.slane %v1451, %v1902
        %v1904 = vadd.f32 %v1898, %v1903
        %v1905 = vadd.f32 %v1899, %v1903
        %v1906 = vmax.f32 %v1904, 0.0
        %v1907 = vmax.f32 %v1905, 0.0
        %v1908 = vsel %vm913, %v1906, 0.0
        %1909 = vadd.xlane.f32.xlu0 %v1908
        %v1910 = vpop.xlane.xlu0 %1909
        %v1911 = vsel %vm913, %v1907, 0.0
        %1912 = vadd.xlane.f32.xlu0 %v1911
        %v1913 = vpop.xlane.xlu0 %1912
        %v1914 = vmul.f32 %v1910, %v1081
        %v1915 = vmul.f32 %v1913, %v1081
        %v1916 = vmul.f32 %v1906, %v1906
        %v1917 = vmul.f32 %v1907, %v1907
        %v1918 = vsel %vm913, %v1916, 0.0
        %1919 = vadd.xlane.f32.xlu0 %v1918
        %v1920 = vpop.xlane.xlu0 %1919
        %v1921 = vsel %vm913, %v1917, 0.0
        %1922 = vadd.xlane.f32.xlu0 %v1921
        %v1923 = vpop.xlane.xlu0 %1922
        %v1924 = vmul.f32 %v1920, %v1081
        %v1925 = vmul.f32 %v1923, %v1081
        %v1926 = vmul.f32 %v1914, %v1914
        %v1927 = vmul.f32 %v1915, %v1915
        %v1928 = vsub.f32 %v1924, %v1926
        %v1929 = vsub.f32 %v1925, %v1927
        %v1930 = vmax.f32 %v1928, 0.0
        %v1931 = vmax.f32 %v1929, 0.0
        %v1932 = vsub.f32 %v1906, %v1914
        %v1933 = vsub.f32 %v1907, %v1915
        %v1934 = vadd.f32 %v1930, 1e-05
        %v1935 = vadd.f32 %v1931, 1e-05
        %v1936 = vrsqrt.pop %v1934
        %v1937 = vrsqrt.pop %v1935
        %v1938 = vmul.f32 %v1932, %v1936
        %v1939 = vmul.f32 %v1933, %v1937
        %v1940 = vlaneseq
        %v1941 = vshrl.u32 %v1940, 7
        %v1942 = vsub.s32 4, %v1941
        %v1943 = vrot.slane %v1451, %v1942
        %v1944 = vmul.f32 %v1938, %v1943
        %v1945 = vmul.f32 %v1939, %v1943
        %v1946 = vlaneseq
        %v1947 = vshrl.u32 %v1946, 7
        %v1948 = vsub.s32 5, %v1947
        %v1949 = vrot.slane %v1451, %v1948
        %v1950 = vadd.f32 %v1944, %v1949
        %v1951 = vadd.f32 %v1945, %v1949
        %v1952 = vlaneseq
        %v1953 = vshrl.u32 %v1952, 7
        %v1954 = vsub.s32 6, %v1953
        %v1955 = vrot.slane %v1451, %v1954
        %v1956 = vmul.f32 %v1950, %v1955
        %v1957 = vmul.f32 %v1951, %v1955
        %v1958 = vsel %vm913, %v1956, 0.0
        %1959 = vadd.xlane.f32.xlu0 %v1958
        %v1960 = vpop.xlane.xlu0 %1959
        %v1961 = vsel %vm913, %v1957, 0.0
        %1962 = vadd.xlane.f32.xlu0 %v1961
        %v1963 = vpop.xlane.xlu0 %1962
        %v1964 = vlaneseq
        %v1965 = vshrl.u32 %v1964, 7
        %v1966 = vsub.s32 7, %v1965
        %v1967 = vrot.slane %v1451, %v1966
        %v1968 = vadd.f32 %v1960, %v1967
        %v1969 = vadd.f32 %v1963, %v1967
        %1970 = vxpose.xlu0.b32.start [1/16] %v1968, 128
        %1971 = vxpose.xlu0.b32.cont [2/16] %v1969, 128
        %1972 = vxpose.xlu0.b32.cont [3/16] 0.0, 128
        %1973 = vxpose.xlu0.b32.cont [4/16] 0.0, 128
        %1974 = vxpose.xlu0.b32.cont [5/16] 0.0, 128
        %1975 = vxpose.xlu0.b32.cont [6/16] 0.0, 128
        %1976 = vxpose.xlu0.b32.cont [7/16] 0.0, 128
        %1977 = vxpose.xlu0.b32.cont [8/16] 0.0, 128
        %1978 = vxpose.xlu0.b32.cont [9/16] 0.0, 128
        %1979 = vxpose.xlu0.b32.cont [10/16] 0.0, 128
        %1980 = vxpose.xlu0.b32.cont [11/16] 0.0, 128
        %1981 = vxpose.xlu0.b32.cont [12/16] 0.0, 128
        %1982 = vxpose.xlu0.b32.cont [13/16] 0.0, 128
        %1983 = vxpose.xlu0.b32.cont [14/16] 0.0, 128
        %1984 = vxpose.xlu0.b32.cont [15/16] 0.0, 128
        %1985 = vxpose.xlu0.b32.end [16/16] 0.0, 128
        %v1986 = vpop.trf.xlu0
        %v1987 = vpop.trf.xlu0
        %v1988 = vpop.trf.xlu0
        %v1989 = vpop.trf.xlu0
        %v1990 = vpop.trf.xlu0
        %v1991 = vpop.trf.xlu0
        %v1992 = vpop.trf.xlu0
        %v1993 = vpop.trf.xlu0
        %v1994 = vpop.trf.xlu0
        %v1995 = vpop.trf.xlu0
        %v1996 = vpop.trf.xlu0
        %v1997 = vpop.trf.xlu0
        %v1998 = vpop.trf.xlu0
        %v1999 = vpop.trf.xlu0
        %v2000 = vpop.trf.xlu0
        %v2001 = vpop.trf.xlu0
        %vm2002 = vcmask 122880
        %2003 = vst.msk [vmem:[%s846] sm:$0x1] %vm2002, %v1986
        %v2004 = vld [vmem:[%s865] sm:$0x1]
        %2005 = vxpose.xlu0.b32.start [1/16] %v2004, 128
        %2006 = vxpose.xlu0.b32.cont [2/16] 0.0, 128
        %2007 = vxpose.xlu0.b32.cont [3/16] 0.0, 128
        %2008 = vxpose.xlu0.b32.cont [4/16] 0.0, 128
        %2009 = vxpose.xlu0.b32.cont [5/16] 0.0, 128
        %2010 = vxpose.xlu0.b32.cont [6/16] 0.0, 128
        %2011 = vxpose.xlu0.b32.cont [7/16] 0.0, 128
        %2012 = vxpose.xlu0.b32.cont [8/16] 0.0, 128
        %2013 = vxpose.xlu0.b32.cont [9/16] 0.0, 128
        %2014 = vxpose.xlu0.b32.cont [10/16] 0.0, 128
        %2015 = vxpose.xlu0.b32.cont [11/16] 0.0, 128
        %2016 = vxpose.xlu0.b32.cont [12/16] 0.0, 128
        %2017 = vxpose.xlu0.b32.cont [13/16] 0.0, 128
        %2018 = vxpose.xlu0.b32.cont [14/16] 0.0, 128
        %2019 = vxpose.xlu0.b32.cont [15/16] 0.0, 128
        %2020 = vxpose.xlu0.b32.end [16/16] 0.0, 128
        %v2021 = vpop.trf.xlu0
        %v2022 = vpop.trf.xlu0
        %v2023 = vpop.trf.xlu0
        %v2024 = vpop.trf.xlu0
        %v2025 = vpop.trf.xlu0
        %v2026 = vpop.trf.xlu0
        %v2027 = vpop.trf.xlu0
        %v2028 = vpop.trf.xlu0
        %v2029 = vpop.trf.xlu0
        %v2030 = vpop.trf.xlu0
        %v2031 = vpop.trf.xlu0
        %v2032 = vpop.trf.xlu0
        %v2033 = vpop.trf.xlu0
        %v2034 = vpop.trf.xlu0
        %v2035 = vpop.trf.xlu0
        %v2036 = vpop.trf.xlu0
        %v2037 = vld [vmem:[#allocation16] sm:$0x1]
        %v2039 = vlaneseq
        %v2040 = vshrl.u32 %v2039, 7
        %v2041 = vsub.s32 0, %v2040
        %v2042 = vrot.slane %v2037, %v2041
        %2045 = vset.pattern.permute.xlu0 0
        %2046 = vperm.xlu0 %2045, %v2021
        %v2047 = vpop.permute.xlu0 %2046
        %2050 = vset.pattern.permute.xlu0 0
        %2051 = vperm.xlu0 %2050, %v2022
        %v2052 = vpop.permute.xlu0 %2051
        %vm2054 = vcmp.lt.f32.partialorder %v2042, %v2047
        %vm2055 = vcmp.lt.f32.partialorder %v2042, %v2052
        %v2056 = vsel %vm2054, 1, 0
        %v2057 = vsel %vm2055, 1, 0
        %vm2058 = vcmask 56320
        %v2059 = vsel %vm2058, %v2056, 0
        %v2060 = vand.u32 %v2059, 65535
        %v2061 = vshrl.u32 %v2059, 16
        %v2062 = vcvt.s32.f32 %v2060
        %v2063 = vcvt.s32.f32 %v2061
        %2064 = vadd.xlane.f32.xlu0 %v2062
        %v2065 = vpop.xlane.xlu0 %2064
        %2066 = vadd.xlane.f32.xlu0 %v2063
        %v2067 = vpop.xlane.xlu0 %2066
        %v2068 = vcvt.f32.s32 %v2065
        %v2069 = vcvt.f32.s32 %v2067
        %v2070 = vshll.u32 %v2069, 16
        %v2071 = vadd.s32 %v2070, %v2068
        %v2072 = vsel %vm2058, %v2057, 0
        %v2073 = vand.u32 %v2072, 65535
        %v2074 = vshrl.u32 %v2072, 16
        %v2075 = vcvt.s32.f32 %v2073
        %v2076 = vcvt.s32.f32 %v2074
        %2077 = vadd.xlane.f32.xlu0 %v2075
        %v2078 = vpop.xlane.xlu0 %2077
        %2079 = vadd.xlane.f32.xlu0 %v2076
        %v2080 = vpop.xlane.xlu0 %2079
        %v2081 = vcvt.f32.s32 %v2078
        %v2082 = vcvt.f32.s32 %v2080
        %v2083 = vshll.u32 %v2082, 16
        %v2084 = vadd.s32 %v2083, %v2081
        %v2085 = vlaneseq
        %v2086 = vand.u32 %v2085, 127
        %vm2087 = vcmp.eq.s32.totalorder %v2071, %v2086
        %vm2088 = vcmp.eq.s32.totalorder %v2084, %v2086
        %v2089 = vsel %vm2087, 1, 0
        %v2090 = vsel %vm2088, 1, 0
        %v2091 = vcvt.s32.f32 %v2089
        %v2092 = vcvt.s32.f32 %v2090
        %v2093 = vpack.c.bf16 %v2092, %v2091
        %v2094 = vld [vmem:[#allocation17] sm:$0xf]
        %v2096 = vsel %vm1402, %v2093, 0
        %v2099 = vsel %vm1406, %v2094, 0
        %2101 = vmatprep.subr.bf16.mxu0 0
        %2102 = vmatpush1.bf16.msra.mxu0 %v2099
        %2103 = vmatprep.subr.bf16.mxu0 0
        %2104 = vmatpush1.bf16.msra.mxu0 0
        %2105 = vmatprep.subr.bf16.mxu0 0
        %2106 = vmatpush1.bf16.msra.mxu0 0
        %2107 = vmatprep.subr.bf16.mxu0 0
        %2108 = vmatpush1.bf16.msra.mxu0 0
        %2109 = vmatprep.subr.bf16.mxu0 0
        %2110 = vmatpush1.bf16.msra.mxu0 0
        %2111 = vmatprep.subr.bf16.mxu0 0
        %2112 = vmatpush1.bf16.msra.mxu0 0
        %2113 = vmatprep.subr.bf16.mxu0 0
        %2114 = vmatpush1.bf16.msra.mxu0 0
        %2115 = vmatprep.subr.bf16.mxu0 0
        %2116 = vmatpush1.bf16.msra.mxu0 0
        %2117 = vmatprep.subr.bf16.mxu0 0
        %2118 = vmatpush1.bf16.msra.mxu0 0
        %2119 = vmatprep.subr.bf16.mxu0 0
        %2120 = vmatpush1.bf16.msra.mxu0 0
        %2121 = vmatprep.subr.bf16.mxu0 0
        %2122 = vmatpush1.bf16.msra.mxu0 0
        %2123 = vmatprep.subr.bf16.mxu0 0
        %2124 = vmatpush1.bf16.msra.mxu0 0
        %2125 = vmatprep.subr.bf16.mxu0 0
        %2126 = vmatpush1.bf16.msra.mxu0 0
        %2127 = vmatprep.subr.bf16.mxu0 0
        %2128 = vmatpush1.bf16.msra.mxu0 0
        %2129 = vmatprep.subr.bf16.mxu0 0
        %2130 = vmatpush1.bf16.msra.mxu0 0
        %2131 = vmatprep.subr.bf16.mxu0 0
        %2132 = vmatpush1.bf16.msra.mxu0 0
        %2133 = vmatprep.mubr.bf16.mxu0 0
        %2134 = vmatmul.mubr.bf16.gmra.mrb[0].mxu0 %v2096
        %v2135 = vpop.f32.mrb[0].mxu0
        %v2136 = vadd.f32 0.0, %v2135
        %v2137 = vpop.f32.mrb[0].mxu0
        %v2138 = vpop.f32.mrb[0].mxu0
        %v2139 = vadd.f32 0.0, %v2138
        %v2140 = vpop.f32.mrb[0].mxu0
        %2141 = vdwg.mxu0
        %v2142 = vadd.f32 %v1444, %v2136
        %v2143 = vadd.f32 %v1447, %v2139
        %v2144 = vpack.c.bf16 %v2143, %v2142
        %v2145 = vld [vmem:[#allocation14] sm:$0xff]
        %v2147 = vshrl.u32 %v2144, 16
        %v2149 = vrot.slane %v2147, 7
        %v2150 = vshll.u32 %v2144, 16
        %v2152 = vor.u32 %v2149, %v2150
        %v2154 = vsel %vm883, 0, %v2152
        %v2155 = vrot.slane %v2150, 1
        %v2156 = vor.u32 %v2147, %v2155
        %v2158 = vsel %vm1466, %v2156, 0
        %v2159 = vld [vmem:[#allocation11] sm:$0xf]
        %v2160 = vld [vmem:[#allocation11 + $0x4] sm:$0xf]
        %v2161 = vld [vmem:[#allocation11 + $0x8] sm:$0xf]
        %v2162 = vld [vmem:[#allocation11 + $0xc] sm:$0xf]
        %s2163 = scalar_lea.vmem [#allocation11], 16
        %v2164 = vld [vmem:[%s2163] sm:$0xf]
        %v2165 = vld [vmem:[%s2163 + $0x4] sm:$0xf]
        %v2166 = vld [vmem:[%s2163 + $0x8] sm:$0xf]
        %v2167 = vld [vmem:[%s2163 + $0xc] sm:$0xf]
        %v2172 = vunpack.c.l.b16 %v2164
        %v2173 = vunpack.c.l.b16 %v2165
        %v2174 = vunpack.c.l.b16 %v2166
        %v2175 = vunpack.c.l.b16 %v2167
        %v2176 = vpack.c.b16 %v2173, %v2172
        %v2177 = vpack.c.b16 %v2175, %v2174
        %v2180 = vsel %vm913, %v2144, 0
        %2182 = vmatprep.subr.bf16.mxu0 0
        %2183 = vmatpush1.bf16.msra.mxu0 %v2176
        %2184 = vmatprep.subr.bf16.mxu0 0
        %2185 = vmatpush1.bf16.msra.mxu0 %v2177
        %2186 = vmatprep.subr.bf16.mxu0 0
        %2187 = vmatpush1.bf16.msra.mxu0 0
        %2188 = vmatprep.subr.bf16.mxu0 0
        %2189 = vmatpush1.bf16.msra.mxu0 0
        %2190 = vmatprep.subr.bf16.mxu0 0
        %2191 = vmatpush1.bf16.msra.mxu0 0
        %2192 = vmatprep.subr.bf16.mxu0 0
        %2193 = vmatpush1.bf16.msra.mxu0 0
        %2194 = vmatprep.subr.bf16.mxu0 0
        %2195 = vmatpush1.bf16.msra.mxu0 0
        %2196 = vmatprep.subr.bf16.mxu0 0
        %2197 = vmatpush1.bf16.msra.mxu0 0
        %2198 = vmatprep.subr.bf16.mxu0 0
        %2199 = vmatpush1.bf16.msra.mxu0 0
        %2200 = vmatprep.subr.bf16.mxu0 0
        %2201 = vmatpush1.bf16.msra.mxu0 0
        %2202 = vmatprep.subr.bf16.mxu0 0
        %2203 = vmatpush1.bf16.msra.mxu0 0
        %2204 = vmatprep.subr.bf16.mxu0 0
        %2205 = vmatpush1.bf16.msra.mxu0 0
        %2206 = vmatprep.subr.bf16.mxu0 0
        %2207 = vmatpush1.bf16.msra.mxu0 0
        %2208 = vmatprep.subr.bf16.mxu0 0
        %2209 = vmatpush1.bf16.msra.mxu0 0
        %2210 = vmatprep.subr.bf16.mxu0 0
        %2211 = vmatpush1.bf16.msra.mxu0 0
        %2212 = vmatprep.subr.bf16.mxu0 0
        %2213 = vmatpush1.bf16.msra.mxu0 0
        %2214 = vmatprep.mubr.bf16.mxu0 0
        %2215 = vmatmul.mubr.bf16.gmra.mrb[0].mxu0 %v2180
        %v2216 = vpop.f32.mrb[0].mxu0
        %v2217 = vadd.f32 0.0, %v2216
        %v2218 = vpop.f32.mrb[0].mxu0
        %v2219 = vpop.f32.mrb[0].mxu0
        %v2220 = vadd.f32 0.0, %v2219
        %v2221 = vpop.f32.mrb[0].mxu0
        %2222 = vdwg.mxu0
        %v2227 = vunpack.c.l.b16 %v2159
        %v2228 = vunpack.c.l.b16 %v2160
        %v2229 = vunpack.c.l.b16 %v2161
        %v2230 = vunpack.c.l.b16 %v2162
        %v2231 = vpack.c.b16 %v2228, %v2227
        %v2232 = vpack.c.b16 %v2230, %v2229
        %v2236 = vsel %vm913, %v2154, 0
        %2238 = vmatprep.subr.bf16.mxu0 0
        %2239 = vmatpush1.bf16.msra.mxu0 %v2231
        %2240 = vmatprep.subr.bf16.mxu0 0
        %2241 = vmatpush1.bf16.msra.mxu0 %v2232
        %2242 = vmatprep.subr.bf16.mxu0 0
        %2243 = vmatpush1.bf16.msra.mxu0 0
        %2244 = vmatprep.subr.bf16.mxu0 0
        %2245 = vmatpush1.bf16.msra.mxu0 0
        %2246 = vmatprep.subr.bf16.mxu0 0
        %2247 = vmatpush1.bf16.msra.mxu0 0
        %2248 = vmatprep.subr.bf16.mxu0 0
        %2249 = vmatpush1.bf16.msra.mxu0 0
        %2250 = vmatprep.subr.bf16.mxu0 0
        %2251 = vmatpush1.bf16.msra.mxu0 0
        %2252 = vmatprep.subr.bf16.mxu0 0
        %2253 = vmatpush1.bf16.msra.mxu0 0
        %2254 = vmatprep.subr.bf16.mxu0 0
        %2255 = vmatpush1.bf16.msra.mxu0 0
        %2256 = vmatprep.subr.bf16.mxu0 0
        %2257 = vmatpush1.bf16.msra.mxu0 0
        %2258 = vmatprep.subr.bf16.mxu0 0
        %2259 = vmatpush1.bf16.msra.mxu0 0
        %2260 = vmatprep.subr.bf16.mxu0 0
        %2261 = vmatpush1.bf16.msra.mxu0 0
        %2262 = vmatprep.subr.bf16.mxu0 0
        %2263 = vmatpush1.bf16.msra.mxu0 0
        %2264 = vmatprep.subr.bf16.mxu0 0
        %2265 = vmatpush1.bf16.msra.mxu0 0
        %2266 = vmatprep.subr.bf16.mxu0 0
        %2267 = vmatpush1.bf16.msra.mxu0 0
        %2268 = vmatprep.subr.bf16.mxu0 0
        %2269 = vmatpush1.bf16.msra.mxu0 0
        %2270 = vmatprep.mubr.bf16.mxu0 0
        %2271 = vmatmul.mubr.bf16.gmra.mrb[0].mxu0 %v2236
        %v2272 = vpop.f32.mrb[0].mxu0
        %v2273 = vadd.f32 %v2217, %v2272
        %v2274 = vpop.f32.mrb[0].mxu0
        %v2275 = vpop.f32.mrb[0].mxu0
        %v2276 = vadd.f32 %v2220, %v2275
        %v2277 = vpop.f32.mrb[0].mxu0
        %2278 = vdwg.mxu0
        %s2279 = scalar_lea.vmem [#allocation11], 32
        %v2280 = vld [vmem:[%s2279] sm:$0xf]
        %v2281 = vld [vmem:[%s2279 + $0x4] sm:$0xf]
        %v2282 = vld [vmem:[%s2279 + $0x8] sm:$0xf]
        %v2283 = vld [vmem:[%s2279 + $0xc] sm:$0xf]
        %v2288 = vunpack.c.l.b16 %v2280
        %v2289 = vunpack.c.l.b16 %v2281
        %v2290 = vunpack.c.l.b16 %v2282
        %v2291 = vunpack.c.l.b16 %v2283
        %v2292 = vpack.c.b16 %v2289, %v2288
        %v2293 = vpack.c.b16 %v2291, %v2290
        %v2297 = vsel %vm913, %v2158, 0
        %2299 = vmatprep.subr.bf16.mxu0 0
        %2300 = vmatpush1.bf16.msra.mxu0 %v2292
        %2301 = vmatprep.subr.bf16.mxu0 0
        %2302 = vmatpush1.bf16.msra.mxu0 %v2293
        %2303 = vmatprep.subr.bf16.mxu0 0
        %2304 = vmatpush1.bf16.msra.mxu0 0
        %2305 = vmatprep.subr.bf16.mxu0 0
        %2306 = vmatpush1.bf16.msra.mxu0 0
        %2307 = vmatprep.subr.bf16.mxu0 0
        %2308 = vmatpush1.bf16.msra.mxu0 0
        %2309 = vmatprep.subr.bf16.mxu0 0
        %2310 = vmatpush1.bf16.msra.mxu0 0
        %2311 = vmatprep.subr.bf16.mxu0 0
        %2312 = vmatpush1.bf16.msra.mxu0 0
        %2313 = vmatprep.subr.bf16.mxu0 0
        %2314 = vmatpush1.bf16.msra.mxu0 0
        %2315 = vmatprep.subr.bf16.mxu0 0
        %2316 = vmatpush1.bf16.msra.mxu0 0
        %2317 = vmatprep.subr.bf16.mxu0 0
        %2318 = vmatpush1.bf16.msra.mxu0 0
        %2319 = vmatprep.subr.bf16.mxu0 0
        %2320 = vmatpush1.bf16.msra.mxu0 0
        %2321 = vmatprep.subr.bf16.mxu0 0
        %2322 = vmatpush1.bf16.msra.mxu0 0
        %2323 = vmatprep.subr.bf16.mxu0 0
        %2324 = vmatpush1.bf16.msra.mxu0 0
        %2325 = vmatprep.subr.bf16.mxu0 0
        %2326 = vmatpush1.bf16.msra.mxu0 0
        %2327 = vmatprep.subr.bf16.mxu0 0
        %2328 = vmatpush1.bf16.msra.mxu0 0
        %2329 = vmatprep.subr.bf16.mxu0 0
        %2330 = vmatpush1.bf16.msra.mxu0 0
        %2331 = vmatprep.mubr.bf16.mxu0 0
        %2332 = vmatmul.mubr.bf16.gmra.mrb[0].mxu0 %v2297
        %v2333 = vpop.f32.mrb[0].mxu0
        %v2334 = vadd.f32 0.0, %v2333
        %v2335 = vpop.f32.mrb[0].mxu0
        %v2336 = vpop.f32.mrb[0].mxu0
        %v2337 = vadd.f32 0.0, %v2336
        %v2338 = vpop.f32.mrb[0].mxu0
        %2339 = vdwg.mxu0
        %v2340 = vadd.f32 %v2273, %v2334
        %v2341 = vadd.f32 %v2276, %v2337
        %v2342 = vlaneseq
        %v2343 = vshrl.u32 %v2342, 7
        %v2344 = vsub.s32 0, %v2343
        %v2345 = vrot.slane %v2145, %v2344
        %v2346 = vadd.f32 %v2340, %v2345
        %v2347 = vadd.f32 %v2341, %v2345
        %v2348 = vmax.f32 %v2346, 0.0
        %v2349 = vmax.f32 %v2347, 0.0
        %v2350 = vsel %vm913, %v2348, 0.0
        %2351 = vadd.xlane.f32.xlu0 %v2350
        %v2352 = vpop.xlane.xlu0 %2351
        %v2353 = vsel %vm913, %v2349, 0.0
        %2354 = vadd.xlane.f32.xlu0 %v2353
        %v2355 = vpop.xlane.xlu0 %2354
        %v2356 = vmul.f32 %v2352, %v1081
        %v2357 = vmul.f32 %v2355, %v1081
        %v2358 = vmul.f32 %v2348, %v2348
        %v2359 = vmul.f32 %v2349, %v2349
        %v2360 = vsel %vm913, %v2358, 0.0
        %2361 = vadd.xlane.f32.xlu0 %v2360
        %v2362 = vpop.xlane.xlu0 %2361
        %v2363 = vsel %vm913, %v2359, 0.0
        %2364 = vadd.xlane.f32.xlu0 %v2363
        %v2365 = vpop.xlane.xlu0 %2364
        %v2366 = vmul.f32 %v2362, %v1081
        %v2367 = vmul.f32 %v2365, %v1081
        %v2368 = vmul.f32 %v2356, %v2356
        %v2369 = vmul.f32 %v2357, %v2357
        %v2370 = vsub.f32 %v2366, %v2368
        %v2371 = vsub.f32 %v2367, %v2369
        %v2372 = vmax.f32 %v2370, 0.0
        %v2373 = vmax.f32 %v2371, 0.0
        %v2374 = vsub.f32 %v2348, %v2356
        %v2375 = vsub.f32 %v2349, %v2357
        %v2376 = vadd.f32 %v2372, 1e-05
        %v2377 = vadd.f32 %v2373, 1e-05
        %v2378 = vrsqrt.pop %v2376
        %v2379 = vrsqrt.pop %v2377
        %v2380 = vmul.f32 %v2374, %v2378
        %v2381 = vmul.f32 %v2375, %v2379
        %v2382 = vlaneseq
        %v2383 = vshrl.u32 %v2382, 7
        %v2384 = vsub.s32 1, %v2383
        %v2385 = vrot.slane %v2145, %v2384
        %v2386 = vmul.f32 %v2380, %v2385
        %v2387 = vmul.f32 %v2381, %v2385
        %v2388 = vlaneseq
        %v2389 = vshrl.u32 %v2388, 7
        %v2390 = vsub.s32 2, %v2389
        %v2391 = vrot.slane %v2145, %v2390
        %v2392 = vadd.f32 %v2386, %v2391
        %v2393 = vadd.f32 %v2387, %v2391
        %v2394 = vpack.c.bf16 %v2393, %v2392
        %v2396 = vshrl.u32 %v2394, 16
        %v2398 = vrot.slane %v2396, 7
        %v2399 = vshll.u32 %v2394, 16
        %v2401 = vor.u32 %v2398, %v2399
        %v2403 = vsel %vm883, 0, %v2401
        %v2404 = vrot.slane %v2399, 1
        %v2405 = vor.u32 %v2396, %v2404
        %v2407 = vsel %vm1466, %v2405, 0
        %v2408 = vld [vmem:[#allocation13] sm:$0xf]
        %v2409 = vld [vmem:[#allocation13 + $0x4] sm:$0xf]
        %v2410 = vld [vmem:[#allocation13 + $0x8] sm:$0xf]
        %v2411 = vld [vmem:[#allocation13 + $0xc] sm:$0xf]
        %s2412 = scalar_lea.vmem [#allocation13], 16
        %v2413 = vld [vmem:[%s2412] sm:$0xf]
        %v2414 = vld [vmem:[%s2412 + $0x4] sm:$0xf]
        %v2415 = vld [vmem:[%s2412 + $0x8] sm:$0xf]
        %v2416 = vld [vmem:[%s2412 + $0xc] sm:$0xf]
        %v2421 = vunpack.c.l.b16 %v2413
        %v2422 = vunpack.c.l.b16 %v2414
        %v2423 = vunpack.c.l.b16 %v2415
        %v2424 = vunpack.c.l.b16 %v2416
        %v2425 = vpack.c.b16 %v2422, %v2421
        %v2426 = vpack.c.b16 %v2424, %v2423
        %v2429 = vsel %vm913, %v2394, 0
        %2431 = vmatprep.subr.bf16.mxu0 0
        %2432 = vmatpush1.bf16.msra.mxu0 %v2425
        %2433 = vmatprep.subr.bf16.mxu0 0
        %2434 = vmatpush1.bf16.msra.mxu0 %v2426
        %2435 = vmatprep.subr.bf16.mxu0 0
        %2436 = vmatpush1.bf16.msra.mxu0 0
        %2437 = vmatprep.subr.bf16.mxu0 0
        %2438 = vmatpush1.bf16.msra.mxu0 0
        %2439 = vmatprep.subr.bf16.mxu0 0
        %2440 = vmatpush1.bf16.msra.mxu0 0
        %2441 = vmatprep.subr.bf16.mxu0 0
        %2442 = vmatpush1.bf16.msra.mxu0 0
        %2443 = vmatprep.subr.bf16.mxu0 0
        %2444 = vmatpush1.bf16.msra.mxu0 0
        %2445 = vmatprep.subr.bf16.mxu0 0
        %2446 = vmatpush1.bf16.msra.mxu0 0
        %2447 = vmatprep.subr.bf16.mxu0 0
        %2448 = vmatpush1.bf16.msra.mxu0 0
        %2449 = vmatprep.subr.bf16.mxu0 0
        %2450 = vmatpush1.bf16.msra.mxu0 0
        %2451 = vmatprep.subr.bf16.mxu0 0
        %2452 = vmatpush1.bf16.msra.mxu0 0
        %2453 = vmatprep.subr.bf16.mxu0 0
        %2454 = vmatpush1.bf16.msra.mxu0 0
        %2455 = vmatprep.subr.bf16.mxu0 0
        %2456 = vmatpush1.bf16.msra.mxu0 0
        %2457 = vmatprep.subr.bf16.mxu0 0
        %2458 = vmatpush1.bf16.msra.mxu0 0
        %2459 = vmatprep.subr.bf16.mxu0 0
        %2460 = vmatpush1.bf16.msra.mxu0 0
        %2461 = vmatprep.subr.bf16.mxu0 0
        %2462 = vmatpush1.bf16.msra.mxu0 0
        %2463 = vmatprep.mubr.bf16.mxu0 0
        %2464 = vmatmul.mubr.bf16.gmra.mrb[0].mxu0 %v2429
        %v2465 = vpop.f32.mrb[0].mxu0
        %v2466 = vadd.f32 0.0, %v2465
        %v2467 = vpop.f32.mrb[0].mxu0
        %v2468 = vpop.f32.mrb[0].mxu0
        %v2469 = vadd.f32 0.0, %v2468
        %v2470 = vpop.f32.mrb[0].mxu0
        %2471 = vdwg.mxu0
        %v2476 = vunpack.c.l.b16 %v2408
        %v2477 = vunpack.c.l.b16 %v2409
        %v2478 = vunpack.c.l.b16 %v2410
        %v2479 = vunpack.c.l.b16 %v2411
        %v2480 = vpack.c.b16 %v2477, %v2476
        %v2481 = vpack.c.b16 %v2479, %v2478
        %v2485 = vsel %vm913, %v2403, 0
        %2487 = vmatprep.subr.bf16.mxu0 0
        %2488 = vmatpush1.bf16.msra.mxu0 %v2480
        %2489 = vmatprep.subr.bf16.mxu0 0
        %2490 = vmatpush1.bf16.msra.mxu0 %v2481
        %2491 = vmatprep.subr.bf16.mxu0 0
        %2492 = vmatpush1.bf16.msra.mxu0 0
        %2493 = vmatprep.subr.bf16.mxu0 0
        %2494 = vmatpush1.bf16.msra.mxu0 0
        %2495 = vmatprep.subr.bf16.mxu0 0
        %2496 = vmatpush1.bf16.msra.mxu0 0
        %2497 = vmatprep.subr.bf16.mxu0 0
        %2498 = vmatpush1.bf16.msra.mxu0 0
        %2499 = vmatprep.subr.bf16.mxu0 0
        %2500 = vmatpush1.bf16.msra.mxu0 0
        %2501 = vmatprep.subr.bf16.mxu0 0
        %2502 = vmatpush1.bf16.msra.mxu0 0
        %2503 = vmatprep.subr.bf16.mxu0 0
        %2504 = vmatpush1.bf16.msra.mxu0 0
        %2505 = vmatprep.subr.bf16.mxu0 0
        %2506 = vmatpush1.bf16.msra.mxu0 0
        %2507 = vmatprep.subr.bf16.mxu0 0
        %2508 = vmatpush1.bf16.msra.mxu0 0
        %2509 = vmatprep.subr.bf16.mxu0 0
        %2510 = vmatpush1.bf16.msra.mxu0 0
        %2511 = vmatprep.subr.bf16.mxu0 0
        %2512 = vmatpush1.bf16.msra.mxu0 0
        %2513 = vmatprep.subr.bf16.mxu0 0
        %2514 = vmatpush1.bf16.msra.mxu0 0
        %2515 = vmatprep.subr.bf16.mxu0 0
        %2516 = vmatpush1.bf16.msra.mxu0 0
        %2517 = vmatprep.subr.bf16.mxu0 0
        %2518 = vmatpush1.bf16.msra.mxu0 0
        %2519 = vmatprep.mubr.bf16.mxu0 0
        %2520 = vmatmul.mubr.bf16.gmra.mrb[0].mxu0 %v2485
        %v2521 = vpop.f32.mrb[0].mxu0
        %v2522 = vadd.f32 %v2466, %v2521
        %v2523 = vpop.f32.mrb[0].mxu0
        %v2524 = vpop.f32.mrb[0].mxu0
        %v2525 = vadd.f32 %v2469, %v2524
        %v2526 = vpop.f32.mrb[0].mxu0
        %2527 = vdwg.mxu0
        %s2528 = scalar_lea.vmem [#allocation13], 32
        %v2529 = vld [vmem:[%s2528] sm:$0xf]
        %v2530 = vld [vmem:[%s2528 + $0x4] sm:$0xf]
        %v2531 = vld [vmem:[%s2528 + $0x8] sm:$0xf]
        %v2532 = vld [vmem:[%s2528 + $0xc] sm:$0xf]
        %v2537 = vunpack.c.l.b16 %v2529
        %v2538 = vunpack.c.l.b16 %v2530
        %v2539 = vunpack.c.l.b16 %v2531
        %v2540 = vunpack.c.l.b16 %v2532
        %v2541 = vpack.c.b16 %v2538, %v2537
        %v2542 = vpack.c.b16 %v2540, %v2539
        %v2546 = vsel %vm913, %v2407, 0
        %2548 = vmatprep.subr.bf16.mxu0 0
        %2549 = vmatpush1.bf16.msra.mxu0 %v2541
        %2550 = vmatprep.subr.bf16.mxu0 0
        %2551 = vmatpush1.bf16.msra.mxu0 %v2542
        %2552 = vmatprep.subr.bf16.mxu0 0
        %2553 = vmatpush1.bf16.msra.mxu0 0
        %2554 = vmatprep.subr.bf16.mxu0 0
        %2555 = vmatpush1.bf16.msra.mxu0 0
        %2556 = vmatprep.subr.bf16.mxu0 0
        %2557 = vmatpush1.bf16.msra.mxu0 0
        %2558 = vmatprep.subr.bf16.mxu0 0
        %2559 = vmatpush1.bf16.msra.mxu0 0
        %2560 = vmatprep.subr.bf16.mxu0 0
        %2561 = vmatpush1.bf16.msra.mxu0 0
        %2562 = vmatprep.subr.bf16.mxu0 0
        %2563 = vmatpush1.bf16.msra.mxu0 0
        %2564 = vmatprep.subr.bf16.mxu0 0
        %2565 = vmatpush1.bf16.msra.mxu0 0
        %2566 = vmatprep.subr.bf16.mxu0 0
        %2567 = vmatpush1.bf16.msra.mxu0 0
        %2568 = vmatprep.subr.bf16.mxu0 0
        %2569 = vmatpush1.bf16.msra.mxu0 0
        %2570 = vmatprep.subr.bf16.mxu0 0
        %2571 = vmatpush1.bf16.msra.mxu0 0
        %2572 = vmatprep.subr.bf16.mxu0 0
        %2573 = vmatpush1.bf16.msra.mxu0 0
        %2574 = vmatprep.subr.bf16.mxu0 0
        %2575 = vmatpush1.bf16.msra.mxu0 0
        %2576 = vmatprep.subr.bf16.mxu0 0
        %2577 = vmatpush1.bf16.msra.mxu0 0
        %2578 = vmatprep.subr.bf16.mxu0 0
        %2579 = vmatpush1.bf16.msra.mxu0 0
        %2580 = vmatprep.mubr.bf16.mxu0 0
        %2581 = vmatmul.mubr.bf16.gmra.mrb[0].mxu0 %v2546
        %v2582 = vpop.f32.mrb[0].mxu0
        %v2583 = vadd.f32 0.0, %v2582
        %v2584 = vpop.f32.mrb[0].mxu0
        %v2585 = vpop.f32.mrb[0].mxu0
        %v2586 = vadd.f32 0.0, %v2585
        %v2587 = vpop.f32.mrb[0].mxu0
        %2588 = vdwg.mxu0
        %v2589 = vadd.f32 %v2522, %v2583
        %v2590 = vadd.f32 %v2525, %v2586
        %v2591 = vlaneseq
        %v2592 = vshrl.u32 %v2591, 7
        %v2593 = vsub.s32 3, %v2592
        %v2594 = vrot.slane %v2145, %v2593
        %v2595 = vadd.f32 %v2589, %v2594
        %v2596 = vadd.f32 %v2590, %v2594
        %v2597 = vmax.f32 %v2595, 0.0
        %v2598 = vmax.f32 %v2596, 0.0
        %v2599 = vsel %vm913, %v2597, 0.0
        %2600 = vadd.xlane.f32.xlu0 %v2599
        %v2601 = vpop.xlane.xlu0 %2600
        %v2602 = vsel %vm913, %v2598, 0.0
        %2603 = vadd.xlane.f32.xlu0 %v2602
        %v2604 = vpop.xlane.xlu0 %2603
        %v2605 = vmul.f32 %v2601, %v1081
        %v2606 = vmul.f32 %v2604, %v1081
        %v2607 = vmul.f32 %v2597, %v2597
        %v2608 = vmul.f32 %v2598, %v2598
        %v2609 = vsel %vm913, %v2607, 0.0
        %2610 = vadd.xlane.f32.xlu0 %v2609
        %v2611 = vpop.xlane.xlu0 %2610
        %v2612 = vsel %vm913, %v2608, 0.0
        %2613 = vadd.xlane.f32.xlu0 %v2612
        %v2614 = vpop.xlane.xlu0 %2613
        %v2615 = vmul.f32 %v2611, %v1081
        %v2616 = vmul.f32 %v2614, %v1081
        %v2617 = vmul.f32 %v2605, %v2605
        %v2618 = vmul.f32 %v2606, %v2606
        %v2619 = vsub.f32 %v2615, %v2617
        %v2620 = vsub.f32 %v2616, %v2618
        %v2621 = vmax.f32 %v2619, 0.0
        %v2622 = vmax.f32 %v2620, 0.0
        %v2623 = vsub.f32 %v2597, %v2605
        %v2624 = vsub.f32 %v2598, %v2606
        %v2625 = vadd.f32 %v2621, 1e-05
        %v2626 = vadd.f32 %v2622, 1e-05
        %v2627 = vrsqrt.pop %v2625
        %v2628 = vrsqrt.pop %v2626
        %v2629 = vmul.f32 %v2623, %v2627
        %v2630 = vmul.f32 %v2624, %v2628
        %v2631 = vlaneseq
        %v2632 = vshrl.u32 %v2631, 7
        %v2633 = vsub.s32 4, %v2632
        %v2634 = vrot.slane %v2145, %v2633
        %v2635 = vmul.f32 %v2629, %v2634
        %v2636 = vmul.f32 %v2630, %v2634
        %v2637 = vlaneseq
        %v2638 = vshrl.u32 %v2637, 7
        %v2639 = vsub.s32 5, %v2638
        %v2640 = vrot.slane %v2145, %v2639
        %v2641 = vadd.f32 %v2635, %v2640
        %v2642 = vadd.f32 %v2636, %v2640
        %v2643 = vlaneseq
        %v2644 = vshrl.u32 %v2643, 7
        %v2645 = vsub.s32 6, %v2644
        %v2646 = vrot.slane %v2145, %v2645
        %v2647 = vmul.f32 %v2641, %v2646
        %v2648 = vmul.f32 %v2642, %v2646
        %v2649 = vsel %vm913, %v2647, 0.0
        %2650 = vadd.xlane.f32.xlu0 %v2649
        %v2651 = vpop.xlane.xlu0 %2650
        %v2652 = vsel %vm913, %v2648, 0.0
        %2653 = vadd.xlane.f32.xlu0 %v2652
        %v2654 = vpop.xlane.xlu0 %2653
        %v2655 = vlaneseq
        %v2656 = vshrl.u32 %v2655, 7
        %v2657 = vsub.s32 7, %v2656
        %v2658 = vrot.slane %v2145, %v2657
        %v2659 = vadd.f32 %v2651, %v2658
        %v2660 = vadd.f32 %v2654, %v2658
        %2661 = vxpose.xlu0.b32.start [1/16] %v2659, 128
        %2662 = vxpose.xlu0.b32.cont [2/16] %v2660, 128
        %2663 = vxpose.xlu0.b32.cont [3/16] 0.0, 128
        %2664 = vxpose.xlu0.b32.cont [4/16] 0.0, 128
        %2665 = vxpose.xlu0.b32.cont [5/16] 0.0, 128
        %2666 = vxpose.xlu0.b32.cont [6/16] 0.0, 128
        %2667 = vxpose.xlu0.b32.cont [7/16] 0.0, 128
        %2668 = vxpose.xlu0.b32.cont [8/16] 0.0, 128
        %2669 = vxpose.xlu0.b32.cont [9/16] 0.0, 128
        %2670 = vxpose.xlu0.b32.cont [10/16] 0.0, 128
        %2671 = vxpose.xlu0.b32.cont [11/16] 0.0, 128
        %2672 = vxpose.xlu0.b32.cont [12/16] 0.0, 128
        %2673 = vxpose.xlu0.b32.cont [13/16] 0.0, 128
        %2674 = vxpose.xlu0.b32.cont [14/16] 0.0, 128
        %2675 = vxpose.xlu0.b32.cont [15/16] 0.0, 128
        %2676 = vxpose.xlu0.b32.end [16/16] 0.0, 128
        %v2677 = vpop.trf.xlu0
        %v2678 = vpop.trf.xlu0
        %v2679 = vpop.trf.xlu0
        %v2680 = vpop.trf.xlu0
        %v2681 = vpop.trf.xlu0
        %v2682 = vpop.trf.xlu0
        %v2683 = vpop.trf.xlu0
        %v2684 = vpop.trf.xlu0
        %v2685 = vpop.trf.xlu0
        %v2686 = vpop.trf.xlu0
        %v2687 = vpop.trf.xlu0
        %v2688 = vpop.trf.xlu0
        %v2689 = vpop.trf.xlu0
        %v2690 = vpop.trf.xlu0
        %v2691 = vpop.trf.xlu0
        %v2692 = vpop.trf.xlu0
        %2693 = vst.msk [vmem:[%s852] sm:$0x1] %vm2002, %v2677
        %v2694 = vld [vmem:[%s868] sm:$0x1]
        %2695 = vxpose.xlu0.b32.start [1/16] %v2694, 128
        %2696 = vxpose.xlu0.b32.cont [2/16] 0.0, 128
        %2697 = vxpose.xlu0.b32.cont [3/16] 0.0, 128
        %2698 = vxpose.xlu0.b32.cont [4/16] 0.0, 128
        %2699 = vxpose.xlu0.b32.cont [5/16] 0.0, 128
        %2700 = vxpose.xlu0.b32.cont [6/16] 0.0, 128
        %2701 = vxpose.xlu0.b32.cont [7/16] 0.0, 128
        %2702 = vxpose.xlu0.b32.cont [8/16] 0.0, 128
        %2703 = vxpose.xlu0.b32.cont [9/16] 0.0, 128
        %2704 = vxpose.xlu0.b32.cont [10/16] 0.0, 128
        %2705 = vxpose.xlu0.b32.cont [11/16] 0.0, 128
        %2706 = vxpose.xlu0.b32.cont [12/16] 0.0, 128
        %2707 = vxpose.xlu0.b32.cont [13/16] 0.0, 128
        %2708 = vxpose.xlu0.b32.cont [14/16] 0.0, 128
        %2709 = vxpose.xlu0.b32.cont [15/16] 0.0, 128
        %2710 = vxpose.xlu0.b32.end [16/16] 0.0, 128
        %v2711 = vpop.trf.xlu0
        %v2712 = vpop.trf.xlu0
        %v2713 = vpop.trf.xlu0
        %v2714 = vpop.trf.xlu0
        %v2715 = vpop.trf.xlu0
        %v2716 = vpop.trf.xlu0
        %v2717 = vpop.trf.xlu0
        %v2718 = vpop.trf.xlu0
        %v2719 = vpop.trf.xlu0
        %v2720 = vpop.trf.xlu0
        %v2721 = vpop.trf.xlu0
        %v2722 = vpop.trf.xlu0
        %v2723 = vpop.trf.xlu0
        %v2724 = vpop.trf.xlu0
        %v2725 = vpop.trf.xlu0
        %v2726 = vpop.trf.xlu0
        %v2727 = vld [vmem:[%s16] sm:$0x1]
        %v2729 = vlaneseq
        %v2730 = vshrl.u32 %v2729, 7
        %v2731 = vsub.s32 0, %v2730
        %v2732 = vrot.slane %v2727, %v2731
        %2735 = vset.pattern.permute.xlu0 0
        %2736 = vperm.xlu0 %2735, %v2711
        %v2737 = vpop.permute.xlu0 %2736
        %2740 = vset.pattern.permute.xlu0 0
        %2741 = vperm.xlu0 %2740, %v2712
        %v2742 = vpop.permute.xlu0 %2741
        %vm2744 = vcmp.lt.f32.partialorder %v2732, %v2737
        %vm2745 = vcmp.lt.f32.partialorder %v2732, %v2742
        %v2746 = vsel %vm2744, 1, 0
        %v2747 = vsel %vm2745, 1, 0
        %v2748 = vsel %vm2058, %v2746, 0
        %v2749 = vand.u32 %v2748, 65535
        %v2750 = vshrl.u32 %v2748, 16
        %v2751 = vcvt.s32.f32 %v2749
        %v2752 = vcvt.s32.f32 %v2750
        %2753 = vadd.xlane.f32.xlu0 %v2751
        %v2754 = vpop.xlane.xlu0 %2753
        %2755 = vadd.xlane.f32.xlu0 %v2752
        %v2756 = vpop.xlane.xlu0 %2755
        %v2757 = vcvt.f32.s32 %v2754
        %v2758 = vcvt.f32.s32 %v2756
        %v2759 = vshll.u32 %v2758, 16
        %v2760 = vadd.s32 %v2759, %v2757
        %v2761 = vsel %vm2058, %v2747, 0
        %v2762 = vand.u32 %v2761, 65535
        %v2763 = vshrl.u32 %v2761, 16
        %v2764 = vcvt.s32.f32 %v2762
        %v2765 = vcvt.s32.f32 %v2763
        %2766 = vadd.xlane.f32.xlu0 %v2764
        %v2767 = vpop.xlane.xlu0 %2766
        %2768 = vadd.xlane.f32.xlu0 %v2765
        %v2769 = vpop.xlane.xlu0 %2768
        %v2770 = vcvt.f32.s32 %v2767
        %v2771 = vcvt.f32.s32 %v2769
        %v2772 = vshll.u32 %v2771, 16
        %v2773 = vadd.s32 %v2772, %v2770
        %vm2774 = vcmp.eq.s32.totalorder %v2760, %v2086
        %vm2775 = vcmp.eq.s32.totalorder %v2773, %v2086
        %v2776 = vsel %vm2774, 1, 0
        %v2777 = vsel %vm2775, 1, 0
        %v2778 = vcvt.s32.f32 %v2776
        %v2779 = vcvt.s32.f32 %v2777
        %v2780 = vpack.c.bf16 %v2779, %v2778
        %v2781 = vld [vmem:[%s17] sm:$0xf]
        %v2783 = vsel %vm1402, %v2780, 0
        %v2786 = vsel %vm1406, %v2781, 0
        %2788 = vmatprep.subr.bf16.mxu0 0
        %2789 = vmatpush1.bf16.msra.mxu0 %v2786
        %2790 = vmatprep.subr.bf16.mxu0 0
        %2791 = vmatpush1.bf16.msra.mxu0 0
        %2792 = vmatprep.subr.bf16.mxu0 0
        %2793 = vmatpush1.bf16.msra.mxu0 0
        %2794 = vmatprep.subr.bf16.mxu0 0
        %2795 = vmatpush1.bf16.msra.mxu0 0
        %2796 = vmatprep.subr.bf16.mxu0 0
        %2797 = vmatpush1.bf16.msra.mxu0 0
        %2798 = vmatprep.subr.bf16.mxu0 0
        %2799 = vmatpush1.bf16.msra.mxu0 0
        %2800 = vmatprep.subr.bf16.mxu0 0
        %2801 = vmatpush1.bf16.msra.mxu0 0
        %2802 = vmatprep.subr.bf16.mxu0 0
        %2803 = vmatpush1.bf16.msra.mxu0 0
        %2804 = vmatprep.subr.bf16.mxu0 0
        %2805 = vmatpush1.bf16.msra.mxu0 0
        %2806 = vmatprep.subr.bf16.mxu0 0
        %2807 = vmatpush1.bf16.msra.mxu0 0
        %2808 = vmatprep.subr.bf16.mxu0 0
        %2809 = vmatpush1.bf16.msra.mxu0 0
        %2810 = vmatprep.subr.bf16.mxu0 0
        %2811 = vmatpush1.bf16.msra.mxu0 0
        %2812 = vmatprep.subr.bf16.mxu0 0
        %2813 = vmatpush1.bf16.msra.mxu0 0
        %2814 = vmatprep.subr.bf16.mxu0 0
        %2815 = vmatpush1.bf16.msra.mxu0 0
        %2816 = vmatprep.subr.bf16.mxu0 0
        %2817 = vmatpush1.bf16.msra.mxu0 0
        %2818 = vmatprep.subr.bf16.mxu0 0
        %2819 = vmatpush1.bf16.msra.mxu0 0
        %2820 = vmatprep.mubr.bf16.mxu0 0
        %2821 = vmatmul.mubr.bf16.gmra.mrb[0].mxu0 %v2783
        %v2822 = vpop.f32.mrb[0].mxu0
        %v2823 = vadd.f32 0.0, %v2822
        %v2824 = vpop.f32.mrb[0].mxu0
        %v2825 = vpop.f32.mrb[0].mxu0
        %v2826 = vadd.f32 0.0, %v2825
        %v2827 = vpop.f32.mrb[0].mxu0
        %2828 = vdwg.mxu0
        %v2829 = vadd.f32 %v2142, %v2823
        %v2830 = vadd.f32 %v2143, %v2826
        %2831 = vst.msk [vmem:[%s834] sm:$0xff] %vm913, %v2829
        %2832 = vst.msk [vmem:[%s834 + $0x8] sm:$0xff] %vm913, %v2830
        %s2833 = sand.u32 %s459, 1
        %s2834 = scalar_lea.sflag [#allocation4], %s2833
        %s2835 = sand.u32 %s459, 1
        %s2836 = smul.addr %s2835, 16
        %s2837 = scalar_lea.vmem [#allocation19], %s2836
        %s2838 = sand.u32 %s48, 1
        %s2839 = scalar_lea.sflag [#allocation21], %s2838
        %s2840 = sand.u32 %s485, 1
        %s2841 = scalar_lea.vmem [#allocation20], %s2840
        %s2842 = sand.u32 %s48, 1
        %s2843 = scalar_lea.sflag [#allocation21], %s2842
        %s2844 = sand.u32 %s511, 1
        %s2845 = scalar_lea.vmem [#allocation22], %s2844
        %s2846 = sand.u32 %s537, 1
        %s2847 = scalar_lea.sflag [#allocation24], %s2846
        %s2848 = sand.u32 %s537, 1
        %s2849 = scalar_lea.vmem [#allocation23], %s2848
        // Predicated region
        $region133: #{variance_adaptor_forward.1} parent=91 // pred_check
          %p2850 = pneg %p469
        $region134: #{variance_adaptor_forward.1} parent=91 // pred_check_branch
          %2852 = sbr.rel (%p2850) target = $region136
        $region135: #{variance_adaptor_forward.1} parent=91 // pred_region
          %s2854 = ssub.s32 256, 256
          %2855 = vsyncadd %s2834, %s2854
          %s2856 = smul.addr %s48, 2
          %s2857 = smul.addr %s2856, 128
          %s2858 = scalar_lea.hbm %s18, %s2857
          %s2859 = sshll.u32 %s2837, 4
          %s2860 = int_to_ptr.vmem [resolvable:$true] %s2859
          %2865 = dma.vmem_to_hbm [thread:$0]  %s2860, 256, %s2858, %s2834, 128, 128, 8
        $region136: #{variance_adaptor_forward.1} parent=91 // pred_fallthru
          _
        // Predicated region
        $region137: #{variance_adaptor_forward.1} parent=91 // pred_check
          %p2866 = pneg %p495
        $region138: #{variance_adaptor_forward.1} parent=91 // pred_check_branch
          %2868 = sbr.rel (%p2866) target = $region140
        $region139: #{variance_adaptor_forward.1} parent=91 // pred_region
          %s2870 = ssub.s32 16, 16
          %2871 = vsyncadd %s2839, %s2870
          %s2872 = smul.addr %s48, 16
          %s2873 = scalar_lea.hbm %s19, %s2872
          %s2875 = sshll.u32 %s2841, 4
          %s2876 = int_to_ptr.vmem [resolvable:$true] %s2875
          %2878 = dma.vmem_to_hbm [thread:$0]  %s2876, 16, %s2873, %s2839
        $region140: #{variance_adaptor_forward.1} parent=91 // pred_fallthru
          _
        // Predicated region
        $region141: #{variance_adaptor_forward.1} parent=91 // pred_check
          %p2879 = pneg %p521
        $region142: #{variance_adaptor_forward.1} parent=91 // pred_check_branch
          %2881 = sbr.rel (%p2879) target = $region144
        $region143: #{variance_adaptor_forward.1} parent=91 // pred_region
          %s2883 = ssub.s32 16, 16
          %2884 = vsyncadd %s2843, %s2883
          %s2885 = smul.addr %s48, 16
          %s2886 = scalar_lea.hbm %s20, %s2885
          %s2888 = sshll.u32 %s2845, 4
          %s2889 = int_to_ptr.vmem [resolvable:$true] %s2888
          %2891 = dma.vmem_to_hbm [thread:$0]  %s2889, 16, %s2886, %s2843
        $region144: #{variance_adaptor_forward.1} parent=91 // pred_fallthru
          _
        // Predicated region
        $region145: #{variance_adaptor_forward.1} parent=91 // pred_check
          %p2892 = pneg %p547
        $region146: #{variance_adaptor_forward.1} parent=91 // pred_check_branch
          %2894 = sbr.rel (%p2892) target = $region148
        $region147: #{variance_adaptor_forward.1} parent=91 // pred_region
          %s2896 = ssub.s32 16, 16
          %2897 = vsyncadd %s2847, %s2896
          %s2898 = smul.addr %s48, 16
          %s2899 = scalar_lea.hbm %s21, %s2898
          %s2901 = sshll.u32 %s2849, 4
          %s2902 = int_to_ptr.vmem [resolvable:$true] %s2901
          %2904 = dma.vmem_to_hbm [thread:$0]  %s2902, 16, %s2899, %s2847
        $region148: #{variance_adaptor_forward.1} parent=91 // pred_fallthru
          _
      $region92: #{variance_adaptor_forward.1} parent=5 // pred_fallthru
        _
      %p2905 = scmp.le.s32.totalorder 2, %s43
      // Predicated region
      $region149: #{variance_adaptor_forward.1} parent=5 // pred_check
        %p2906 = pneg %p2905
      $region150: #{variance_adaptor_forward.1} parent=5 // pred_check_branch
        %2908 = sbr.rel (%p2906) target = $region152
      $region151: #{variance_adaptor_forward.1} parent=5 // pred_region
        %s2909 = ssub.s32 %s43, 2
        // Predicated region
        $region153: #{variance_adaptor_forward.1} parent=151 // pred_check
          %p2910 = pneg %p475
        $region154: #{variance_adaptor_forward.1} parent=151 // pred_check_branch
          %2912 = sbr.rel (%p2910) target = $region156
        $region155: #{variance_adaptor_forward.1} parent=151 // pred_region
          %s2913 = sand.u32 %s460, 1
          %s2914 = scalar_lea.sflag [#allocation4], %s2913
          %s2915 = sand.u32 %s460, 1
          %s2916 = smul.addr %s2915, 16
          %s2917 = scalar_lea.vmem [#allocation19], %s2916
          %2918 = dma.done %s2914, 256
        $region156: #{variance_adaptor_forward.1} parent=151 // pred_fallthru
          _
        // Predicated region
        $region157: #{variance_adaptor_forward.1} parent=151 // pred_check
          %p2919 = pneg %p501
        $region158: #{variance_adaptor_forward.1} parent=151 // pred_check_branch
          %2921 = sbr.rel (%p2919) target = $region160
        $region159: #{variance_adaptor_forward.1} parent=151 // pred_region
          %s2922 = sand.u32 %s49, 1
          %s2923 = scalar_lea.sflag [#allocation21], %s2922
          %s2924 = sand.u32 %s486, 1
          %s2925 = scalar_lea.vmem [#allocation20], %s2924
          %2926 = dma.done %s2923, 16
        $region160: #{variance_adaptor_forward.1} parent=151 // pred_fallthru
          _
        // Predicated region
        $region161: #{variance_adaptor_forward.1} parent=151 // pred_check
          %p2927 = pneg %p527
        $region162: #{variance_adaptor_forward.1} parent=151 // pred_check_branch
          %2929 = sbr.rel (%p2927) target = $region164
        $region163: #{variance_adaptor_forward.1} parent=151 // pred_region
          %s2930 = sand.u32 %s49, 1
          %s2931 = scalar_lea.sflag [#allocation21], %s2930
          %s2932 = sand.u32 %s512, 1
          %s2933 = scalar_lea.vmem [#allocation22], %s2932
          %2934 = dma.done %s2931, 16
        $region164: #{variance_adaptor_forward.1} parent=151 // pred_fallthru
          _
        // Predicated region
        $region165: #{variance_adaptor_forward.1} parent=151 // pred_check
          %p2935 = pneg %p553
        $region166: #{variance_adaptor_forward.1} parent=151 // pred_check_branch
          %2937 = sbr.rel (%p2935) target = $region168
        $region167: #{variance_adaptor_forward.1} parent=151 // pred_region
          %s2938 = sand.u32 %s538, 1
          %s2939 = scalar_lea.sflag [#allocation24], %s2938
          %s2940 = sand.u32 %s538, 1
          %s2941 = scalar_lea.vmem [#allocation23], %s2940
          %2942 = dma.done %s2939, 16
        $region168: #{variance_adaptor_forward.1} parent=151 // pred_fallthru
          _
      $region152: #{variance_adaptor_forward.1} parent=5 // pred_fallthru
        _
    $region6: #{variance_adaptor_forward.1} parent=1 // loop_footer
      %s47 = sadd.s32 1, %s43
    $region7: #{variance_adaptor_forward.1} parent=1 // loop_footer_branch
      %42 = sbr.rel target = $region3
    $region8: #{variance_adaptor_forward.1} parent=1 // loop_exit
      _
    %2943 = vsyncpa [#allocation3], 1
    %s2944 = scalar_lea.sflag [#allocation3], 1
    %2945 = vsyncpa %s2944, 1
    %2946 = vsyncpa [#allocation6], 1
    %2947 = vsyncpa [#allocation9], 1
    %2948 = vsyncpa [#allocation12], 1
    %2949 = vsyncpa [#allocation15], 1
    %2950 = vsyncpa [#allocation18], 1
    %2951 = vsyncpa [#allocation4], 1
    %s2952 = scalar_lea.sflag [#allocation4], 1
    %2953 = vsyncpa %s2952, 1
    %2954 = vsyncpa [#allocation21], 1
    %s2955 = scalar_lea.sflag [#allocation21], 1
    %2956 = vsyncpa %s2955, 1
    %2957 = vsyncpa [#allocation24], 1
    %s2958 = scalar_lea.sflag [#allocation24], 1
    %2959 = vsyncpa %s2958, 1

</llo_original>
